<compile_context>
chip_gen: v7x
topology: tpu7x:2x2x1
jax: 0.10.0
libtpu: 0.0.40
codegen_flags: <defaults>
</compile_context>

<pallas_src>
import functools

import jax
import jax.numpy as jnp
from jax.experimental import pallas as pl
from jax.experimental.pallas import tpu as pltpu


# ----------------------------- model shapes ---------------------------------

def _enc_dims(output_dim, latent_dim):
    return [output_dim, 128, 128, 128, 64, 32, 16, 2 * latent_dim]


def _dec_dims(output_dim, latent_dim):
    return [latent_dim, 16, 32, 64, 128, 128, 128, output_dim]


def _round_up(x, m):
    return ((x + m - 1) // m) * m


# ------------------------------- kernel -------------------------------------

def _vae_kernel(n_enc_hidden, n_dec,
                x_ref, eps_ref, w_ref, b_ref,
                out_ref, mu_ref, logvar_ref):
    """Single fused VAE forward on one (TB, 128) batch tile.

    w_ref: (L, P, P) bf16 packed weights (zero-padded to 128 lanes/sublanes)
    b_ref: (L, 1, P) f32 packed biases
    Layer order: enc hidden[0..5], mu head, log_var head, dec[0..6].
    """
    h = x_ref[...]                                            # bf16 (TB, P)

    # ---- Encoder hidden stack: Linear -> (bias+ReLU fused on f32 acc) ----
    for i in range(n_enc_hidden):
        acc = jnp.dot(h, w_ref[i], preferred_element_type=jnp.float32)
        h = jnp.maximum(acc + b_ref[i], 0.0).astype(jnp.bfloat16)

    # ---- mu / log_var heads: direct lane-dense 128-wide writes ----
    i_mu = n_enc_hidden
    i_lv = n_enc_hidden + 1
    mu = jnp.dot(h, w_ref[i_mu], preferred_element_type=jnp.float32) + b_ref[i_mu]
    log_var = jnp.dot(h, w_ref[i_lv], preferred_element_type=jnp.float32) + b_ref[i_lv]
    mu_ref[...] = mu
    logvar_ref[...] = log_var

    # ---- Reparameterize: forward() passes exp(0.5*log_var) as std,
    #      reparameterize then does z = mu + std * eps (no second exp). ----
    std = jnp.exp(0.5 * log_var)                              # EUP slot
    h = (mu + std * eps_ref[...]).astype(jnp.bfloat16)

    # ---- Decoder stack ----
    base = n_enc_hidden + 2
    for j in range(n_dec):
        i = base + j
        acc = jnp.dot(h, w_ref[i], preferred_element_type=jnp.float32) + b_ref[i]
        if j < n_dec - 1:
            h = jnp.maximum(acc, 0.0).astype(jnp.bfloat16)
        else:
            h = acc                                           # f32 logits
    out_ref[...] = h


# ------------------------------ wrapper --------------------------------------

def vae_forward(x, eps, w_stack, b_stack, output_dim, latent_dim, *, block_b=256):
    """x: (B, output_dim) f32; eps: (B, latent_dim) f32.

    w_stack: (L, P, P) bf16 packed/padded weights; b_stack: (L, 1, P) f32.
    Returns (recon, mu, log_var) with original (unpadded) shapes.
    """
    B, D = x.shape
    L, P, _ = w_stack.shape

    tb = min(block_b, _round_up(B, 8))
    b_pad = _round_up(B, tb)

    # Pad batch + lanes once in the wrapper (lane-dense 128-wide kernel I/O).
    x_p = jnp.zeros((b_pad, P), jnp.bfloat16).at[:B, :D].set(x.astype(jnp.bfloat16))
    eps_p = jnp.zeros((b_pad, P), jnp.float32).at[:B, :latent_dim].set(eps)

    grid = (b_pad // tb,)
    batch_spec = pl.BlockSpec((tb, P), lambda i: (i, 0))
    # Same block every grid step -> weights/biases stay resident in VMEM.
    w_spec = pl.BlockSpec((L, P, P), lambda i: (0, 0, 0))
    b_spec = pl.BlockSpec((L, 1, P), lambda i: (0, 0, 0))

    n_enc_hidden = 6
    n_dec = 7
    kernel = functools.partial(_vae_kernel, n_enc_hidden, n_dec)

    flops = 2 * b_pad * L * P * P
    bytes_accessed = (w_stack.size * 2 + b_stack.size * 4
                      + x_p.size * 2 + eps_p.size * 4 + 3 * b_pad * P * 4)
    cost = pl.CostEstimate(flops=flops,
                           transcendentals=b_pad * P,
                           bytes_accessed=bytes_accessed)

    recon_p, mu_p, lv_p = pl.pallas_call(
        kernel,
        grid=grid,
        in_specs=[batch_spec, batch_spec, w_spec, b_spec],
        out_specs=(batch_spec, batch_spec, batch_spec),
        out_shape=(
            jax.ShapeDtypeStruct((b_pad, P), jnp.float32),
            jax.ShapeDtypeStruct((b_pad, P), jnp.float32),
            jax.ShapeDtypeStruct((b_pad, P), jnp.float32),
        ),
        compiler_params=pltpu.CompilerParams(
            dimension_semantics=("parallel",)),   # 2 TCs on v7x; no-op on v5e/v6e
        cost_estimate=cost,
    )(x_p, eps_p, w_stack, b_stack)

    return (recon_p[:B, :D],
            mu_p[:B, :latent_dim],
            lv_p[:B, :latent_dim])


# -------------------------- parameter handling --------------------------------

def _init_mlp(key, dims):
    """PyTorch-Linear-style init U(-1/sqrt(fan_in), 1/sqrt(fan_in)).

    Weights stored (in_features, out_features); biases (out_features,).
    """
    params = []
    for d_in, d_out in zip(dims[:-1], dims[1:]):
        key, kw, kb = jax.random.split(key, 3)
        bound = 1.0 / (float(d_in) ** 0.5)
        w = jax.random.uniform(kw, (d_in, d_out), jnp.float32, -bound, bound)
        b = jax.random.uniform(kb, (d_out,), jnp.float32, -bound, bound)
        params.append((w, b))
    return params, key


def pack_params(enc_params, dec_params, latent_dim, pad):
    """Split the last encoder Linear into mu / log_var heads, zero-pad every
    layer to (pad, pad), and stack into one bf16 weight buffer + one f32 bias
    buffer (2 DMAs instead of 28 tiny ones)."""
    layers = list(enc_params[:-1])
    w_last, b_last = enc_params[-1]
    layers.append((w_last[:, :latent_dim], b_last[:latent_dim]))   # mu head
    layers.append((w_last[:, latent_dim:], b_last[latent_dim:]))   # log_var head
    layers.extend(dec_params)

    L = len(layers)
    w_stack = jnp.zeros((L, pad, pad), jnp.float32)
    b_stack = jnp.zeros((L, 1, pad), jnp.float32)
    for i, (w, b) in enumerate(layers):
        w_stack = w_stack.at[i, : w.shape[0], : w.shape[1]].set(w)
        b_stack = b_stack.at[i, 0, : b.shape[0]].set(b)
    return w_stack.astype(jnp.bfloat16), b_stack


# ------------------------------ reference -------------------------------------

def _ref_forward(x, eps, enc_params, dec_params, latent_dim):
    """Pure-JAX reference with the same bf16-operand / f32-accumulate recipe."""
    def mlp(h, params):
        for i, (w, b) in enumerate(params):
            acc = jnp.dot(h.astype(jnp.bfloat16), w.astype(jnp.bfloat16),
                          preferred_element_type=jnp.float32) + b
            h = jnp.maximum(acc, 0.0) if i < len(params) - 1 else acc
        return h

    enc_out = mlp(x, enc_params)
    mu = enc_out[:, :latent_dim]
    log_var = enc_out[:, latent_dim:]
    z = mu + jnp.exp(0.5 * log_var) * eps
    recon = mlp(z, dec_params)
    return recon, mu, log_var


# --------------------------------- main ---------------------------------------

if __name__ == "__main__":
    OUTPUT_DIM = 32
    LATENT_DIM = 4
    BATCH = 512          # two 256-row (MXU-height) tiles -> grid=(2,)

    root = jax.random.PRNGKey(0)
    k_enc, k_dec, k_x, k_eps = jax.random.split(root, 4)

    enc_params, _ = _init_mlp(k_enc, _enc_dims(OUTPUT_DIM, LATENT_DIM))
    dec_params, _ = _init_mlp(k_dec, _dec_dims(OUTPUT_DIM, LATENT_DIM))

    P = max(128, _round_up(OUTPUT_DIM, 128))
    w_stack, b_stack = pack_params(enc_params, dec_params, LATENT_DIM, P)

    x = jax.random.normal(k_x, (BATCH, OUTPUT_DIM), jnp.float32)
    # epsilon ~ N(0,1): plays the role of torch.randn_like(std) inside forward().
    eps = jax.random.normal(k_eps, (BATCH, LATENT_DIM), jnp.float32)

    recon, mu, log_var = vae_forward(x, eps, w_stack, b_stack,
                                     OUTPUT_DIM, LATENT_DIM, block_b=256)
    jax.block_until_ready((recon, mu, log_var))

    recon_r, mu_r, lv_r = _ref_forward(x, eps, enc_params, dec_params, LATENT_DIM)

    assert recon.shape == (BATCH, OUTPUT_DIM)
    assert mu.shape == (BATCH, LATENT_DIM) and log_var.shape == (BATCH, LATENT_DIM)
    assert jnp.allclose(mu, mu_r, atol=1e-2, rtol=1e-2)
    assert jnp.allclose(log_var, lv_r, atol=1e-2, rtol=1e-2)
    assert jnp.allclose(recon, recon_r, atol=2e-2, rtol=2e-2)

    print("KERNEL_OK")
</pallas_src>

<mosaic_0001>
module attributes {stable_mosaic.version = 11 : i64} {
  func.func @_vae_kernel(%arg0: i32, %arg1: memref<256x128xbf16, #tpu.memory_space<vmem>>, %arg2: memref<256x128xf32, #tpu.memory_space<vmem>>, %arg3: memref<15x128x128xbf16, #tpu.memory_space<vmem>>, %arg4: memref<15x1x128xf32, #tpu.memory_space<vmem>>, %arg5: memref<256x128xf32, #tpu.memory_space<vmem>>, %arg6: memref<256x128xf32, #tpu.memory_space<vmem>>, %arg7: memref<256x128xf32, #tpu.memory_space<vmem>>) attributes {dimension_semantics = [#tpu.dimension_semantics<parallel>], iteration_bounds = array<i64: 2>, scalar_prefetch = 0 : i64, scratch_operands = 0 : i64, tpu.core_type = #tpu.core_type<tc>, window_params = [{transform_indices = @transform_0, window_bounds = array<i64: 256, 128>}, {transform_indices = @transform_1, window_bounds = array<i64: 256, 128>}, {pipeline_mode = #tpu.pipeline_mode<synchronous>, transform_indices = @transform_2, window_bounds = array<i64: 15, 128, 128>}, {pipeline_mode = #tpu.pipeline_mode<synchronous>, transform_indices = @transform_3, window_bounds = array<i64: 15, 1, 128>}, {transform_indices = @transform_4, window_bounds = array<i64: 256, 128>}, {transform_indices = @transform_5, window_bounds = array<i64: 256, 128>}, {transform_indices = @transform_6, window_bounds = array<i64: 256, 128>}]} {
    %c0 = arith.constant 0 : index
    %c0_0 = arith.constant 0 : index
    %0 = vector.load %arg1[%c0, %c0_0] : memref<256x128xbf16, #tpu.memory_space<vmem>>, vector<256x128xbf16>
    %c0_1 = arith.constant 0 : index
    %c0_2 = arith.constant 0 : index
    %c0_3 = arith.constant 0 : index
    %1 = vector.load %arg3[%c0_1, %c0_2, %c0_3] : memref<15x128x128xbf16, #tpu.memory_space<vmem>>, vector<1x128x128xbf16>
    %2 = vector.shape_cast %1 : vector<1x128x128xbf16> to vector<128x128xbf16>
    %cst = arith.constant dense<0.000000e+00> : vector<256x128xf32>
    %3 = tpu.matmul %0, %2, %cst {dimension_numbers = #tpu.dot_dimension_numbers<[1], [0], [0], [1], [0, 0, 1, 1], [], []>} : vector<256x128xbf16>, vector<128x128xbf16>, vector<256x128xf32> -> vector<256x128xf32>
    %c0_4 = arith.constant 0 : index
    %c0_5 = arith.constant 0 : index
    %c0_6 = arith.constant 0 : index
    %4 = vector.load %arg4[%c0_4, %c0_5, %c0_6] : memref<15x1x128xf32, #tpu.memory_space<vmem>>, vector<1x1x128xf32>
    %5 = vector.shape_cast %4 : vector<1x1x128xf32> to vector<1x128xf32>
    %6 = vector.broadcast %5 : vector<1x128xf32> to vector<256x128xf32>
    %7 = arith.addf %3, %6 : vector<256x128xf32>
    %cst_7 = arith.constant 0.000000e+00 : f32
    %8 = vector.broadcast %cst_7 : f32 to vector<256x128xf32>
    %9 = arith.maximumf %7, %8 : vector<256x128xf32>
    %10 = arith.truncf %9 : vector<256x128xf32> to vector<256x128xbf16>
    %c1 = arith.constant 1 : index
    %c0_8 = arith.constant 0 : index
    %c0_9 = arith.constant 0 : index
    %11 = vector.load %arg3[%c1, %c0_8, %c0_9] : memref<15x128x128xbf16, #tpu.memory_space<vmem>>, vector<1x128x128xbf16>
    %12 = vector.shape_cast %11 : vector<1x128x128xbf16> to vector<128x128xbf16>
    %cst_10 = arith.constant dense<0.000000e+00> : vector<256x128xf32>
    %13 = tpu.matmul %10, %12, %cst_10 {dimension_numbers = #tpu.dot_dimension_numbers<[1], [0], [0], [1], [0, 0, 1, 1], [], []>} : vector<256x128xbf16>, vector<128x128xbf16>, vector<256x128xf32> -> vector<256x128xf32>
    %c1_11 = arith.constant 1 : index
    %c0_12 = arith.constant 0 : index
    %c0_13 = arith.constant 0 : index
    %14 = vector.load %arg4[%c1_11, %c0_12, %c0_13] : memref<15x1x128xf32, #tpu.memory_space<vmem>>, vector<1x1x128xf32>
    %15 = vector.shape_cast %14 : vector<1x1x128xf32> to vector<1x128xf32>
    %16 = vector.broadcast %15 : vector<1x128xf32> to vector<256x128xf32>
    %17 = arith.addf %13, %16 : vector<256x128xf32>
    %cst_14 = arith.constant 0.000000e+00 : f32
    %18 = vector.broadcast %cst_14 : f32 to vector<256x128xf32>
    %19 = arith.maximumf %17, %18 : vector<256x128xf32>
    %20 = arith.truncf %19 : vector<256x128xf32> to vector<256x128xbf16>
    %c2 = arith.constant 2 : index
    %c0_15 = arith.constant 0 : index
    %c0_16 = arith.constant 0 : index
    %21 = vector.load %arg3[%c2, %c0_15, %c0_16] : memref<15x128x128xbf16, #tpu.memory_space<vmem>>, vector<1x128x128xbf16>
    %22 = vector.shape_cast %21 : vector<1x128x128xbf16> to vector<128x128xbf16>
    %cst_17 = arith.constant dense<0.000000e+00> : vector<256x128xf32>
    %23 = tpu.matmul %20, %22, %cst_17 {dimension_numbers = #tpu.dot_dimension_numbers<[1], [0], [0], [1], [0, 0, 1, 1], [], []>} : vector<256x128xbf16>, vector<128x128xbf16>, vector<256x128xf32> -> vector<256x128xf32>
    %c2_18 = arith.constant 2 : index
    %c0_19 = arith.constant 0 : index
    %c0_20 = arith.constant 0 : index
    %24 = vector.load %arg4[%c2_18, %c0_19, %c0_20] : memref<15x1x128xf32, #tpu.memory_space<vmem>>, vector<1x1x128xf32>
    %25 = vector.shape_cast %24 : vector<1x1x128xf32> to vector<1x128xf32>
    %26 = vector.broadcast %25 : vector<1x128xf32> to vector<256x128xf32>
    %27 = arith.addf %23, %26 : vector<256x128xf32>
    %cst_21 = arith.constant 0.000000e+00 : f32
    %28 = vector.broadcast %cst_21 : f32 to vector<256x128xf32>
    %29 = arith.maximumf %27, %28 : vector<256x128xf32>
    %30 = arith.truncf %29 : vector<256x128xf32> to vector<256x128xbf16>
    %c3 = arith.constant 3 : index
    %c0_22 = arith.constant 0 : index
    %c0_23 = arith.constant 0 : index
    %31 = vector.load %arg3[%c3, %c0_22, %c0_23] : memref<15x128x128xbf16, #tpu.memory_space<vmem>>, vector<1x128x128xbf16>
    %32 = vector.shape_cast %31 : vector<1x128x128xbf16> to vector<128x128xbf16>
    %cst_24 = arith.constant dense<0.000000e+00> : vector<256x128xf32>
    %33 = tpu.matmul %30, %32, %cst_24 {dimension_numbers = #tpu.dot_dimension_numbers<[1], [0], [0], [1], [0, 0, 1, 1], [], []>} : vector<256x128xbf16>, vector<128x128xbf16>, vector<256x128xf32> -> vector<256x128xf32>
    %c3_25 = arith.constant 3 : index
    %c0_26 = arith.constant 0 : index
    %c0_27 = arith.constant 0 : index
    %34 = vector.load %arg4[%c3_25, %c0_26, %c0_27] : memref<15x1x128xf32, #tpu.memory_space<vmem>>, vector<1x1x128xf32>
    %35 = vector.shape_cast %34 : vector<1x1x128xf32> to vector<1x128xf32>
    %36 = vector.broadcast %35 : vector<1x128xf32> to vector<256x128xf32>
    %37 = arith.addf %33, %36 : vector<256x128xf32>
    %cst_28 = arith.constant 0.000000e+00 : f32
    %38 = vector.broadcast %cst_28 : f32 to vector<256x128xf32>
    %39 = arith.maximumf %37, %38 : vector<256x128xf32>
    %40 = arith.truncf %39 : vector<256x128xf32> to vector<256x128xbf16>
    %c4 = arith.constant 4 : index
    %c0_29 = arith.constant 0 : index
    %c0_30 = arith.constant 0 : index
    %41 = vector.load %arg3[%c4, %c0_29, %c0_30] : memref<15x128x128xbf16, #tpu.memory_space<vmem>>, vector<1x128x128xbf16>
    %42 = vector.shape_cast %41 : vector<1x128x128xbf16> to vector<128x128xbf16>
    %cst_31 = arith.constant dense<0.000000e+00> : vector<256x128xf32>
    %43 = tpu.matmul %40, %42, %cst_31 {dimension_numbers = #tpu.dot_dimension_numbers<[1], [0], [0], [1], [0, 0, 1, 1], [], []>} : vector<256x128xbf16>, vector<128x128xbf16>, vector<256x128xf32> -> vector<256x128xf32>
    %c4_32 = arith.constant 4 : index
    %c0_33 = arith.constant 0 : index
    %c0_34 = arith.constant 0 : index
    %44 = vector.load %arg4[%c4_32, %c0_33, %c0_34] : memref<15x1x128xf32, #tpu.memory_space<vmem>>, vector<1x1x128xf32>
    %45 = vector.shape_cast %44 : vector<1x1x128xf32> to vector<1x128xf32>
    %46 = vector.broadcast %45 : vector<1x128xf32> to vector<256x128xf32>
    %47 = arith.addf %43, %46 : vector<256x128xf32>
    %cst_35 = arith.constant 0.000000e+00 : f32
    %48 = vector.broadcast %cst_35 : f32 to vector<256x128xf32>
    %49 = arith.maximumf %47, %48 : vector<256x128xf32>
    %50 = arith.truncf %49 : vector<256x128xf32> to vector<256x128xbf16>
    %c5 = arith.constant 5 : index
    %c0_36 = arith.constant 0 : index
    %c0_37 = arith.constant 0 : index
    %51 = vector.load %arg3[%c5, %c0_36, %c0_37] : memref<15x128x128xbf16, #tpu.memory_space<vmem>>, vector<1x128x128xbf16>
    %52 = vector.shape_cast %51 : vector<1x128x128xbf16> to vector<128x128xbf16>
    %cst_38 = arith.constant dense<0.000000e+00> : vector<256x128xf32>
    %53 = tpu.matmul %50, %52, %cst_38 {dimension_numbers = #tpu.dot_dimension_numbers<[1], [0], [0], [1], [0, 0, 1, 1], [], []>} : vector<256x128xbf16>, vector<128x128xbf16>, vector<256x128xf32> -> vector<256x128xf32>
    %c5_39 = arith.constant 5 : index
    %c0_40 = arith.constant 0 : index
    %c0_41 = arith.constant 0 : index
    %54 = vector.load %arg4[%c5_39, %c0_40, %c0_41] : memref<15x1x128xf32, #tpu.memory_space<vmem>>, vector<1x1x128xf32>
    %55 = vector.shape_cast %54 : vector<1x1x128xf32> to vector<1x128xf32>
    %56 = vector.broadcast %55 : vector<1x128xf32> to vector<256x128xf32>
    %57 = arith.addf %53, %56 : vector<256x128xf32>
    %cst_42 = arith.constant 0.000000e+00 : f32
    %58 = vector.broadcast %cst_42 : f32 to vector<256x128xf32>
    %59 = arith.maximumf %57, %58 : vector<256x128xf32>
    %60 = arith.truncf %59 : vector<256x128xf32> to vector<256x128xbf16>
    %c6 = arith.constant 6 : index
    %c0_43 = arith.constant 0 : index
    %c0_44 = arith.constant 0 : index
    %61 = vector.load %arg3[%c6, %c0_43, %c0_44] : memref<15x128x128xbf16, #tpu.memory_space<vmem>>, vector<1x128x128xbf16>
    %62 = vector.shape_cast %61 : vector<1x128x128xbf16> to vector<128x128xbf16>
    %cst_45 = arith.constant dense<0.000000e+00> : vector<256x128xf32>
    %63 = tpu.matmul %60, %62, %cst_45 {dimension_numbers = #tpu.dot_dimension_numbers<[1], [0], [0], [1], [0, 0, 1, 1], [], []>} : vector<256x128xbf16>, vector<128x128xbf16>, vector<256x128xf32> -> vector<256x128xf32>
    %c6_46 = arith.constant 6 : index
    %c0_47 = arith.constant 0 : index
    %c0_48 = arith.constant 0 : index
    %64 = vector.load %arg4[%c6_46, %c0_47, %c0_48] : memref<15x1x128xf32, #tpu.memory_space<vmem>>, vector<1x1x128xf32>
    %65 = vector.shape_cast %64 : vector<1x1x128xf32> to vector<1x128xf32>
    %66 = vector.broadcast %65 : vector<1x128xf32> to vector<256x128xf32>
    %67 = arith.addf %63, %66 : vector<256x128xf32>
    %c7 = arith.constant 7 : index
    %c0_49 = arith.constant 0 : index
    %c0_50 = arith.constant 0 : index
    %68 = vector.load %arg3[%c7, %c0_49, %c0_50] : memref<15x128x128xbf16, #tpu.memory_space<vmem>>, vector<1x128x128xbf16>
    %69 = vector.shape_cast %68 : vector<1x128x128xbf16> to vector<128x128xbf16>
    %cst_51 = arith.constant dense<0.000000e+00> : vector<256x128xf32>
    %70 = tpu.matmul %60, %69, %cst_51 {dimension_numbers = #tpu.dot_dimension_numbers<[1], [0], [0], [1], [0, 0, 1, 1], [], []>} : vector<256x128xbf16>, vector<128x128xbf16>, vector<256x128xf32> -> vector<256x128xf32>
    %c7_52 = arith.constant 7 : index
    %c0_53 = arith.constant 0 : index
    %c0_54 = arith.constant 0 : index
    %71 = vector.load %arg4[%c7_52, %c0_53, %c0_54] : memref<15x1x128xf32, #tpu.memory_space<vmem>>, vector<1x1x128xf32>
    %72 = vector.shape_cast %71 : vector<1x1x128xf32> to vector<1x128xf32>
    %73 = vector.broadcast %72 : vector<1x128xf32> to vector<256x128xf32>
    %74 = arith.addf %70, %73 : vector<256x128xf32>
    %c0_55 = arith.constant 0 : index
    %c0_56 = arith.constant 0 : index
    %75 = vector.load %arg6[%c0_55, %c0_56] : memref<256x128xf32, #tpu.memory_space<vmem>>, vector<256x128xf32>
    tpu.vector_store %arg6[%c0_55, %c0_56], %67 {strides = array<i32>} : memref<256x128xf32, #tpu.memory_space<vmem>>, vector<256x128xf32>,
    %c0_57 = arith.constant 0 : index
    %c0_58 = arith.constant 0 : index
    %76 = vector.load %arg7[%c0_57, %c0_58] : memref<256x128xf32, #tpu.memory_space<vmem>>, vector<256x128xf32>
    tpu.vector_store %arg7[%c0_57, %c0_58], %74 {strides = array<i32>} : memref<256x128xf32, #tpu.memory_space<vmem>>, vector<256x128xf32>,
    %cst_59 = arith.constant 5.000000e-01 : f32
    %77 = vector.broadcast %cst_59 : f32 to vector<256x128xf32>
    %78 = arith.mulf %77, %74 : vector<256x128xf32>
    %79 = math.exp %78 : vector<256x128xf32>
    %c0_60 = arith.constant 0 : index
    %c0_61 = arith.constant 0 : index
    %80 = vector.load %arg2[%c0_60, %c0_61] : memref<256x128xf32, #tpu.memory_space<vmem>>, vector<256x128xf32>
    %81 = arith.mulf %79, %80 : vector<256x128xf32>
    %82 = arith.addf %67, %81 : vector<256x128xf32>
    %83 = arith.truncf %82 : vector<256x128xf32> to vector<256x128xbf16>
    %c8 = arith.constant 8 : index
    %c0_62 = arith.constant 0 : index
    %c0_63 = arith.constant 0 : index
    %84 = vector.load %arg3[%c8, %c0_62, %c0_63] : memref<15x128x128xbf16, #tpu.memory_space<vmem>>, vector<1x128x128xbf16>
    %85 = vector.shape_cast %84 : vector<1x128x128xbf16> to vector<128x128xbf16>
    %cst_64 = arith.constant dense<0.000000e+00> : vector<256x128xf32>
    %86 = tpu.matmul %83, %85, %cst_64 {dimension_numbers = #tpu.dot_dimension_numbers<[1], [0], [0], [1], [0, 0, 1, 1], [], []>} : vector<256x128xbf16>, vector<128x128xbf16>, vector<256x128xf32> -> vector<256x128xf32>
    %c8_65 = arith.constant 8 : index
    %c0_66 = arith.constant 0 : index
    %c0_67 = arith.constant 0 : index
    %87 = vector.load %arg4[%c8_65, %c0_66, %c0_67] : memref<15x1x128xf32, #tpu.memory_space<vmem>>, vector<1x1x128xf32>
    %88 = vector.shape_cast %87 : vector<1x1x128xf32> to vector<1x128xf32>
    %89 = vector.broadcast %88 : vector<1x128xf32> to vector<256x128xf32>
    %90 = arith.addf %86, %89 : vector<256x128xf32>
    %cst_68 = arith.constant 0.000000e+00 : f32
    %91 = vector.broadcast %cst_68 : f32 to vector<256x128xf32>
    %92 = arith.maximumf %90, %91 : vector<256x128xf32>
    %93 = arith.truncf %92 : vector<256x128xf32> to vector<256x128xbf16>
    %c9 = arith.constant 9 : index
    %c0_69 = arith.constant 0 : index
    %c0_70 = arith.constant 0 : index
    %94 = vector.load %arg3[%c9, %c0_69, %c0_70] : memref<15x128x128xbf16, #tpu.memory_space<vmem>>, vector<1x128x128xbf16>
    %95 = vector.shape_cast %94 : vector<1x128x128xbf16> to vector<128x128xbf16>
    %cst_71 = arith.constant dense<0.000000e+00> : vector<256x128xf32>
    %96 = tpu.matmul %93, %95, %cst_71 {dimension_numbers = #tpu.dot_dimension_numbers<[1], [0], [0], [1], [0, 0, 1, 1], [], []>} : vector<256x128xbf16>, vector<128x128xbf16>, vector<256x128xf32> -> vector<256x128xf32>
    %c9_72 = arith.constant 9 : index
    %c0_73 = arith.constant 0 : index
    %c0_74 = arith.constant 0 : index
    %97 = vector.load %arg4[%c9_72, %c0_73, %c0_74] : memref<15x1x128xf32, #tpu.memory_space<vmem>>, vector<1x1x128xf32>
    %98 = vector.shape_cast %97 : vector<1x1x128xf32> to vector<1x128xf32>
    %99 = vector.broadcast %98 : vector<1x128xf32> to vector<256x128xf32>
    %100 = arith.addf %96, %99 : vector<256x128xf32>
    %cst_75 = arith.constant 0.000000e+00 : f32
    %101 = vector.broadcast %cst_75 : f32 to vector<256x128xf32>
    %102 = arith.maximumf %100, %101 : vector<256x128xf32>
    %103 = arith.truncf %102 : vector<256x128xf32> to vector<256x128xbf16>
    %c10 = arith.constant 10 : index
    %c0_76 = arith.constant 0 : index
    %c0_77 = arith.constant 0 : index
    %104 = vector.load %arg3[%c10, %c0_76, %c0_77] : memref<15x128x128xbf16, #tpu.memory_space<vmem>>, vector<1x128x128xbf16>
    %105 = vector.shape_cast %104 : vector<1x128x128xbf16> to vector<128x128xbf16>
    %cst_78 = arith.constant dense<0.000000e+00> : vector<256x128xf32>
    %106 = tpu.matmul %103, %105, %cst_78 {dimension_numbers = #tpu.dot_dimension_numbers<[1], [0], [0], [1], [0, 0, 1, 1], [], []>} : vector<256x128xbf16>, vector<128x128xbf16>, vector<256x128xf32> -> vector<256x128xf32>
    %c10_79 = arith.constant 10 : index
    %c0_80 = arith.constant 0 : index
    %c0_81 = arith.constant 0 : index
    %107 = vector.load %arg4[%c10_79, %c0_80, %c0_81] : memref<15x1x128xf32, #tpu.memory_space<vmem>>, vector<1x1x128xf32>
    %108 = vector.shape_cast %107 : vector<1x1x128xf32> to vector<1x128xf32>
    %109 = vector.broadcast %108 : vector<1x128xf32> to vector<256x128xf32>
    %110 = arith.addf %106, %109 : vector<256x128xf32>
    %cst_82 = arith.constant 0.000000e+00 : f32
    %111 = vector.broadcast %cst_82 : f32 to vector<256x128xf32>
    %112 = arith.maximumf %110, %111 : vector<256x128xf32>
    %113 = arith.truncf %112 : vector<256x128xf32> to vector<256x128xbf16>
    %c11 = arith.constant 11 : index
    %c0_83 = arith.constant 0 : index
    %c0_84 = arith.constant 0 : index
    %114 = vector.load %arg3[%c11, %c0_83, %c0_84] : memref<15x128x128xbf16, #tpu.memory_space<vmem>>, vector<1x128x128xbf16>
    %115 = vector.shape_cast %114 : vector<1x128x128xbf16> to vector<128x128xbf16>
    %cst_85 = arith.constant dense<0.000000e+00> : vector<256x128xf32>
    %116 = tpu.matmul %113, %115, %cst_85 {dimension_numbers = #tpu.dot_dimension_numbers<[1], [0], [0], [1], [0, 0, 1, 1], [], []>} : vector<256x128xbf16>, vector<128x128xbf16>, vector<256x128xf32> -> vector<256x128xf32>
    %c11_86 = arith.constant 11 : index
    %c0_87 = arith.constant 0 : index
    %c0_88 = arith.constant 0 : index
    %117 = vector.load %arg4[%c11_86, %c0_87, %c0_88] : memref<15x1x128xf32, #tpu.memory_space<vmem>>, vector<1x1x128xf32>
    %118 = vector.shape_cast %117 : vector<1x1x128xf32> to vector<1x128xf32>
    %119 = vector.broadcast %118 : vector<1x128xf32> to vector<256x128xf32>
    %120 = arith.addf %116, %119 : vector<256x128xf32>
    %cst_89 = arith.constant 0.000000e+00 : f32
    %121 = vector.broadcast %cst_89 : f32 to vector<256x128xf32>
    %122 = arith.maximumf %120, %121 : vector<256x128xf32>
    %123 = arith.truncf %122 : vector<256x128xf32> to vector<256x128xbf16>
    %c12 = arith.constant 12 : index
    %c0_90 = arith.constant 0 : index
    %c0_91 = arith.constant 0 : index
    %124 = vector.load %arg3[%c12, %c0_90, %c0_91] : memref<15x128x128xbf16, #tpu.memory_space<vmem>>, vector<1x128x128xbf16>
    %125 = vector.shape_cast %124 : vector<1x128x128xbf16> to vector<128x128xbf16>
    %cst_92 = arith.constant dense<0.000000e+00> : vector<256x128xf32>
    %126 = tpu.matmul %123, %125, %cst_92 {dimension_numbers = #tpu.dot_dimension_numbers<[1], [0], [0], [1], [0, 0, 1, 1], [], []>} : vector<256x128xbf16>, vector<128x128xbf16>, vector<256x128xf32> -> vector<256x128xf32>
    %c12_93 = arith.constant 12 : index
    %c0_94 = arith.constant 0 : index
    %c0_95 = arith.constant 0 : index
    %127 = vector.load %arg4[%c12_93, %c0_94, %c0_95] : memref<15x1x128xf32, #tpu.memory_space<vmem>>, vector<1x1x128xf32>
    %128 = vector.shape_cast %127 : vector<1x1x128xf32> to vector<1x128xf32>
    %129 = vector.broadcast %128 : vector<1x128xf32> to vector<256x128xf32>
    %130 = arith.addf %126, %129 : vector<256x128xf32>
    %cst_96 = arith.constant 0.000000e+00 : f32
    %131 = vector.broadcast %cst_96 : f32 to vector<256x128xf32>
    %132 = arith.maximumf %130, %131 : vector<256x128xf32>
    %133 = arith.truncf %132 : vector<256x128xf32> to vector<256x128xbf16>
    %c13 = arith.constant 13 : index
    %c0_97 = arith.constant 0 : index
    %c0_98 = arith.constant 0 : index
    %134 = vector.load %arg3[%c13, %c0_97, %c0_98] : memref<15x128x128xbf16, #tpu.memory_space<vmem>>, vector<1x128x128xbf16>
    %135 = vector.shape_cast %134 : vector<1x128x128xbf16> to vector<128x128xbf16>
    %cst_99 = arith.constant dense<0.000000e+00> : vector<256x128xf32>
    %136 = tpu.matmul %133, %135, %cst_99 {dimension_numbers = #tpu.dot_dimension_numbers<[1], [0], [0], [1], [0, 0, 1, 1], [], []>} : vector<256x128xbf16>, vector<128x128xbf16>, vector<256x128xf32> -> vector<256x128xf32>
    %c13_100 = arith.constant 13 : index
    %c0_101 = arith.constant 0 : index
    %c0_102 = arith.constant 0 : index
    %137 = vector.load %arg4[%c13_100, %c0_101, %c0_102] : memref<15x1x128xf32, #tpu.memory_space<vmem>>, vector<1x1x128xf32>
    %138 = vector.shape_cast %137 : vector<1x1x128xf32> to vector<1x128xf32>
    %139 = vector.broadcast %138 : vector<1x128xf32> to vector<256x128xf32>
    %140 = arith.addf %136, %139 : vector<256x128xf32>
    %cst_103 = arith.constant 0.000000e+00 : f32
    %141 = vector.broadcast %cst_103 : f32 to vector<256x128xf32>
    %142 = arith.maximumf %140, %141 : vector<256x128xf32>
    %143 = arith.truncf %142 : vector<256x128xf32> to vector<256x128xbf16>
    %c14 = arith.constant 14 : index
    %c0_104 = arith.constant 0 : index
    %c0_105 = arith.constant 0 : index
    %144 = vector.load %arg3[%c14, %c0_104, %c0_105] : memref<15x128x128xbf16, #tpu.memory_space<vmem>>, vector<1x128x128xbf16>
    %145 = vector.shape_cast %144 : vector<1x128x128xbf16> to vector<128x128xbf16>
    %cst_106 = arith.constant dense<0.000000e+00> : vector<256x128xf32>
    %146 = tpu.matmul %143, %145, %cst_106 {dimension_numbers = #tpu.dot_dimension_numbers<[1], [0], [0], [1], [0, 0, 1, 1], [], []>} : vector<256x128xbf16>, vector<128x128xbf16>, vector<256x128xf32> -> vector<256x128xf32>
    %c14_107 = arith.constant 14 : index
    %c0_108 = arith.constant 0 : index
    %c0_109 = arith.constant 0 : index
    %147 = vector.load %arg4[%c14_107, %c0_108, %c0_109] : memref<15x1x128xf32, #tpu.memory_space<vmem>>, vector<1x1x128xf32>
    %148 = vector.shape_cast %147 : vector<1x1x128xf32> to vector<1x128xf32>
    %149 = vector.broadcast %148 : vector<1x128xf32> to vector<256x128xf32>
    %150 = arith.addf %146, %149 : vector<256x128xf32>
    %c0_110 = arith.constant 0 : index
    %c0_111 = arith.constant 0 : index
    %151 = vector.load %arg5[%c0_110, %c0_111] : memref<256x128xf32, #tpu.memory_space<vmem>>, vector<256x128xf32>
    tpu.vector_store %arg5[%c0_110, %c0_111], %150 {strides = array<i32>} : memref<256x128xf32, #tpu.memory_space<vmem>>, vector<256x128xf32>,
    return
  }
  func.func @transform_0(%arg0: i32) -> (i32, i32) {
    %c0_i32 = arith.constant 0 : i32
    %c0_i32_0 = arith.constant 0 : i32
    return %arg0, %c0_i32 : i32, i32
  }
  func.func @transform_1(%arg0: i32) -> (i32, i32) {
    %c0_i32 = arith.constant 0 : i32
    %c0_i32_0 = arith.constant 0 : i32
    return %arg0, %c0_i32 : i32, i32
  }
  func.func @transform_2(%arg0: i32) -> (i32, i32, i32) {
    %c0_i32 = arith.constant 0 : i32
    %c0_i32_0 = arith.constant 0 : i32
    %c0_i32_1 = arith.constant 0 : i32
    %c0_i32_2 = arith.constant 0 : i32
    return %c0_i32, %c0_i32_0, %c0_i32_1 : i32, i32, i32
  }
  func.func @transform_3(%arg0: i32) -> (i32, i32, i32) {
    %c0_i32 = arith.constant 0 : i32
    %c0_i32_0 = arith.constant 0 : i32
    %c0_i32_1 = arith.constant 0 : i32
    %c0_i32_2 = arith.constant 0 : i32
    return %c0_i32, %c0_i32_0, %c0_i32_1 : i32, i32, i32
  }
  func.func @transform_4(%arg0: i32) -> (i32, i32) {
    %c0_i32 = arith.constant 0 : i32
    %c0_i32_0 = arith.constant 0 : i32
    return %arg0, %c0_i32 : i32, i32
  }
  func.func @transform_5(%arg0: i32) -> (i32, i32) {
    %c0_i32 = arith.constant 0 : i32
    %c0_i32_0 = arith.constant 0 : i32
    return %arg0, %c0_i32 : i32, i32
  }
  func.func @transform_6(%arg0: i32) -> (i32, i32) {
    %c0_i32 = arith.constant 0 : i32
    %c0_i32_0 = arith.constant 0 : i32
    return %arg0, %c0_i32 : i32, i32
  }
}

</mosaic_0001>

<llo_original>
// kernel: tpu_custom_call.1
$region0: #{tpu_custom_call.1}
  #allocation0 [shape = 'u32[]', space=smem, size = 0x4, offset = 0x4, fixed_abs, tag = 'smem constant byte address 0x4 - core index']
  #allocation1 [shape = 'u32[144,128]{1,0:T(1,128)}', space=vmem, size = 0x12000, scoped, tag = 'internal scratch']
  %s0 = inlined_call_operand.hbm [shape: bf16[512,128], index: 0, kind: input, shape index: {}]
  %s1 = inlined_call_operand.hbm [shape: f32[512,128], index: 1, kind: input, shape index: {}]
  %s2 = inlined_call_operand.hbm [shape: bf16[15,128,128], index: 2, kind: input, shape index: {}]
  %s3 = inlined_call_operand.hbm [shape: f32[15,1,128], index: 3, kind: input, shape index: {}]
  %s4 = inlined_call_operand.hbm [shape: f32[512,128], index: 4, kind: output, shape index: {0}]
  %s5 = inlined_call_operand.hbm [shape: f32[512,128], index: 5, kind: output, shape index: {1}]
  %s6 = inlined_call_operand.hbm [shape: f32[512,128], index: 6, kind: output, shape index: {2}]
  %7 = xla_tuple %s4, %s5, %s6
  %s8 = sld [smem:[#allocation0]]
  $region81: #{tpu_custom_call.1} parent=0
    _
  %s10 = ssub.s32 1, %s8
  %s11 = scalar_select 0, %s10, %s8
  $region1: #{tpu_custom_call.1} parent=0
    #allocation2 [shape = 'u8[131072]{0}', space=vmem, size = 0x20000, scoped, tag = 'input window, operand 0']
    #allocation3 [shape = 's32[2]{0}', space=sflag, size = 0x8, scoped, tag = 'scoped memory for tpu_custom_call.1']
    #allocation4 [shape = 's32[2]{0}', space=sflag, size = 0x8, scoped, tag = 'scoped memory for tpu_custom_call.1']
    #allocation5 [shape = 'u8[262144]{0}', space=vmem, size = 0x40000, scoped, tag = 'input window, operand 1']
    #allocation6 [shape = 's32[2]{0}', space=sflag, size = 0x8, scoped, tag = 'scoped memory for tpu_custom_call.1']
    #allocation7 [shape = 'u8[491520]{0}', space=vmem, size = 0x78000, scoped, tag = 'input window, operand 2, single buffered']
    #allocation8 [shape = 'u8[7680]{0}', space=vmem, size = 0x2000, scoped, tag = 'input window, operand 3, single buffered']
    #allocation9 [shape = 's32[1]{0}', space=sflag, size = 0x4, scoped, tag = 'scoped memory for tpu_custom_call.1']
    #allocation10 [shape = 'u8[262144]{0}', space=vmem, size = 0x40000, scoped, tag = 'output window, operand 0']
    #allocation11 [shape = 'u8[262144]{0}', space=vmem, size = 0x40000, scoped, tag = 'output window, operand 1']
    #allocation12 [shape = 's32[2]{0}', space=sflag, size = 0x8, scoped, tag = 'scoped memory for tpu_custom_call.1']
    #allocation13 [shape = 'u8[262144]{0}', space=vmem, size = 0x40000, scoped, tag = 'output window, operand 2']
    %12 = vsyncpa [#allocation3], 0
    %s13 = scalar_lea.sflag [#allocation3], 1
    %14 = vsyncpa %s13, 0
    %15 = vsyncpa [#allocation6], 0
    %s16 = scalar_lea.sflag [#allocation6], 1
    %17 = vsyncpa %s16, 0
    %18 = vsyncpa [#allocation9], 0
    %19 = vsyncpa [#allocation4], 0
    %s20 = scalar_lea.sflag [#allocation4], 1
    %21 = vsyncpa %s20, 0
    %22 = vsyncpa [#allocation12], 0
    %s23 = scalar_lea.sflag [#allocation12], 1
    %24 = vsyncpa %s23, 0
    loop: start=0, step=1, limit=4
    $region2: #{tpu_custom_call.1} parent=1 // loop_pre_header
      _
    $region3: #{tpu_custom_call.1} parent=1 // loop_header
      %s26 = sphi 0, %s30
      %p27 = scmp.ge.s32.totalorder %s26, 4
      %s36 = sphi 0, %s38
      %s39 = sphi 0, %s36
      %s40 = sphi 0, %s39
      %s56 = sphi 0, %s40
      %s62 = sphi 0, %s64
      %s65 = sphi 0, %s62
      %s66 = sphi 0, %s65
      %s82 = sphi 0, %s66
      %s86 = sphi 0, %s86
      %s88 = sphi 0, %s86
      %s89 = sphi 0, %s88
      %s103 = sphi 0, %s89
      %s107 = sphi 0, %s107
      %s109 = sphi 0, %s107
      %s110 = sphi 0, %s109
      %s124 = sphi 0, %s110
      %s130 = sphi 0, %s132
      %s133 = sphi 0, %s130
      %s134 = sphi 0, %s133
      %s150 = sphi 0, %s134
      %s156 = sphi 0, %s158
      %s159 = sphi 0, %s156
      %s160 = sphi 0, %s159
      %s176 = sphi 0, %s160
      %s182 = sphi 0, %s184
      %s185 = sphi 0, %s182
      %s186 = sphi 0, %s185
      %s202 = sphi 0, %s186
    $region4: #{tpu_custom_call.1} parent=1 // loop_header_branch
      %29 = sbr.rel (%p27) target = $region8
    $region5: #{tpu_custom_call.1} parent=1 // loop_body
      %s31 = ssub.s32 %s26, 1
      %s32 = ssub.s32 %s26, 2
      %s33 = sadd.s32 %s26, 1
      %s34 = ssub.s32 %s26, %s33
      %p35 = scmp.eq.s32.totalorder %s34, 0
      %s37 = sadd.s32 %s36, 1
      %s38 = scalar_select %p35, %s36, %s37
      %p41 = pneg %p35
      %p42 = scmp.eq.s32.totalorder %s26, 1
      %p43 = por %p41, %p42
      %p44 = scmp.ne.s32.totalorder %s36, %s39
      %p45 = scmp.eq.s32.totalorder %s26, 0
      %p46 = por %p44, %p45
      %p47 = scmp.ne.s32.totalorder %s36, %s39
      %p48 = scmp.eq.s32.totalorder %s31, 1
      %p49 = por %p47, %p48
      %p50 = scmp.ne.s32.totalorder %s39, %s40
      %p51 = scmp.eq.s32.totalorder %s31, 0
      %p52 = por %p50, %p51
      %p53 = scmp.ne.s32.totalorder %s39, %s40
      %p54 = scmp.eq.s32.totalorder %s32, 1
      %p55 = por %p53, %p54
      %p57 = scmp.ne.s32.totalorder %s40, %s56
      %p58 = scmp.eq.s32.totalorder %s32, 0
      %p59 = por %p57, %p58
      %s60 = ssub.s32 %s26, %s33
      %p61 = scmp.eq.s32.totalorder %s60, 0
      %s63 = sadd.s32 %s62, 1
      %s64 = scalar_select %p61, %s62, %s63
      %p67 = pneg %p61
      %p68 = scmp.eq.s32.totalorder %s26, 1
      %p69 = por %p67, %p68
      %p70 = scmp.ne.s32.totalorder %s62, %s65
      %p71 = scmp.eq.s32.totalorder %s26, 0
      %p72 = por %p70, %p71
      %p73 = scmp.ne.s32.totalorder %s62, %s65
      %p74 = scmp.eq.s32.totalorder %s31, 1
      %p75 = por %p73, %p74
      %p76 = scmp.ne.s32.totalorder %s65, %s66
      %p77 = scmp.eq.s32.totalorder %s31, 0
      %p78 = por %p76, %p77
      %p79 = scmp.ne.s32.totalorder %s65, %s66
      %p80 = scmp.eq.s32.totalorder %s32, 1
      %p81 = por %p79, %p80
      %p83 = scmp.ne.s32.totalorder %s66, %s82
      %p84 = scmp.eq.s32.totalorder %s32, 0
      %p85 = por %p83, %p84
      %s87 = sadd.s32 %s86, 1
      %p90 = scmp.eq.s32.totalorder %s26, 1
      %p91 = scmp.ne.s32.totalorder %s86, %s88
      %p92 = scmp.eq.s32.totalorder %s26, 0
      %p93 = por %p91, %p92
      %p94 = scmp.ne.s32.totalorder %s86, %s88
      %p95 = scmp.eq.s32.totalorder %s31, 1
      %p96 = por %p94, %p95
      %p97 = scmp.ne.s32.totalorder %s88, %s89
      %p98 = scmp.eq.s32.totalorder %s31, 0
      %p99 = por %p97, %p98
      %p100 = scmp.ne.s32.totalorder %s88, %s89
      %p101 = scmp.eq.s32.totalorder %s32, 1
      %p102 = por %p100, %p101
      %p104 = scmp.ne.s32.totalorder %s89, %s103
      %p105 = scmp.eq.s32.totalorder %s32, 0
      %p106 = por %p104, %p105
      %s108 = sadd.s32 %s107, 1
      %p111 = scmp.eq.s32.totalorder %s26, 1
      %p112 = scmp.ne.s32.totalorder %s107, %s109
      %p113 = scmp.eq.s32.totalorder %s26, 0
      %p114 = por %p112, %p113
      %p115 = scmp.ne.s32.totalorder %s107, %s109
      %p116 = scmp.eq.s32.totalorder %s31, 1
      %p117 = por %p115, %p116
      %p118 = scmp.ne.s32.totalorder %s109, %s110
      %p119 = scmp.eq.s32.totalorder %s31, 0
      %p120 = por %p118, %p119
      %p121 = scmp.ne.s32.totalorder %s109, %s110
      %p122 = scmp.eq.s32.totalorder %s32, 1
      %p123 = por %p121, %p122
      %p125 = scmp.ne.s32.totalorder %s110, %s124
      %p126 = scmp.eq.s32.totalorder %s32, 0
      %p127 = por %p125, %p126
      %s128 = ssub.s32 %s26, %s33
      %p129 = scmp.eq.s32.totalorder %s128, 0
      %s131 = sadd.s32 %s130, 1
      %s132 = scalar_select %p129, %s130, %s131
      %p135 = pneg %p129
      %p136 = scmp.eq.s32.totalorder %s26, 1
      %p137 = por %p135, %p136
      %p138 = scmp.ne.s32.totalorder %s130, %s133
      %p139 = scmp.eq.s32.totalorder %s26, 0
      %p140 = por %p138, %p139
      %p141 = scmp.ne.s32.totalorder %s130, %s133
      %p142 = scmp.eq.s32.totalorder %s31, 1
      %p143 = por %p141, %p142
      %p144 = scmp.ne.s32.totalorder %s133, %s134
      %p145 = scmp.eq.s32.totalorder %s31, 0
      %p146 = por %p144, %p145
      %p147 = scmp.ne.s32.totalorder %s133, %s134
      %p148 = scmp.eq.s32.totalorder %s32, 1
      %p149 = por %p147, %p148
      %p151 = scmp.ne.s32.totalorder %s134, %s150
      %p152 = scmp.eq.s32.totalorder %s32, 0
      %p153 = por %p151, %p152
      %s154 = ssub.s32 %s26, %s33
      %p155 = scmp.eq.s32.totalorder %s154, 0
      %s157 = sadd.s32 %s156, 1
      %s158 = scalar_select %p155, %s156, %s157
      %p161 = pneg %p155
      %p162 = scmp.eq.s32.totalorder %s26, 1
      %p163 = por %p161, %p162
      %p164 = scmp.ne.s32.totalorder %s156, %s159
      %p165 = scmp.eq.s32.totalorder %s26, 0
      %p166 = por %p164, %p165
      %p167 = scmp.ne.s32.totalorder %s156, %s159
      %p168 = scmp.eq.s32.totalorder %s31, 1
      %p169 = por %p167, %p168
      %p170 = scmp.ne.s32.totalorder %s159, %s160
      %p171 = scmp.eq.s32.totalorder %s31, 0
      %p172 = por %p170, %p171
      %p173 = scmp.ne.s32.totalorder %s159, %s160
      %p174 = scmp.eq.s32.totalorder %s32, 1
      %p175 = por %p173, %p174
      %p177 = scmp.ne.s32.totalorder %s160, %s176
      %p178 = scmp.eq.s32.totalorder %s32, 0
      %p179 = por %p177, %p178
      %s180 = ssub.s32 %s26, %s33
      %p181 = scmp.eq.s32.totalorder %s180, 0
      %s183 = sadd.s32 %s182, 1
      %s184 = scalar_select %p181, %s182, %s183
      %p187 = pneg %p181
      %p188 = scmp.eq.s32.totalorder %s26, 1
      %p189 = por %p187, %p188
      %p190 = scmp.ne.s32.totalorder %s182, %s185
      %p191 = scmp.eq.s32.totalorder %s26, 0
      %p192 = por %p190, %p191
      %p193 = scmp.ne.s32.totalorder %s182, %s185
      %p194 = scmp.eq.s32.totalorder %s31, 1
      %p195 = por %p193, %p194
      %p196 = scmp.ne.s32.totalorder %s185, %s186
      %p197 = scmp.eq.s32.totalorder %s31, 0
      %p198 = por %p196, %p197
      %p199 = scmp.ne.s32.totalorder %s185, %s186
      %p200 = scmp.eq.s32.totalorder %s32, 1
      %p201 = por %p199, %p200
      %p203 = scmp.ne.s32.totalorder %s186, %s202
      %p204 = scmp.eq.s32.totalorder %s32, 0
      %p205 = por %p203, %p204
      %p206 = scmp.le.s32.totalorder 1, %s26
      %p207 = scmp.lt.s32.totalorder %s26, 3
      %p208 = pnand %p206, %p207
      %p209 = pneg %p208
      // Predicated region
      $region9: #{tpu_custom_call.1} parent=5 // pred_check
        _
      $region10: #{tpu_custom_call.1} parent=5 // pred_check_branch
        %211 = sbr.rel (%p208) target = $region12
      $region11: #{tpu_custom_call.1} parent=5 // pred_region
        %s212 = ssub.s32 %s26, 1
        // Predicated region
        $region13: #{tpu_custom_call.1} parent=11 // pred_check
          %p213 = pneg %p99
        $region14: #{tpu_custom_call.1} parent=11 // pred_check_branch
          %215 = sbr.rel (%p213) target = $region16
        $region15: #{tpu_custom_call.1} parent=11 // pred_region
          %s217 = ssub.s32 15360, 15360
          %218 = vsyncadd [#allocation6], %s217
          %s219 = sshll.u32 [#allocation7], 4
          %s220 = int_to_ptr.vmem [resolvable:$true] %s219
          %225 = dma.hbm_to_vmem [thread:$0]  %s2, 15360, %s220, [#allocation6], 64, 64, 4
        $region16: #{tpu_custom_call.1} parent=11 // pred_fallthru
          _
        // Predicated region
        $region17: #{tpu_custom_call.1} parent=11 // pred_check
          %p226 = pneg %p120
        $region18: #{tpu_custom_call.1} parent=11 // pred_check_branch
          %228 = sbr.rel (%p226) target = $region20
        $region19: #{tpu_custom_call.1} parent=11 // pred_region
          %s230 = ssub.s32 240, 240
          %231 = vsyncadd [#allocation9], %s230
          %s232 = sshll.u32 [#allocation8], 4
          %s233 = int_to_ptr.vmem [resolvable:$true] %s232
          %238 = dma.hbm_to_vmem [thread:$0]  %s3, 240, %s233, [#allocation9], 16, 16, 1
        $region20: #{tpu_custom_call.1} parent=11 // pred_fallthru
          _
      $region12: #{tpu_custom_call.1} parent=5 // pred_fallthru
        _
      %p239 = scmp.lt.s32.totalorder %s26, 2
      // Predicated region
      $region21: #{tpu_custom_call.1} parent=5 // pred_check
        %p240 = pneg %p239
      $region22: #{tpu_custom_call.1} parent=5 // pred_check_branch
        %242 = sbr.rel (%p240) target = $region24
      $region23: #{tpu_custom_call.1} parent=5 // pred_region
        // Predicated region
        $region25: #{tpu_custom_call.1} parent=23 // pred_check
          %p243 = pneg %p46
        $region26: #{tpu_custom_call.1} parent=23 // pred_check_branch
          %245 = sbr.rel (%p243) target = $region28
        $region27: #{tpu_custom_call.1} parent=23 // pred_region
          %s246 = sand.u32 %s36, 1
          %s247 = scalar_lea.sflag [#allocation3], %s246
          %s248 = sand.u32 %s36, 1
          %s249 = smul.addr %s248, 128
          %s250 = scalar_lea.vmem [#allocation2], %s249
          %s251 = smul.u32 32, %s26
          %s253 = ssub.s32 2048, 2048
          %254 = vsyncadd %s247, %s253
          %s255 = smul.addr %s251, 64
          %s256 = scalar_lea.hbm %s0, %s255
          %s257 = sshll.u32 %s250, 4
          %s258 = int_to_ptr.vmem [resolvable:$true] %s257
          %263 = dma.hbm_to_vmem [thread:$0]  %s256, 2048, %s258, %s247, 64, 64, 4
        $region28: #{tpu_custom_call.1} parent=23 // pred_fallthru
          _
        // Predicated region
        $region29: #{tpu_custom_call.1} parent=23 // pred_check
          %p264 = pneg %p72
        $region30: #{tpu_custom_call.1} parent=23 // pred_check_branch
          %266 = sbr.rel (%p264) target = $region32
        $region31: #{tpu_custom_call.1} parent=23 // pred_region
          %s267 = sand.u32 %s26, 1
          %s268 = scalar_lea.sflag [#allocation6], %s267
          %s269 = sand.u32 %s62, 1
          %s270 = smul.addr %s269, 256
          %s271 = scalar_lea.vmem [#allocation5], %s270
          %s272 = smul.u32 32, %s26
          %s274 = ssub.s32 4096, 4096
          %275 = vsyncadd %s268, %s274
          %s276 = smul.addr %s272, 128
          %s277 = scalar_lea.hbm %s1, %s276
          %s278 = sshll.u32 %s271, 4
          %s279 = int_to_ptr.vmem [resolvable:$true] %s278
          %284 = dma.hbm_to_vmem [thread:$0]  %s277, 4096, %s279, %s268, 128, 128, 8
        $region32: #{tpu_custom_call.1} parent=23 // pred_fallthru
          _
      $region24: #{tpu_custom_call.1} parent=5 // pred_fallthru
        _
      %p285 = scmp.le.s32.totalorder 1, %s26
      %p286 = scmp.lt.s32.totalorder %s26, 3
      %p287 = pnand %p285, %p286
      %p288 = pneg %p287
      // Predicated region
      $region33: #{tpu_custom_call.1} parent=5 // pred_check
        _
      $region34: #{tpu_custom_call.1} parent=5 // pred_check_branch
        %290 = sbr.rel (%p287) target = $region36
      $region35: #{tpu_custom_call.1} parent=5 // pred_region
        %s291 = ssub.s32 %s26, 1
        %s292 = sand.u32 %s39, 1
        %s293 = scalar_lea.sflag [#allocation3], %s292
        %s294 = sand.u32 %s39, 1
        %s295 = smul.addr %s294, 128
        %s296 = scalar_lea.vmem [#allocation2], %s295
        // Predicated region
        $region37: #{tpu_custom_call.1} parent=35 // pred_check
          %p297 = pneg %p52
        $region38: #{tpu_custom_call.1} parent=35 // pred_check_branch
          %299 = sbr.rel (%p297) target = $region40
        $region39: #{tpu_custom_call.1} parent=35 // pred_region
          %300 = dma.done %s293, 2048
        $region40: #{tpu_custom_call.1} parent=35 // pred_fallthru
          _
        %s301 = sand.u32 %s31, 1
        %s302 = scalar_lea.sflag [#allocation6], %s301
        %s303 = sand.u32 %s65, 1
        %s304 = smul.addr %s303, 256
        %s305 = scalar_lea.vmem [#allocation5], %s304
        // Predicated region
        $region41: #{tpu_custom_call.1} parent=35 // pred_check
          %p306 = pneg %p78
        $region42: #{tpu_custom_call.1} parent=35 // pred_check_branch
          %308 = sbr.rel (%p306) target = $region44
        $region43: #{tpu_custom_call.1} parent=35 // pred_region
          %309 = dma.done %s302, 4096
        $region44: #{tpu_custom_call.1} parent=35 // pred_fallthru
          _
        // Predicated region
        $region45: #{tpu_custom_call.1} parent=35 // pred_check
          %p310 = pneg %p99
        $region46: #{tpu_custom_call.1} parent=35 // pred_check_branch
          %312 = sbr.rel (%p310) target = $region48
        $region47: #{tpu_custom_call.1} parent=35 // pred_region
          %313 = dma.done [#allocation6], 15360
        $region48: #{tpu_custom_call.1} parent=35 // pred_fallthru
          _
        // Predicated region
        $region49: #{tpu_custom_call.1} parent=35 // pred_check
          %p314 = pneg %p120
        $region50: #{tpu_custom_call.1} parent=35 // pred_check_branch
          %316 = sbr.rel (%p314) target = $region52
        $region51: #{tpu_custom_call.1} parent=35 // pred_region
          %317 = dma.done [#allocation9], 240
        $region52: #{tpu_custom_call.1} parent=35 // pred_fallthru
          _
        %s318 = sand.u32 %s39, 1
        %s319 = scalar_lea.sflag [#allocation3], %s318
        %s320 = sand.u32 %s39, 1
        %s321 = smul.addr %s320, 128
        %s322 = scalar_lea.vmem [#allocation2], %s321
        %p323 = pneg %p52
        %p324 = pneg %p49
        %s325 = sand.u32 %s31, 1
        %s326 = scalar_lea.sflag [#allocation6], %s325
        %s327 = sand.u32 %s65, 1
        %s328 = smul.addr %s327, 256
        %s329 = scalar_lea.vmem [#allocation5], %s328
        %p330 = pneg %p78
        %p331 = pneg %p75
        %p332 = pneg %p99
        %p333 = pneg %p96
        %p334 = pneg %p120
        %p335 = pneg %p117
        %p336 = pneg %p146
        %p337 = pneg %p143
        %s338 = sand.u32 %s133, 1
        %s339 = scalar_lea.sflag [#allocation4], %s338
        %s340 = sand.u32 %s133, 1
        %s341 = smul.addr %s340, 256
        %s342 = scalar_lea.vmem [#allocation10], %s341
        %p343 = pneg %p172
        %p344 = pneg %p169
        %s345 = sand.u32 %s31, 1
        %s346 = scalar_lea.sflag [#allocation12], %s345
        %s347 = sand.u32 %s159, 1
        %s348 = smul.addr %s347, 256
        %s349 = scalar_lea.vmem [#allocation11], %s348
        %p350 = pneg %p198
        %p351 = pneg %p195
        %s352 = sand.u32 %s31, 1
        %s353 = scalar_lea.sflag [#allocation12], %s352
        %s354 = sand.u32 %s185, 1
        %s355 = smul.addr %s354, 256
        %s356 = scalar_lea.vmem [#allocation13], %s355
        %s357 = smul.u32 32, %s31
        %s358 = smul.u32 32, %s31
        %s359 = smul.u32 32, %s31
        %s360 = smul.u32 32, %s31
        %s361 = smul.u32 32, %s31
        %v363 = vld [vmem:[%s296] sm:$0xf]
        %v364 = vld [vmem:[%s296 + $0x4] sm:$0xf]
        %v365 = vld [vmem:[%s296 + $0x8] sm:$0xf]
        %v366 = vld [vmem:[%s296 + $0xc] sm:$0xf]
        %v367 = vld [vmem:[%s296 + $0x10] sm:$0xf]
        %v368 = vld [vmem:[%s296 + $0x14] sm:$0xf]
        %v369 = vld [vmem:[%s296 + $0x18] sm:$0xf]
        %v370 = vld [vmem:[%s296 + $0x1c] sm:$0xf]
        %v371 = vld [vmem:[%s296 + $0x20] sm:$0xf]
        %v372 = vld [vmem:[%s296 + $0x24] sm:$0xf]
        %v373 = vld [vmem:[%s296 + $0x28] sm:$0xf]
        %v374 = vld [vmem:[%s296 + $0x2c] sm:$0xf]
        %v375 = vld [vmem:[%s296 + $0x30] sm:$0xf]
        %v376 = vld [vmem:[%s296 + $0x34] sm:$0xf]
        %v377 = vld [vmem:[%s296 + $0x38] sm:$0xf]
        %v378 = vld [vmem:[%s296 + $0x3c] sm:$0xf]
        %v379 = vld [vmem:[%s296 + $0x40] sm:$0xf]
        %v380 = vld [vmem:[%s296 + $0x44] sm:$0xf]
        %v381 = vld [vmem:[%s296 + $0x48] sm:$0xf]
        %v382 = vld [vmem:[%s296 + $0x4c] sm:$0xf]
        %v383 = vld [vmem:[%s296 + $0x50] sm:$0xf]
        %v384 = vld [vmem:[%s296 + $0x54] sm:$0xf]
        %v385 = vld [vmem:[%s296 + $0x58] sm:$0xf]
        %v386 = vld [vmem:[%s296 + $0x5c] sm:$0xf]
        %v387 = vld [vmem:[%s296 + $0x60] sm:$0xf]
        %v388 = vld [vmem:[%s296 + $0x64] sm:$0xf]
        %v389 = vld [vmem:[%s296 + $0x68] sm:$0xf]
        %v390 = vld [vmem:[%s296 + $0x6c] sm:$0xf]
        %v391 = vld [vmem:[%s296 + $0x70] sm:$0xf]
        %v392 = vld [vmem:[%s296 + $0x74] sm:$0xf]
        %v393 = vld [vmem:[%s296 + $0x78] sm:$0xf]
        %v394 = vld [vmem:[%s296 + $0x7c] sm:$0xf]
        %v395 = vld [vmem:[#allocation7] sm:$0xf]
        %v396 = vld [vmem:[#allocation7 + $0x4] sm:$0xf]
        %v397 = vld [vmem:[#allocation7 + $0x8] sm:$0xf]
        %v398 = vld [vmem:[#allocation7 + $0xc] sm:$0xf]
        %v399 = vld [vmem:[#allocation7 + $0x10] sm:$0xf]
        %v400 = vld [vmem:[#allocation7 + $0x14] sm:$0xf]
        %v401 = vld [vmem:[#allocation7 + $0x18] sm:$0xf]
        %v402 = vld [vmem:[#allocation7 + $0x1c] sm:$0xf]
        %v403 = vld [vmem:[#allocation7 + $0x20] sm:$0xf]
        %v404 = vld [vmem:[#allocation7 + $0x24] sm:$0xf]
        %v405 = vld [vmem:[#allocation7 + $0x28] sm:$0xf]
        %v406 = vld [vmem:[#allocation7 + $0x2c] sm:$0xf]
        %v407 = vld [vmem:[#allocation7 + $0x30] sm:$0xf]
        %v408 = vld [vmem:[#allocation7 + $0x34] sm:$0xf]
        %v409 = vld [vmem:[#allocation7 + $0x38] sm:$0xf]
        %v410 = vld [vmem:[#allocation7 + $0x3c] sm:$0xf]
        %v411 = vld [vmem:[#allocation8] sm:$0x1]
        %v413 = vlaneseq
        %v414 = vshrl.u32 %v413, 7
        %v415 = vsub.s32 0, %v414
        %v416 = vrot.slane %v411, %v415
        %v450 = vunpack.c.l.b16 %v363
        %v451 = vunpack.c.l.b16 %v364
        %v452 = vunpack.c.l.b16 %v365
        %v453 = vunpack.c.l.b16 %v366
        %v454 = vunpack.c.l.b16 %v367
        %v455 = vunpack.c.l.b16 %v368
        %v456 = vunpack.c.l.b16 %v369
        %v457 = vunpack.c.l.b16 %v370
        %v458 = vunpack.c.l.b16 %v371
        %v459 = vunpack.c.l.b16 %v372
        %v460 = vunpack.c.l.b16 %v373
        %v461 = vunpack.c.l.b16 %v374
        %v462 = vunpack.c.l.b16 %v375
        %v463 = vunpack.c.l.b16 %v376
        %v464 = vunpack.c.l.b16 %v377
        %v465 = vunpack.c.l.b16 %v378
        %v466 = vunpack.c.l.b16 %v379
        %v467 = vunpack.c.l.b16 %v380
        %v468 = vunpack.c.l.b16 %v381
        %v469 = vunpack.c.l.b16 %v382
        %v470 = vunpack.c.l.b16 %v383
        %v471 = vunpack.c.l.b16 %v384
        %v472 = vunpack.c.l.b16 %v385
        %v473 = vunpack.c.l.b16 %v386
        %v474 = vunpack.c.l.b16 %v387
        %v475 = vunpack.c.l.b16 %v388
        %v476 = vunpack.c.l.b16 %v389
        %v477 = vunpack.c.l.b16 %v390
        %v478 = vunpack.c.l.b16 %v391
        %v479 = vunpack.c.l.b16 %v392
        %v480 = vunpack.c.l.b16 %v393
        %v481 = vunpack.c.l.b16 %v394
        %v482 = vpack.c.b16 %v451, %v450
        %v483 = vpack.c.b16 %v453, %v452
        %v484 = vpack.c.b16 %v455, %v454
        %v485 = vpack.c.b16 %v457, %v456
        %v486 = vpack.c.b16 %v459, %v458
        %v487 = vpack.c.b16 %v461, %v460
        %v488 = vpack.c.b16 %v463, %v462
        %v489 = vpack.c.b16 %v465, %v464
        %v490 = vpack.c.b16 %v467, %v466
        %v491 = vpack.c.b16 %v469, %v468
        %v492 = vpack.c.b16 %v471, %v470
        %v493 = vpack.c.b16 %v473, %v472
        %v494 = vpack.c.b16 %v475, %v474
        %v495 = vpack.c.b16 %v477, %v476
        %v496 = vpack.c.b16 %v479, %v478
        %v497 = vpack.c.b16 %v481, %v480
        %v530 = vunpack.c.l.b16 %v395
        %v531 = vunpack.c.l.b16 %v396
        %v532 = vunpack.c.l.b16 %v397
        %v533 = vunpack.c.l.b16 %v398
        %v534 = vunpack.c.l.b16 %v399
        %v535 = vunpack.c.l.b16 %v400
        %v536 = vunpack.c.l.b16 %v401
        %v537 = vunpack.c.l.b16 %v402
        %v538 = vunpack.c.l.b16 %v403
        %v539 = vunpack.c.l.b16 %v404
        %v540 = vunpack.c.l.b16 %v405
        %v541 = vunpack.c.l.b16 %v406
        %v542 = vunpack.c.l.b16 %v407
        %v543 = vunpack.c.l.b16 %v408
        %v544 = vunpack.c.l.b16 %v409
        %v545 = vunpack.c.l.b16 %v410
        %v546 = vpack.c.b16 %v531, %v530
        %v547 = vpack.c.b16 %v533, %v532
        %v548 = vpack.c.b16 %v535, %v534
        %v549 = vpack.c.b16 %v537, %v536
        %v550 = vpack.c.b16 %v539, %v538
        %v551 = vpack.c.b16 %v541, %v540
        %v552 = vpack.c.b16 %v543, %v542
        %v553 = vpack.c.b16 %v545, %v544
        %562 = vmatprep.subr.bf16.mxu0 0
        %563 = vmatpush1.bf16.msra.mxu0 %v546
        %564 = vmatprep.subr.bf16.mxu0 0
        %565 = vmatpush1.bf16.msra.mxu0 %v547
        %566 = vmatprep.subr.bf16.mxu0 0
        %567 = vmatpush1.bf16.msra.mxu0 %v548
        %568 = vmatprep.subr.bf16.mxu0 0
        %569 = vmatpush1.bf16.msra.mxu0 %v549
        %570 = vmatprep.subr.bf16.mxu0 0
        %571 = vmatpush1.bf16.msra.mxu0 %v550
        %572 = vmatprep.subr.bf16.mxu0 0
        %573 = vmatpush1.bf16.msra.mxu0 %v551
        %574 = vmatprep.subr.bf16.mxu0 0
        %575 = vmatpush1.bf16.msra.mxu0 %v552
        %576 = vmatprep.subr.bf16.mxu0 0
        %577 = vmatpush1.bf16.msra.mxu0 %v553
        %578 = vmatprep.subr.bf16.mxu0 0
        %579 = vmatpush1.bf16.msra.mxu0 0
        %580 = vmatprep.subr.bf16.mxu0 0
        %581 = vmatpush1.bf16.msra.mxu0 0
        %582 = vmatprep.subr.bf16.mxu0 0
        %583 = vmatpush1.bf16.msra.mxu0 0
        %584 = vmatprep.subr.bf16.mxu0 0
        %585 = vmatpush1.bf16.msra.mxu0 0
        %586 = vmatprep.subr.bf16.mxu0 0
        %587 = vmatpush1.bf16.msra.mxu0 0
        %588 = vmatprep.subr.bf16.mxu0 0
        %589 = vmatpush1.bf16.msra.mxu0 0
        %590 = vmatprep.subr.bf16.mxu0 0
        %591 = vmatpush1.bf16.msra.mxu0 0
        %592 = vmatprep.subr.bf16.mxu0 0
        %593 = vmatpush1.bf16.msra.mxu0 0
        %594 = vmatprep.mubr.bf16.mxu0 0
        %595 = vmatmul.mubr.bf16.gmra.mrb[0].mxu0 %v482
        %v596 = vpop.f32.mrb[0].mxu0
        %v597 = vadd.f32 %v416, %v596
        %v598 = vpop.f32.mrb[0].mxu0
        %v599 = vpop.f32.mrb[0].mxu0
        %v600 = vadd.f32 %v416, %v599
        %v601 = vpop.f32.mrb[0].mxu0
        %602 = vmatprep.mubr.bf16.mxu0 0
        %603 = vmatmul.mubr.bf16.gmra.mrb[0].mxu0 %v483
        %v604 = vpop.f32.mrb[0].mxu0
        %v605 = vadd.f32 %v416, %v604
        %v606 = vpop.f32.mrb[0].mxu0
        %v607 = vpop.f32.mrb[0].mxu0
        %v608 = vadd.f32 %v416, %v607
        %v609 = vpop.f32.mrb[0].mxu0
        %610 = vmatprep.mubr.bf16.mxu0 0
        %611 = vmatmul.mubr.bf16.gmra.mrb[0].mxu0 %v484
        %v612 = vpop.f32.mrb[0].mxu0
        %v613 = vadd.f32 %v416, %v612
        %v614 = vpop.f32.mrb[0].mxu0
        %v615 = vpop.f32.mrb[0].mxu0
        %v616 = vadd.f32 %v416, %v615
        %v617 = vpop.f32.mrb[0].mxu0
        %618 = vmatprep.mubr.bf16.mxu0 0
        %619 = vmatmul.mubr.bf16.gmra.mrb[0].mxu0 %v485
        %v620 = vpop.f32.mrb[0].mxu0
        %v621 = vadd.f32 %v416, %v620
        %v622 = vpop.f32.mrb[0].mxu0
        %v623 = vpop.f32.mrb[0].mxu0
        %v624 = vadd.f32 %v416, %v623
        %v625 = vpop.f32.mrb[0].mxu0
        %626 = vmatprep.mubr.bf16.mxu0 0
        %627 = vmatmul.mubr.bf16.gmra.mrb[0].mxu0 %v486
        %v628 = vpop.f32.mrb[0].mxu0
        %v629 = vadd.f32 %v416, %v628
        %v630 = vpop.f32.mrb[0].mxu0
        %v631 = vpop.f32.mrb[0].mxu0
        %v632 = vadd.f32 %v416, %v631
        %v633 = vpop.f32.mrb[0].mxu0
        %634 = vmatprep.mubr.bf16.mxu0 0
        %635 = vmatmul.mubr.bf16.gmra.mrb[0].mxu0 %v487
        %v636 = vpop.f32.mrb[0].mxu0
        %v637 = vadd.f32 %v416, %v636
        %v638 = vpop.f32.mrb[0].mxu0
        %v639 = vpop.f32.mrb[0].mxu0
        %v640 = vadd.f32 %v416, %v639
        %v641 = vpop.f32.mrb[0].mxu0
        %642 = vmatprep.mubr.bf16.mxu0 0
        %643 = vmatmul.mubr.bf16.gmra.mrb[0].mxu0 %v488
        %v644 = vpop.f32.mrb[0].mxu0
        %v645 = vadd.f32 %v416, %v644
        %v646 = vpop.f32.mrb[0].mxu0
        %v647 = vpop.f32.mrb[0].mxu0
        %v648 = vadd.f32 %v416, %v647
        %v649 = vpop.f32.mrb[0].mxu0
        %650 = vmatprep.mubr.bf16.mxu0 0
        %651 = vmatmul.mubr.bf16.gmra.mrb[0].mxu0 %v489
        %v652 = vpop.f32.mrb[0].mxu0
        %v653 = vadd.f32 %v416, %v652
        %v654 = vpop.f32.mrb[0].mxu0
        %v655 = vpop.f32.mrb[0].mxu0
        %v656 = vadd.f32 %v416, %v655
        %v657 = vpop.f32.mrb[0].mxu0
        %658 = vmatprep.mubr.bf16.mxu0 0
        %659 = vmatmul.mubr.bf16.gmra.mrb[0].mxu0 %v490
        %v660 = vpop.f32.mrb[0].mxu0
        %v661 = vadd.f32 %v416, %v660
        %v662 = vpop.f32.mrb[0].mxu0
        %v663 = vpop.f32.mrb[0].mxu0
        %v664 = vadd.f32 %v416, %v663
        %v665 = vpop.f32.mrb[0].mxu0
        %666 = vmatprep.mubr.bf16.mxu0 0
        %667 = vmatmul.mubr.bf16.gmra.mrb[0].mxu0 %v491
        %v668 = vpop.f32.mrb[0].mxu0
        %v669 = vadd.f32 %v416, %v668
        %v670 = vpop.f32.mrb[0].mxu0
        %v671 = vpop.f32.mrb[0].mxu0
        %v672 = vadd.f32 %v416, %v671
        %v673 = vpop.f32.mrb[0].mxu0
        %674 = vmatprep.mubr.bf16.mxu0 0
        %675 = vmatmul.mubr.bf16.gmra.mrb[0].mxu0 %v492
        %v676 = vpop.f32.mrb[0].mxu0
        %v677 = vadd.f32 %v416, %v676
        %v678 = vpop.f32.mrb[0].mxu0
        %v679 = vpop.f32.mrb[0].mxu0
        %v680 = vadd.f32 %v416, %v679
        %v681 = vpop.f32.mrb[0].mxu0
        %682 = vmatprep.mubr.bf16.mxu0 0
        %683 = vmatmul.mubr.bf16.gmra.mrb[0].mxu0 %v493
        %v684 = vpop.f32.mrb[0].mxu0
        %v685 = vadd.f32 %v416, %v684
        %v686 = vpop.f32.mrb[0].mxu0
        %v687 = vpop.f32.mrb[0].mxu0
        %v688 = vadd.f32 %v416, %v687
        %v689 = vpop.f32.mrb[0].mxu0
        %690 = vmatprep.mubr.bf16.mxu0 0
        %691 = vmatmul.mubr.bf16.gmra.mrb[0].mxu0 %v494
        %v692 = vpop.f32.mrb[0].mxu0
        %v693 = vadd.f32 %v416, %v692
        %v694 = vpop.f32.mrb[0].mxu0
        %v695 = vpop.f32.mrb[0].mxu0
        %v696 = vadd.f32 %v416, %v695
        %v697 = vpop.f32.mrb[0].mxu0
        %698 = vmatprep.mubr.bf16.mxu0 0
        %699 = vmatmul.mubr.bf16.gmra.mrb[0].mxu0 %v495
        %v700 = vpop.f32.mrb[0].mxu0
        %v701 = vadd.f32 %v416, %v700
        %v702 = vpop.f32.mrb[0].mxu0
        %v703 = vpop.f32.mrb[0].mxu0
        %v704 = vadd.f32 %v416, %v703
        %v705 = vpop.f32.mrb[0].mxu0
        %706 = vmatprep.mubr.bf16.mxu0 0
        %707 = vmatmul.mubr.bf16.gmra.mrb[0].mxu0 %v496
        %v708 = vpop.f32.mrb[0].mxu0
        %v709 = vadd.f32 %v416, %v708
        %v710 = vpop.f32.mrb[0].mxu0
        %v711 = vpop.f32.mrb[0].mxu0
        %v712 = vadd.f32 %v416, %v711
        %v713 = vpop.f32.mrb[0].mxu0
        %714 = vmatprep.mubr.bf16.mxu0 0
        %715 = vmatmul.mubr.bf16.gmra.mrb[0].mxu0 %v497
        %v716 = vpop.f32.mrb[0].mxu0
        %v717 = vadd.f32 %v416, %v716
        %v718 = vpop.f32.mrb[0].mxu0
        %v719 = vpop.f32.mrb[0].mxu0
        %v720 = vadd.f32 %v416, %v719
        %v721 = vpop.f32.mrb[0].mxu0
        %722 = vdwg.mxu0
        %v723 = vmax.f32 %v597, 0.0
        %v724 = vmax.f32 %v600, 0.0
        %v725 = vmax.f32 %v605, 0.0
        %v726 = vmax.f32 %v608, 0.0
        %v727 = vmax.f32 %v613, 0.0
        %v728 = vmax.f32 %v616, 0.0
        %v729 = vmax.f32 %v621, 0.0
        %v730 = vmax.f32 %v624, 0.0
        %v731 = vmax.f32 %v629, 0.0
        %v732 = vmax.f32 %v632, 0.0
        %v733 = vmax.f32 %v637, 0.0
        %v734 = vmax.f32 %v640, 0.0
        %v735 = vmax.f32 %v645, 0.0
        %v736 = vmax.f32 %v648, 0.0
        %v737 = vmax.f32 %v653, 0.0
        %v738 = vmax.f32 %v656, 0.0
        %v739 = vmax.f32 %v661, 0.0
        %v740 = vmax.f32 %v664, 0.0
        %v741 = vmax.f32 %v669, 0.0
        %v742 = vmax.f32 %v672, 0.0
        %v743 = vmax.f32 %v677, 0.0
        %v744 = vmax.f32 %v680, 0.0
        %v745 = vmax.f32 %v685, 0.0
        %v746 = vmax.f32 %v688, 0.0
        %v747 = vmax.f32 %v693, 0.0
        %v748 = vmax.f32 %v696, 0.0
        %v749 = vmax.f32 %v701, 0.0
        %v750 = vmax.f32 %v704, 0.0
        %v751 = vmax.f32 %v709, 0.0
        %v752 = vmax.f32 %v712, 0.0
        %v753 = vmax.f32 %v717, 0.0
        %v754 = vmax.f32 %v720, 0.0
        %v755 = vpack.c.bf16 %v724, %v723
        %v756 = vpack.c.bf16 %v726, %v725
        %v757 = vpack.c.bf16 %v728, %v727
        %v758 = vpack.c.bf16 %v730, %v729
        %v759 = vpack.c.bf16 %v732, %v731
        %v760 = vpack.c.bf16 %v734, %v733
        %v761 = vpack.c.bf16 %v736, %v735
        %v762 = vpack.c.bf16 %v738, %v737
        %v763 = vpack.c.bf16 %v740, %v739
        %v764 = vpack.c.bf16 %v742, %v741
        %v765 = vpack.c.bf16 %v744, %v743
        %v766 = vpack.c.bf16 %v746, %v745
        %v767 = vpack.c.bf16 %v748, %v747
        %v768 = vpack.c.bf16 %v750, %v749
        %v769 = vpack.c.bf16 %v752, %v751
        %v770 = vpack.c.bf16 %v754, %v753
        %s771 = scalar_lea.vmem [#allocation7], 64
        %v772 = vld [vmem:[%s771] sm:$0xf]
        %v773 = vld [vmem:[%s771 + $0x4] sm:$0xf]
        %v774 = vld [vmem:[%s771 + $0x8] sm:$0xf]
        %v775 = vld [vmem:[%s771 + $0xc] sm:$0xf]
        %v776 = vld [vmem:[%s771 + $0x10] sm:$0xf]
        %v777 = vld [vmem:[%s771 + $0x14] sm:$0xf]
        %v778 = vld [vmem:[%s771 + $0x18] sm:$0xf]
        %v779 = vld [vmem:[%s771 + $0x1c] sm:$0xf]
        %v780 = vld [vmem:[%s771 + $0x20] sm:$0xf]
        %v781 = vld [vmem:[%s771 + $0x24] sm:$0xf]
        %v782 = vld [vmem:[%s771 + $0x28] sm:$0xf]
        %v783 = vld [vmem:[%s771 + $0x2c] sm:$0xf]
        %v784 = vld [vmem:[%s771 + $0x30] sm:$0xf]
        %v785 = vld [vmem:[%s771 + $0x34] sm:$0xf]
        %v786 = vld [vmem:[%s771 + $0x38] sm:$0xf]
        %v787 = vld [vmem:[%s771 + $0x3c] sm:$0xf]
        %s788 = scalar_lea.vmem [#allocation8], 1
        %v789 = vld [vmem:[%s788] sm:$0x1]
        %v791 = vlaneseq
        %v792 = vshrl.u32 %v791, 7
        %v793 = vsub.s32 0, %v792
        %v794 = vrot.slane %v789, %v793
        %v812 = vunpack.c.l.b16 %v772
        %v813 = vunpack.c.l.b16 %v773
        %v814 = vunpack.c.l.b16 %v774
        %v815 = vunpack.c.l.b16 %v775
        %v816 = vunpack.c.l.b16 %v776
        %v817 = vunpack.c.l.b16 %v777
        %v818 = vunpack.c.l.b16 %v778
        %v819 = vunpack.c.l.b16 %v779
        %v820 = vunpack.c.l.b16 %v780
        %v821 = vunpack.c.l.b16 %v781
        %v822 = vunpack.c.l.b16 %v782
        %v823 = vunpack.c.l.b16 %v783
        %v824 = vunpack.c.l.b16 %v784
        %v825 = vunpack.c.l.b16 %v785
        %v826 = vunpack.c.l.b16 %v786
        %v827 = vunpack.c.l.b16 %v787
        %v828 = vpack.c.b16 %v813, %v812
        %v829 = vpack.c.b16 %v815, %v814
        %v830 = vpack.c.b16 %v817, %v816
        %v831 = vpack.c.b16 %v819, %v818
        %v832 = vpack.c.b16 %v821, %v820
        %v833 = vpack.c.b16 %v823, %v822
        %v834 = vpack.c.b16 %v825, %v824
        %v835 = vpack.c.b16 %v827, %v826
        %844 = vmatprep.subr.bf16.mxu0 0
        %845 = vmatpush1.bf16.msra.mxu0 %v828
        %846 = vmatprep.subr.bf16.mxu0 0
        %847 = vmatpush1.bf16.msra.mxu0 %v829
        %848 = vmatprep.subr.bf16.mxu0 0
        %849 = vmatpush1.bf16.msra.mxu0 %v830
        %850 = vmatprep.subr.bf16.mxu0 0
        %851 = vmatpush1.bf16.msra.mxu0 %v831
        %852 = vmatprep.subr.bf16.mxu0 0
        %853 = vmatpush1.bf16.msra.mxu0 %v832
        %854 = vmatprep.subr.bf16.mxu0 0
        %855 = vmatpush1.bf16.msra.mxu0 %v833
        %856 = vmatprep.subr.bf16.mxu0 0
        %857 = vmatpush1.bf16.msra.mxu0 %v834
        %858 = vmatprep.subr.bf16.mxu0 0
        %859 = vmatpush1.bf16.msra.mxu0 %v835
        %860 = vmatprep.subr.bf16.mxu0 0
        %861 = vmatpush1.bf16.msra.mxu0 0
        %862 = vmatprep.subr.bf16.mxu0 0
        %863 = vmatpush1.bf16.msra.mxu0 0
        %864 = vmatprep.subr.bf16.mxu0 0
        %865 = vmatpush1.bf16.msra.mxu0 0
        %866 = vmatprep.subr.bf16.mxu0 0
        %867 = vmatpush1.bf16.msra.mxu0 0
        %868 = vmatprep.subr.bf16.mxu0 0
        %869 = vmatpush1.bf16.msra.mxu0 0
        %870 = vmatprep.subr.bf16.mxu0 0
        %871 = vmatpush1.bf16.msra.mxu0 0
        %872 = vmatprep.subr.bf16.mxu0 0
        %873 = vmatpush1.bf16.msra.mxu0 0
        %874 = vmatprep.subr.bf16.mxu0 0
        %875 = vmatpush1.bf16.msra.mxu0 0
        %876 = vmatprep.mubr.bf16.mxu0 0
        %877 = vmatmul.mubr.bf16.gmra.mrb[0].mxu0 %v755
        %v878 = vpop.f32.mrb[0].mxu0
        %v879 = vadd.f32 %v794, %v878
        %v880 = vpop.f32.mrb[0].mxu0
        %v881 = vpop.f32.mrb[0].mxu0
        %v882 = vadd.f32 %v794, %v881
        %v883 = vpop.f32.mrb[0].mxu0
        %884 = vmatprep.mubr.bf16.mxu0 0
        %885 = vmatmul.mubr.bf16.gmra.mrb[0].mxu0 %v756
        %v886 = vpop.f32.mrb[0].mxu0
        %v887 = vadd.f32 %v794, %v886
        %v888 = vpop.f32.mrb[0].mxu0
        %v889 = vpop.f32.mrb[0].mxu0
        %v890 = vadd.f32 %v794, %v889
        %v891 = vpop.f32.mrb[0].mxu0
        %892 = vmatprep.mubr.bf16.mxu0 0
        %893 = vmatmul.mubr.bf16.gmra.mrb[0].mxu0 %v757
        %v894 = vpop.f32.mrb[0].mxu0
        %v895 = vadd.f32 %v794, %v894
        %v896 = vpop.f32.mrb[0].mxu0
        %v897 = vpop.f32.mrb[0].mxu0
        %v898 = vadd.f32 %v794, %v897
        %v899 = vpop.f32.mrb[0].mxu0
        %900 = vmatprep.mubr.bf16.mxu0 0
        %901 = vmatmul.mubr.bf16.gmra.mrb[0].mxu0 %v758
        %v902 = vpop.f32.mrb[0].mxu0
        %v903 = vadd.f32 %v794, %v902
        %v904 = vpop.f32.mrb[0].mxu0
        %v905 = vpop.f32.mrb[0].mxu0
        %v906 = vadd.f32 %v794, %v905
        %v907 = vpop.f32.mrb[0].mxu0
        %908 = vmatprep.mubr.bf16.mxu0 0
        %909 = vmatmul.mubr.bf16.gmra.mrb[0].mxu0 %v759
        %v910 = vpop.f32.mrb[0].mxu0
        %v911 = vadd.f32 %v794, %v910
        %v912 = vpop.f32.mrb[0].mxu0
        %v913 = vpop.f32.mrb[0].mxu0
        %v914 = vadd.f32 %v794, %v913
        %v915 = vpop.f32.mrb[0].mxu0
        %916 = vmatprep.mubr.bf16.mxu0 0
        %917 = vmatmul.mubr.bf16.gmra.mrb[0].mxu0 %v760
        %v918 = vpop.f32.mrb[0].mxu0
        %v919 = vadd.f32 %v794, %v918
        %v920 = vpop.f32.mrb[0].mxu0
        %v921 = vpop.f32.mrb[0].mxu0
        %v922 = vadd.f32 %v794, %v921
        %v923 = vpop.f32.mrb[0].mxu0
        %924 = vmatprep.mubr.bf16.mxu0 0
        %925 = vmatmul.mubr.bf16.gmra.mrb[0].mxu0 %v761
        %v926 = vpop.f32.mrb[0].mxu0
        %v927 = vadd.f32 %v794, %v926
        %v928 = vpop.f32.mrb[0].mxu0
        %v929 = vpop.f32.mrb[0].mxu0
        %v930 = vadd.f32 %v794, %v929
        %v931 = vpop.f32.mrb[0].mxu0
        %932 = vmatprep.mubr.bf16.mxu0 0
        %933 = vmatmul.mubr.bf16.gmra.mrb[0].mxu0 %v762
        %v934 = vpop.f32.mrb[0].mxu0
        %v935 = vadd.f32 %v794, %v934
        %v936 = vpop.f32.mrb[0].mxu0
        %v937 = vpop.f32.mrb[0].mxu0
        %v938 = vadd.f32 %v794, %v937
        %v939 = vpop.f32.mrb[0].mxu0
        %940 = vmatprep.mubr.bf16.mxu0 0
        %941 = vmatmul.mubr.bf16.gmra.mrb[0].mxu0 %v763
        %v942 = vpop.f32.mrb[0].mxu0
        %v943 = vadd.f32 %v794, %v942
        %v944 = vpop.f32.mrb[0].mxu0
        %v945 = vpop.f32.mrb[0].mxu0
        %v946 = vadd.f32 %v794, %v945
        %v947 = vpop.f32.mrb[0].mxu0
        %948 = vmatprep.mubr.bf16.mxu0 0
        %949 = vmatmul.mubr.bf16.gmra.mrb[0].mxu0 %v764
        %v950 = vpop.f32.mrb[0].mxu0
        %v951 = vadd.f32 %v794, %v950
        %v952 = vpop.f32.mrb[0].mxu0
        %v953 = vpop.f32.mrb[0].mxu0
        %v954 = vadd.f32 %v794, %v953
        %v955 = vpop.f32.mrb[0].mxu0
        %956 = vmatprep.mubr.bf16.mxu0 0
        %957 = vmatmul.mubr.bf16.gmra.mrb[0].mxu0 %v765
        %v958 = vpop.f32.mrb[0].mxu0
        %v959 = vadd.f32 %v794, %v958
        %v960 = vpop.f32.mrb[0].mxu0
        %v961 = vpop.f32.mrb[0].mxu0
        %v962 = vadd.f32 %v794, %v961
        %v963 = vpop.f32.mrb[0].mxu0
        %964 = vmatprep.mubr.bf16.mxu0 0
        %965 = vmatmul.mubr.bf16.gmra.mrb[0].mxu0 %v766
        %v966 = vpop.f32.mrb[0].mxu0
        %v967 = vadd.f32 %v794, %v966
        %v968 = vpop.f32.mrb[0].mxu0
        %v969 = vpop.f32.mrb[0].mxu0
        %v970 = vadd.f32 %v794, %v969
        %v971 = vpop.f32.mrb[0].mxu0
        %972 = vmatprep.mubr.bf16.mxu0 0
        %973 = vmatmul.mubr.bf16.gmra.mrb[0].mxu0 %v767
        %v974 = vpop.f32.mrb[0].mxu0
        %v975 = vadd.f32 %v794, %v974
        %v976 = vpop.f32.mrb[0].mxu0
        %v977 = vpop.f32.mrb[0].mxu0
        %v978 = vadd.f32 %v794, %v977
        %v979 = vpop.f32.mrb[0].mxu0
        %980 = vmatprep.mubr.bf16.mxu0 0
        %981 = vmatmul.mubr.bf16.gmra.mrb[0].mxu0 %v768
        %v982 = vpop.f32.mrb[0].mxu0
        %v983 = vadd.f32 %v794, %v982
        %v984 = vpop.f32.mrb[0].mxu0
        %v985 = vpop.f32.mrb[0].mxu0
        %v986 = vadd.f32 %v794, %v985
        %v987 = vpop.f32.mrb[0].mxu0
        %988 = vmatprep.mubr.bf16.mxu0 0
        %989 = vmatmul.mubr.bf16.gmra.mrb[0].mxu0 %v769
        %v990 = vpop.f32.mrb[0].mxu0
        %v991 = vadd.f32 %v794, %v990
        %v992 = vpop.f32.mrb[0].mxu0
        %v993 = vpop.f32.mrb[0].mxu0
        %v994 = vadd.f32 %v794, %v993
        %v995 = vpop.f32.mrb[0].mxu0
        %996 = vmatprep.mubr.bf16.mxu0 0
        %997 = vmatmul.mubr.bf16.gmra.mrb[0].mxu0 %v770
        %v998 = vpop.f32.mrb[0].mxu0
        %v999 = vadd.f32 %v794, %v998
        %v1000 = vpop.f32.mrb[0].mxu0
        %v1001 = vpop.f32.mrb[0].mxu0
        %v1002 = vadd.f32 %v794, %v1001
        %v1003 = vpop.f32.mrb[0].mxu0
        %1004 = vdwg.mxu0
        %v1005 = vmax.f32 %v879, 0.0
        %v1006 = vmax.f32 %v882, 0.0
        %v1007 = vmax.f32 %v887, 0.0
        %v1008 = vmax.f32 %v890, 0.0
        %v1009 = vmax.f32 %v895, 0.0
        %v1010 = vmax.f32 %v898, 0.0
        %v1011 = vmax.f32 %v903, 0.0
        %v1012 = vmax.f32 %v906, 0.0
        %v1013 = vmax.f32 %v911, 0.0
        %v1014 = vmax.f32 %v914, 0.0
        %v1015 = vmax.f32 %v919, 0.0
        %v1016 = vmax.f32 %v922, 0.0
        %v1017 = vmax.f32 %v927, 0.0
        %v1018 = vmax.f32 %v930, 0.0
        %v1019 = vmax.f32 %v935, 0.0
        %v1020 = vmax.f32 %v938, 0.0
        %v1021 = vmax.f32 %v943, 0.0
        %v1022 = vmax.f32 %v946, 0.0
        %v1023 = vmax.f32 %v951, 0.0
        %v1024 = vmax.f32 %v954, 0.0
        %v1025 = vmax.f32 %v959, 0.0
        %v1026 = vmax.f32 %v962, 0.0
        %v1027 = vmax.f32 %v967, 0.0
        %v1028 = vmax.f32 %v970, 0.0
        %v1029 = vmax.f32 %v975, 0.0
        %v1030 = vmax.f32 %v978, 0.0
        %v1031 = vmax.f32 %v983, 0.0
        %v1032 = vmax.f32 %v986, 0.0
        %v1033 = vmax.f32 %v991, 0.0
        %v1034 = vmax.f32 %v994, 0.0
        %v1035 = vmax.f32 %v999, 0.0
        %v1036 = vmax.f32 %v1002, 0.0
        %v1037 = vpack.c.bf16 %v1006, %v1005
        %v1038 = vpack.c.bf16 %v1008, %v1007
        %v1039 = vpack.c.bf16 %v1010, %v1009
        %v1040 = vpack.c.bf16 %v1012, %v1011
        %v1041 = vpack.c.bf16 %v1014, %v1013
        %v1042 = vpack.c.bf16 %v1016, %v1015
        %v1043 = vpack.c.bf16 %v1018, %v1017
        %v1044 = vpack.c.bf16 %v1020, %v1019
        %v1045 = vpack.c.bf16 %v1022, %v1021
        %v1046 = vpack.c.bf16 %v1024, %v1023
        %v1047 = vpack.c.bf16 %v1026, %v1025
        %v1048 = vpack.c.bf16 %v1028, %v1027
        %v1049 = vpack.c.bf16 %v1030, %v1029
        %v1050 = vpack.c.bf16 %v1032, %v1031
        %v1051 = vpack.c.bf16 %v1034, %v1033
        %v1052 = vpack.c.bf16 %v1036, %v1035
        %s1053 = scalar_lea.vmem [#allocation7], 128
        %v1054 = vld [vmem:[%s1053] sm:$0xf]
        %v1055 = vld [vmem:[%s1053 + $0x4] sm:$0xf]
        %v1056 = vld [vmem:[%s1053 + $0x8] sm:$0xf]
        %v1057 = vld [vmem:[%s1053 + $0xc] sm:$0xf]
        %v1058 = vld [vmem:[%s1053 + $0x10] sm:$0xf]
        %v1059 = vld [vmem:[%s1053 + $0x14] sm:$0xf]
        %v1060 = vld [vmem:[%s1053 + $0x18] sm:$0xf]
        %v1061 = vld [vmem:[%s1053 + $0x1c] sm:$0xf]
        %v1062 = vld [vmem:[%s1053 + $0x20] sm:$0xf]
        %v1063 = vld [vmem:[%s1053 + $0x24] sm:$0xf]
        %v1064 = vld [vmem:[%s1053 + $0x28] sm:$0xf]
        %v1065 = vld [vmem:[%s1053 + $0x2c] sm:$0xf]
        %v1066 = vld [vmem:[%s1053 + $0x30] sm:$0xf]
        %v1067 = vld [vmem:[%s1053 + $0x34] sm:$0xf]
        %v1068 = vld [vmem:[%s1053 + $0x38] sm:$0xf]
        %v1069 = vld [vmem:[%s1053 + $0x3c] sm:$0xf]
        %s1070 = scalar_lea.vmem [#allocation8], 2
        %v1071 = vld [vmem:[%s1070] sm:$0x1]
        %v1073 = vlaneseq
        %v1074 = vshrl.u32 %v1073, 7
        %v1075 = vsub.s32 0, %v1074
        %v1076 = vrot.slane %v1071, %v1075
        %v1094 = vunpack.c.l.b16 %v1054
        %v1095 = vunpack.c.l.b16 %v1055
        %v1096 = vunpack.c.l.b16 %v1056
        %v1097 = vunpack.c.l.b16 %v1057
        %v1098 = vunpack.c.l.b16 %v1058
        %v1099 = vunpack.c.l.b16 %v1059
        %v1100 = vunpack.c.l.b16 %v1060
        %v1101 = vunpack.c.l.b16 %v1061
        %v1102 = vunpack.c.l.b16 %v1062
        %v1103 = vunpack.c.l.b16 %v1063
        %v1104 = vunpack.c.l.b16 %v1064
        %v1105 = vunpack.c.l.b16 %v1065
        %v1106 = vunpack.c.l.b16 %v1066
        %v1107 = vunpack.c.l.b16 %v1067
        %v1108 = vunpack.c.l.b16 %v1068
        %v1109 = vunpack.c.l.b16 %v1069
        %v1110 = vpack.c.b16 %v1095, %v1094
        %v1111 = vpack.c.b16 %v1097, %v1096
        %v1112 = vpack.c.b16 %v1099, %v1098
        %v1113 = vpack.c.b16 %v1101, %v1100
        %v1114 = vpack.c.b16 %v1103, %v1102
        %v1115 = vpack.c.b16 %v1105, %v1104
        %v1116 = vpack.c.b16 %v1107, %v1106
        %v1117 = vpack.c.b16 %v1109, %v1108
        %1126 = vmatprep.subr.bf16.mxu0 0
        %1127 = vmatpush1.bf16.msra.mxu0 %v1110
        %1128 = vmatprep.subr.bf16.mxu0 0
        %1129 = vmatpush1.bf16.msra.mxu0 %v1111
        %1130 = vmatprep.subr.bf16.mxu0 0
        %1131 = vmatpush1.bf16.msra.mxu0 %v1112
        %1132 = vmatprep.subr.bf16.mxu0 0
        %1133 = vmatpush1.bf16.msra.mxu0 %v1113
        %1134 = vmatprep.subr.bf16.mxu0 0
        %1135 = vmatpush1.bf16.msra.mxu0 %v1114
        %1136 = vmatprep.subr.bf16.mxu0 0
        %1137 = vmatpush1.bf16.msra.mxu0 %v1115
        %1138 = vmatprep.subr.bf16.mxu0 0
        %1139 = vmatpush1.bf16.msra.mxu0 %v1116
        %1140 = vmatprep.subr.bf16.mxu0 0
        %1141 = vmatpush1.bf16.msra.mxu0 %v1117
        %1142 = vmatprep.subr.bf16.mxu0 0
        %1143 = vmatpush1.bf16.msra.mxu0 0
        %1144 = vmatprep.subr.bf16.mxu0 0
        %1145 = vmatpush1.bf16.msra.mxu0 0
        %1146 = vmatprep.subr.bf16.mxu0 0
        %1147 = vmatpush1.bf16.msra.mxu0 0
        %1148 = vmatprep.subr.bf16.mxu0 0
        %1149 = vmatpush1.bf16.msra.mxu0 0
        %1150 = vmatprep.subr.bf16.mxu0 0
        %1151 = vmatpush1.bf16.msra.mxu0 0
        %1152 = vmatprep.subr.bf16.mxu0 0
        %1153 = vmatpush1.bf16.msra.mxu0 0
        %1154 = vmatprep.subr.bf16.mxu0 0
        %1155 = vmatpush1.bf16.msra.mxu0 0
        %1156 = vmatprep.subr.bf16.mxu0 0
        %1157 = vmatpush1.bf16.msra.mxu0 0
        %1158 = vmatprep.mubr.bf16.mxu0 0
        %1159 = vmatmul.mubr.bf16.gmra.mrb[0].mxu0 %v1037
        %v1160 = vpop.f32.mrb[0].mxu0
        %v1161 = vadd.f32 %v1076, %v1160
        %v1162 = vpop.f32.mrb[0].mxu0
        %v1163 = vpop.f32.mrb[0].mxu0
        %v1164 = vadd.f32 %v1076, %v1163
        %v1165 = vpop.f32.mrb[0].mxu0
        %1166 = vmatprep.mubr.bf16.mxu0 0
        %1167 = vmatmul.mubr.bf16.gmra.mrb[0].mxu0 %v1038
        %v1168 = vpop.f32.mrb[0].mxu0
        %v1169 = vadd.f32 %v1076, %v1168
        %v1170 = vpop.f32.mrb[0].mxu0
        %v1171 = vpop.f32.mrb[0].mxu0
        %v1172 = vadd.f32 %v1076, %v1171
        %v1173 = vpop.f32.mrb[0].mxu0
        %1174 = vmatprep.mubr.bf16.mxu0 0
        %1175 = vmatmul.mubr.bf16.gmra.mrb[0].mxu0 %v1039
        %v1176 = vpop.f32.mrb[0].mxu0
        %v1177 = vadd.f32 %v1076, %v1176
        %v1178 = vpop.f32.mrb[0].mxu0
        %v1179 = vpop.f32.mrb[0].mxu0
        %v1180 = vadd.f32 %v1076, %v1179
        %v1181 = vpop.f32.mrb[0].mxu0
        %1182 = vmatprep.mubr.bf16.mxu0 0
        %1183 = vmatmul.mubr.bf16.gmra.mrb[0].mxu0 %v1040
        %v1184 = vpop.f32.mrb[0].mxu0
        %v1185 = vadd.f32 %v1076, %v1184
        %v1186 = vpop.f32.mrb[0].mxu0
        %v1187 = vpop.f32.mrb[0].mxu0
        %v1188 = vadd.f32 %v1076, %v1187
        %v1189 = vpop.f32.mrb[0].mxu0
        %1190 = vmatprep.mubr.bf16.mxu0 0
        %1191 = vmatmul.mubr.bf16.gmra.mrb[0].mxu0 %v1041
        %v1192 = vpop.f32.mrb[0].mxu0
        %v1193 = vadd.f32 %v1076, %v1192
        %v1194 = vpop.f32.mrb[0].mxu0
        %v1195 = vpop.f32.mrb[0].mxu0
        %v1196 = vadd.f32 %v1076, %v1195
        %v1197 = vpop.f32.mrb[0].mxu0
        %1198 = vmatprep.mubr.bf16.mxu0 0
        %1199 = vmatmul.mubr.bf16.gmra.mrb[0].mxu0 %v1042
        %v1200 = vpop.f32.mrb[0].mxu0
        %v1201 = vadd.f32 %v1076, %v1200
        %v1202 = vpop.f32.mrb[0].mxu0
        %v1203 = vpop.f32.mrb[0].mxu0
        %v1204 = vadd.f32 %v1076, %v1203
        %v1205 = vpop.f32.mrb[0].mxu0
        %1206 = vmatprep.mubr.bf16.mxu0 0
        %1207 = vmatmul.mubr.bf16.gmra.mrb[0].mxu0 %v1043
        %v1208 = vpop.f32.mrb[0].mxu0
        %v1209 = vadd.f32 %v1076, %v1208
        %v1210 = vpop.f32.mrb[0].mxu0
        %v1211 = vpop.f32.mrb[0].mxu0
        %v1212 = vadd.f32 %v1076, %v1211
        %v1213 = vpop.f32.mrb[0].mxu0
        %1214 = vmatprep.mubr.bf16.mxu0 0
        %1215 = vmatmul.mubr.bf16.gmra.mrb[0].mxu0 %v1044
        %v1216 = vpop.f32.mrb[0].mxu0
        %v1217 = vadd.f32 %v1076, %v1216
        %v1218 = vpop.f32.mrb[0].mxu0
        %v1219 = vpop.f32.mrb[0].mxu0
        %v1220 = vadd.f32 %v1076, %v1219
        %v1221 = vpop.f32.mrb[0].mxu0
        %1222 = vmatprep.mubr.bf16.mxu0 0
        %1223 = vmatmul.mubr.bf16.gmra.mrb[0].mxu0 %v1045
        %v1224 = vpop.f32.mrb[0].mxu0
        %v1225 = vadd.f32 %v1076, %v1224
        %v1226 = vpop.f32.mrb[0].mxu0
        %v1227 = vpop.f32.mrb[0].mxu0
        %v1228 = vadd.f32 %v1076, %v1227
        %v1229 = vpop.f32.mrb[0].mxu0
        %1230 = vmatprep.mubr.bf16.mxu0 0
        %1231 = vmatmul.mubr.bf16.gmra.mrb[0].mxu0 %v1046
        %v1232 = vpop.f32.mrb[0].mxu0
        %v1233 = vadd.f32 %v1076, %v1232
        %v1234 = vpop.f32.mrb[0].mxu0
        %v1235 = vpop.f32.mrb[0].mxu0
        %v1236 = vadd.f32 %v1076, %v1235
        %v1237 = vpop.f32.mrb[0].mxu0
        %1238 = vmatprep.mubr.bf16.mxu0 0
        %1239 = vmatmul.mubr.bf16.gmra.mrb[0].mxu0 %v1047
        %v1240 = vpop.f32.mrb[0].mxu0
        %v1241 = vadd.f32 %v1076, %v1240
        %v1242 = vpop.f32.mrb[0].mxu0
        %v1243 = vpop.f32.mrb[0].mxu0
        %v1244 = vadd.f32 %v1076, %v1243
        %v1245 = vpop.f32.mrb[0].mxu0
        %1246 = vmatprep.mubr.bf16.mxu0 0
        %1247 = vmatmul.mubr.bf16.gmra.mrb[0].mxu0 %v1048
        %v1248 = vpop.f32.mrb[0].mxu0
        %v1249 = vadd.f32 %v1076, %v1248
        %v1250 = vpop.f32.mrb[0].mxu0
        %v1251 = vpop.f32.mrb[0].mxu0
        %v1252 = vadd.f32 %v1076, %v1251
        %v1253 = vpop.f32.mrb[0].mxu0
        %1254 = vmatprep.mubr.bf16.mxu0 0
        %1255 = vmatmul.mubr.bf16.gmra.mrb[0].mxu0 %v1049
        %v1256 = vpop.f32.mrb[0].mxu0
        %v1257 = vadd.f32 %v1076, %v1256
        %v1258 = vpop.f32.mrb[0].mxu0
        %v1259 = vpop.f32.mrb[0].mxu0
        %v1260 = vadd.f32 %v1076, %v1259
        %v1261 = vpop.f32.mrb[0].mxu0
        %1262 = vmatprep.mubr.bf16.mxu0 0
        %1263 = vmatmul.mubr.bf16.gmra.mrb[0].mxu0 %v1050
        %v1264 = vpop.f32.mrb[0].mxu0
        %v1265 = vadd.f32 %v1076, %v1264
        %v1266 = vpop.f32.mrb[0].mxu0
        %v1267 = vpop.f32.mrb[0].mxu0
        %v1268 = vadd.f32 %v1076, %v1267
        %v1269 = vpop.f32.mrb[0].mxu0
        %1270 = vmatprep.mubr.bf16.mxu0 0
        %1271 = vmatmul.mubr.bf16.gmra.mrb[0].mxu0 %v1051
        %v1272 = vpop.f32.mrb[0].mxu0
        %v1273 = vadd.f32 %v1076, %v1272
        %v1274 = vpop.f32.mrb[0].mxu0
        %v1275 = vpop.f32.mrb[0].mxu0
        %v1276 = vadd.f32 %v1076, %v1275
        %v1277 = vpop.f32.mrb[0].mxu0
        %1278 = vmatprep.mubr.bf16.mxu0 0
        %1279 = vmatmul.mubr.bf16.gmra.mrb[0].mxu0 %v1052
        %v1280 = vpop.f32.mrb[0].mxu0
        %v1281 = vadd.f32 %v1076, %v1280
        %v1282 = vpop.f32.mrb[0].mxu0
        %v1283 = vpop.f32.mrb[0].mxu0
        %v1284 = vadd.f32 %v1076, %v1283
        %v1285 = vpop.f32.mrb[0].mxu0
        %1286 = vdwg.mxu0
        %v1287 = vmax.f32 %v1161, 0.0
        %v1288 = vmax.f32 %v1164, 0.0
        %v1289 = vmax.f32 %v1169, 0.0
        %v1290 = vmax.f32 %v1172, 0.0
        %v1291 = vmax.f32 %v1177, 0.0
        %v1292 = vmax.f32 %v1180, 0.0
        %v1293 = vmax.f32 %v1185, 0.0
        %v1294 = vmax.f32 %v1188, 0.0
        %v1295 = vmax.f32 %v1193, 0.0
        %v1296 = vmax.f32 %v1196, 0.0
        %v1297 = vmax.f32 %v1201, 0.0
        %v1298 = vmax.f32 %v1204, 0.0
        %v1299 = vmax.f32 %v1209, 0.0
        %v1300 = vmax.f32 %v1212, 0.0
        %v1301 = vmax.f32 %v1217, 0.0
        %v1302 = vmax.f32 %v1220, 0.0
        %v1303 = vmax.f32 %v1225, 0.0
        %v1304 = vmax.f32 %v1228, 0.0
        %v1305 = vmax.f32 %v1233, 0.0
        %v1306 = vmax.f32 %v1236, 0.0
        %v1307 = vmax.f32 %v1241, 0.0
        %v1308 = vmax.f32 %v1244, 0.0
        %v1309 = vmax.f32 %v1249, 0.0
        %v1310 = vmax.f32 %v1252, 0.0
        %v1311 = vmax.f32 %v1257, 0.0
        %v1312 = vmax.f32 %v1260, 0.0
        %v1313 = vmax.f32 %v1265, 0.0
        %v1314 = vmax.f32 %v1268, 0.0
        %v1315 = vmax.f32 %v1273, 0.0
        %v1316 = vmax.f32 %v1276, 0.0
        %v1317 = vmax.f32 %v1281, 0.0
        %v1318 = vmax.f32 %v1284, 0.0
        %v1319 = vpack.c.bf16 %v1288, %v1287
        %v1320 = vpack.c.bf16 %v1290, %v1289
        %v1321 = vpack.c.bf16 %v1292, %v1291
        %v1322 = vpack.c.bf16 %v1294, %v1293
        %v1323 = vpack.c.bf16 %v1296, %v1295
        %v1324 = vpack.c.bf16 %v1298, %v1297
        %v1325 = vpack.c.bf16 %v1300, %v1299
        %v1326 = vpack.c.bf16 %v1302, %v1301
        %v1327 = vpack.c.bf16 %v1304, %v1303
        %v1328 = vpack.c.bf16 %v1306, %v1305
        %v1329 = vpack.c.bf16 %v1308, %v1307
        %v1330 = vpack.c.bf16 %v1310, %v1309
        %v1331 = vpack.c.bf16 %v1312, %v1311
        %v1332 = vpack.c.bf16 %v1314, %v1313
        %v1333 = vpack.c.bf16 %v1316, %v1315
        %v1334 = vpack.c.bf16 %v1318, %v1317
        %s1335 = scalar_lea.vmem [#allocation7], 192
        %v1336 = vld [vmem:[%s1335] sm:$0xf]
        %v1337 = vld [vmem:[%s1335 + $0x4] sm:$0xf]
        %v1338 = vld [vmem:[%s1335 + $0x8] sm:$0xf]
        %v1339 = vld [vmem:[%s1335 + $0xc] sm:$0xf]
        %v1340 = vld [vmem:[%s1335 + $0x10] sm:$0xf]
        %v1341 = vld [vmem:[%s1335 + $0x14] sm:$0xf]
        %v1342 = vld [vmem:[%s1335 + $0x18] sm:$0xf]
        %v1343 = vld [vmem:[%s1335 + $0x1c] sm:$0xf]
        %v1344 = vld [vmem:[%s1335 + $0x20] sm:$0xf]
        %v1345 = vld [vmem:[%s1335 + $0x24] sm:$0xf]
        %v1346 = vld [vmem:[%s1335 + $0x28] sm:$0xf]
        %v1347 = vld [vmem:[%s1335 + $0x2c] sm:$0xf]
        %v1348 = vld [vmem:[%s1335 + $0x30] sm:$0xf]
        %v1349 = vld [vmem:[%s1335 + $0x34] sm:$0xf]
        %v1350 = vld [vmem:[%s1335 + $0x38] sm:$0xf]
        %v1351 = vld [vmem:[%s1335 + $0x3c] sm:$0xf]
        %s1352 = scalar_lea.vmem [#allocation8], 3
        %v1353 = vld [vmem:[%s1352] sm:$0x1]
        %v1355 = vlaneseq
        %v1356 = vshrl.u32 %v1355, 7
        %v1357 = vsub.s32 0, %v1356
        %v1358 = vrot.slane %v1353, %v1357
        %v1376 = vunpack.c.l.b16 %v1336
        %v1377 = vunpack.c.l.b16 %v1337
        %v1378 = vunpack.c.l.b16 %v1338
        %v1379 = vunpack.c.l.b16 %v1339
        %v1380 = vunpack.c.l.b16 %v1340
        %v1381 = vunpack.c.l.b16 %v1341
        %v1382 = vunpack.c.l.b16 %v1342
        %v1383 = vunpack.c.l.b16 %v1343
        %v1384 = vunpack.c.l.b16 %v1344
        %v1385 = vunpack.c.l.b16 %v1345
        %v1386 = vunpack.c.l.b16 %v1346
        %v1387 = vunpack.c.l.b16 %v1347
        %v1388 = vunpack.c.l.b16 %v1348
        %v1389 = vunpack.c.l.b16 %v1349
        %v1390 = vunpack.c.l.b16 %v1350
        %v1391 = vunpack.c.l.b16 %v1351
        %v1392 = vpack.c.b16 %v1377, %v1376
        %v1393 = vpack.c.b16 %v1379, %v1378
        %v1394 = vpack.c.b16 %v1381, %v1380
        %v1395 = vpack.c.b16 %v1383, %v1382
        %v1396 = vpack.c.b16 %v1385, %v1384
        %v1397 = vpack.c.b16 %v1387, %v1386
        %v1398 = vpack.c.b16 %v1389, %v1388
        %v1399 = vpack.c.b16 %v1391, %v1390
        %1408 = vmatprep.subr.bf16.mxu0 0
        %1409 = vmatpush1.bf16.msra.mxu0 %v1392
        %1410 = vmatprep.subr.bf16.mxu0 0
        %1411 = vmatpush1.bf16.msra.mxu0 %v1393
        %1412 = vmatprep.subr.bf16.mxu0 0
        %1413 = vmatpush1.bf16.msra.mxu0 %v1394
        %1414 = vmatprep.subr.bf16.mxu0 0
        %1415 = vmatpush1.bf16.msra.mxu0 %v1395
        %1416 = vmatprep.subr.bf16.mxu0 0
        %1417 = vmatpush1.bf16.msra.mxu0 %v1396
        %1418 = vmatprep.subr.bf16.mxu0 0
        %1419 = vmatpush1.bf16.msra.mxu0 %v1397
        %1420 = vmatprep.subr.bf16.mxu0 0
        %1421 = vmatpush1.bf16.msra.mxu0 %v1398
        %1422 = vmatprep.subr.bf16.mxu0 0
        %1423 = vmatpush1.bf16.msra.mxu0 %v1399
        %1424 = vmatprep.subr.bf16.mxu0 0
        %1425 = vmatpush1.bf16.msra.mxu0 0
        %1426 = vmatprep.subr.bf16.mxu0 0
        %1427 = vmatpush1.bf16.msra.mxu0 0
        %1428 = vmatprep.subr.bf16.mxu0 0
        %1429 = vmatpush1.bf16.msra.mxu0 0
        %1430 = vmatprep.subr.bf16.mxu0 0
        %1431 = vmatpush1.bf16.msra.mxu0 0
        %1432 = vmatprep.subr.bf16.mxu0 0
        %1433 = vmatpush1.bf16.msra.mxu0 0
        %1434 = vmatprep.subr.bf16.mxu0 0
        %1435 = vmatpush1.bf16.msra.mxu0 0
        %1436 = vmatprep.subr.bf16.mxu0 0
        %1437 = vmatpush1.bf16.msra.mxu0 0
        %1438 = vmatprep.subr.bf16.mxu0 0
        %1439 = vmatpush1.bf16.msra.mxu0 0
        %1440 = vmatprep.mubr.bf16.mxu0 0
        %1441 = vmatmul.mubr.bf16.gmra.mrb[0].mxu0 %v1319
        %v1442 = vpop.f32.mrb[0].mxu0
        %v1443 = vadd.f32 %v1358, %v1442
        %v1444 = vpop.f32.mrb[0].mxu0
        %v1445 = vpop.f32.mrb[0].mxu0
        %v1446 = vadd.f32 %v1358, %v1445
        %v1447 = vpop.f32.mrb[0].mxu0
        %1448 = vmatprep.mubr.bf16.mxu0 0
        %1449 = vmatmul.mubr.bf16.gmra.mrb[0].mxu0 %v1320
        %v1450 = vpop.f32.mrb[0].mxu0
        %v1451 = vadd.f32 %v1358, %v1450
        %v1452 = vpop.f32.mrb[0].mxu0
        %v1453 = vpop.f32.mrb[0].mxu0
        %v1454 = vadd.f32 %v1358, %v1453
        %v1455 = vpop.f32.mrb[0].mxu0
        %1456 = vmatprep.mubr.bf16.mxu0 0
        %1457 = vmatmul.mubr.bf16.gmra.mrb[0].mxu0 %v1321
        %v1458 = vpop.f32.mrb[0].mxu0
        %v1459 = vadd.f32 %v1358, %v1458
        %v1460 = vpop.f32.mrb[0].mxu0
        %v1461 = vpop.f32.mrb[0].mxu0
        %v1462 = vadd.f32 %v1358, %v1461
        %v1463 = vpop.f32.mrb[0].mxu0
        %1464 = vmatprep.mubr.bf16.mxu0 0
        %1465 = vmatmul.mubr.bf16.gmra.mrb[0].mxu0 %v1322
        %v1466 = vpop.f32.mrb[0].mxu0
        %v1467 = vadd.f32 %v1358, %v1466
        %v1468 = vpop.f32.mrb[0].mxu0
        %v1469 = vpop.f32.mrb[0].mxu0
        %v1470 = vadd.f32 %v1358, %v1469
        %v1471 = vpop.f32.mrb[0].mxu0
        %1472 = vmatprep.mubr.bf16.mxu0 0
        %1473 = vmatmul.mubr.bf16.gmra.mrb[0].mxu0 %v1323
        %v1474 = vpop.f32.mrb[0].mxu0
        %v1475 = vadd.f32 %v1358, %v1474
        %v1476 = vpop.f32.mrb[0].mxu0
        %v1477 = vpop.f32.mrb[0].mxu0
        %v1478 = vadd.f32 %v1358, %v1477
        %v1479 = vpop.f32.mrb[0].mxu0
        %1480 = vmatprep.mubr.bf16.mxu0 0
        %1481 = vmatmul.mubr.bf16.gmra.mrb[0].mxu0 %v1324
        %v1482 = vpop.f32.mrb[0].mxu0
        %v1483 = vadd.f32 %v1358, %v1482
        %v1484 = vpop.f32.mrb[0].mxu0
        %v1485 = vpop.f32.mrb[0].mxu0
        %v1486 = vadd.f32 %v1358, %v1485
        %v1487 = vpop.f32.mrb[0].mxu0
        %1488 = vmatprep.mubr.bf16.mxu0 0
        %1489 = vmatmul.mubr.bf16.gmra.mrb[0].mxu0 %v1325
        %v1490 = vpop.f32.mrb[0].mxu0
        %v1491 = vadd.f32 %v1358, %v1490
        %v1492 = vpop.f32.mrb[0].mxu0
        %v1493 = vpop.f32.mrb[0].mxu0
        %v1494 = vadd.f32 %v1358, %v1493
        %v1495 = vpop.f32.mrb[0].mxu0
        %1496 = vmatprep.mubr.bf16.mxu0 0
        %1497 = vmatmul.mubr.bf16.gmra.mrb[0].mxu0 %v1326
        %v1498 = vpop.f32.mrb[0].mxu0
        %v1499 = vadd.f32 %v1358, %v1498
        %v1500 = vpop.f32.mrb[0].mxu0
        %v1501 = vpop.f32.mrb[0].mxu0
        %v1502 = vadd.f32 %v1358, %v1501
        %v1503 = vpop.f32.mrb[0].mxu0
        %1504 = vmatprep.mubr.bf16.mxu0 0
        %1505 = vmatmul.mubr.bf16.gmra.mrb[0].mxu0 %v1327
        %v1506 = vpop.f32.mrb[0].mxu0
        %v1507 = vadd.f32 %v1358, %v1506
        %v1508 = vpop.f32.mrb[0].mxu0
        %v1509 = vpop.f32.mrb[0].mxu0
        %v1510 = vadd.f32 %v1358, %v1509
        %v1511 = vpop.f32.mrb[0].mxu0
        %1512 = vmatprep.mubr.bf16.mxu0 0
        %1513 = vmatmul.mubr.bf16.gmra.mrb[0].mxu0 %v1328
        %v1514 = vpop.f32.mrb[0].mxu0
        %v1515 = vadd.f32 %v1358, %v1514
        %v1516 = vpop.f32.mrb[0].mxu0
        %v1517 = vpop.f32.mrb[0].mxu0
        %v1518 = vadd.f32 %v1358, %v1517
        %v1519 = vpop.f32.mrb[0].mxu0
        %1520 = vmatprep.mubr.bf16.mxu0 0
        %1521 = vmatmul.mubr.bf16.gmra.mrb[0].mxu0 %v1329
        %v1522 = vpop.f32.mrb[0].mxu0
        %v1523 = vadd.f32 %v1358, %v1522
        %v1524 = vpop.f32.mrb[0].mxu0
        %v1525 = vpop.f32.mrb[0].mxu0
        %v1526 = vadd.f32 %v1358, %v1525
        %v1527 = vpop.f32.mrb[0].mxu0
        %1528 = vmatprep.mubr.bf16.mxu0 0
        %1529 = vmatmul.mubr.bf16.gmra.mrb[0].mxu0 %v1330
        %v1530 = vpop.f32.mrb[0].mxu0
        %v1531 = vadd.f32 %v1358, %v1530
        %v1532 = vpop.f32.mrb[0].mxu0
        %v1533 = vpop.f32.mrb[0].mxu0
        %v1534 = vadd.f32 %v1358, %v1533
        %v1535 = vpop.f32.mrb[0].mxu0
        %1536 = vmatprep.mubr.bf16.mxu0 0
        %1537 = vmatmul.mubr.bf16.gmra.mrb[0].mxu0 %v1331
        %v1538 = vpop.f32.mrb[0].mxu0
        %v1539 = vadd.f32 %v1358, %v1538
        %v1540 = vpop.f32.mrb[0].mxu0
        %v1541 = vpop.f32.mrb[0].mxu0
        %v1542 = vadd.f32 %v1358, %v1541
        %v1543 = vpop.f32.mrb[0].mxu0
        %1544 = vmatprep.mubr.bf16.mxu0 0
        %1545 = vmatmul.mubr.bf16.gmra.mrb[0].mxu0 %v1332
        %v1546 = vpop.f32.mrb[0].mxu0
        %v1547 = vadd.f32 %v1358, %v1546
        %v1548 = vpop.f32.mrb[0].mxu0
        %v1549 = vpop.f32.mrb[0].mxu0
        %v1550 = vadd.f32 %v1358, %v1549
        %v1551 = vpop.f32.mrb[0].mxu0
        %1552 = vmatprep.mubr.bf16.mxu0 0
        %1553 = vmatmul.mubr.bf16.gmra.mrb[0].mxu0 %v1333
        %v1554 = vpop.f32.mrb[0].mxu0
        %v1555 = vadd.f32 %v1358, %v1554
        %v1556 = vpop.f32.mrb[0].mxu0
        %v1557 = vpop.f32.mrb[0].mxu0
        %v1558 = vadd.f32 %v1358, %v1557
        %v1559 = vpop.f32.mrb[0].mxu0
        %1560 = vmatprep.mubr.bf16.mxu0 0
        %1561 = vmatmul.mubr.bf16.gmra.mrb[0].mxu0 %v1334
        %v1562 = vpop.f32.mrb[0].mxu0
        %v1563 = vadd.f32 %v1358, %v1562
        %v1564 = vpop.f32.mrb[0].mxu0
        %v1565 = vpop.f32.mrb[0].mxu0
        %v1566 = vadd.f32 %v1358, %v1565
        %v1567 = vpop.f32.mrb[0].mxu0
        %1568 = vdwg.mxu0
        %v1569 = vmax.f32 %v1443, 0.0
        %v1570 = vmax.f32 %v1446, 0.0
        %v1571 = vmax.f32 %v1451, 0.0
        %v1572 = vmax.f32 %v1454, 0.0
        %v1573 = vmax.f32 %v1459, 0.0
        %v1574 = vmax.f32 %v1462, 0.0
        %v1575 = vmax.f32 %v1467, 0.0
        %v1576 = vmax.f32 %v1470, 0.0
        %v1577 = vmax.f32 %v1475, 0.0
        %v1578 = vmax.f32 %v1478, 0.0
        %v1579 = vmax.f32 %v1483, 0.0
        %v1580 = vmax.f32 %v1486, 0.0
        %v1581 = vmax.f32 %v1491, 0.0
        %v1582 = vmax.f32 %v1494, 0.0
        %v1583 = vmax.f32 %v1499, 0.0
        %v1584 = vmax.f32 %v1502, 0.0
        %v1585 = vmax.f32 %v1507, 0.0
        %v1586 = vmax.f32 %v1510, 0.0
        %v1587 = vmax.f32 %v1515, 0.0
        %v1588 = vmax.f32 %v1518, 0.0
        %v1589 = vmax.f32 %v1523, 0.0
        %v1590 = vmax.f32 %v1526, 0.0
        %v1591 = vmax.f32 %v1531, 0.0
        %v1592 = vmax.f32 %v1534, 0.0
        %v1593 = vmax.f32 %v1539, 0.0
        %v1594 = vmax.f32 %v1542, 0.0
        %v1595 = vmax.f32 %v1547, 0.0
        %v1596 = vmax.f32 %v1550, 0.0
        %v1597 = vmax.f32 %v1555, 0.0
        %v1598 = vmax.f32 %v1558, 0.0
        %v1599 = vmax.f32 %v1563, 0.0
        %v1600 = vmax.f32 %v1566, 0.0
        %v1601 = vpack.c.bf16 %v1570, %v1569
        %v1602 = vpack.c.bf16 %v1572, %v1571
        %v1603 = vpack.c.bf16 %v1574, %v1573
        %v1604 = vpack.c.bf16 %v1576, %v1575
        %v1605 = vpack.c.bf16 %v1578, %v1577
        %v1606 = vpack.c.bf16 %v1580, %v1579
        %v1607 = vpack.c.bf16 %v1582, %v1581
        %v1608 = vpack.c.bf16 %v1584, %v1583
        %v1609 = vpack.c.bf16 %v1586, %v1585
        %v1610 = vpack.c.bf16 %v1588, %v1587
        %v1611 = vpack.c.bf16 %v1590, %v1589
        %v1612 = vpack.c.bf16 %v1592, %v1591
        %v1613 = vpack.c.bf16 %v1594, %v1593
        %v1614 = vpack.c.bf16 %v1596, %v1595
        %v1615 = vpack.c.bf16 %v1598, %v1597
        %v1616 = vpack.c.bf16 %v1600, %v1599
        %s1617 = scalar_lea.vmem [#allocation7], 256
        %v1618 = vld [vmem:[%s1617] sm:$0xf]
        %v1619 = vld [vmem:[%s1617 + $0x4] sm:$0xf]
        %v1620 = vld [vmem:[%s1617 + $0x8] sm:$0xf]
        %v1621 = vld [vmem:[%s1617 + $0xc] sm:$0xf]
        %v1622 = vld [vmem:[%s1617 + $0x10] sm:$0xf]
        %v1623 = vld [vmem:[%s1617 + $0x14] sm:$0xf]
        %v1624 = vld [vmem:[%s1617 + $0x18] sm:$0xf]
        %v1625 = vld [vmem:[%s1617 + $0x1c] sm:$0xf]
        %v1626 = vld [vmem:[%s1617 + $0x20] sm:$0xf]
        %v1627 = vld [vmem:[%s1617 + $0x24] sm:$0xf]
        %v1628 = vld [vmem:[%s1617 + $0x28] sm:$0xf]
        %v1629 = vld [vmem:[%s1617 + $0x2c] sm:$0xf]
        %v1630 = vld [vmem:[%s1617 + $0x30] sm:$0xf]
        %v1631 = vld [vmem:[%s1617 + $0x34] sm:$0xf]
        %v1632 = vld [vmem:[%s1617 + $0x38] sm:$0xf]
        %v1633 = vld [vmem:[%s1617 + $0x3c] sm:$0xf]
        %s1634 = scalar_lea.vmem [#allocation8], 4
        %v1635 = vld [vmem:[%s1634] sm:$0x1]
        %v1637 = vlaneseq
        %v1638 = vshrl.u32 %v1637, 7
        %v1639 = vsub.s32 0, %v1638
        %v1640 = vrot.slane %v1635, %v1639
        %v1658 = vunpack.c.l.b16 %v1618
        %v1659 = vunpack.c.l.b16 %v1619
        %v1660 = vunpack.c.l.b16 %v1620
        %v1661 = vunpack.c.l.b16 %v1621
        %v1662 = vunpack.c.l.b16 %v1622
        %v1663 = vunpack.c.l.b16 %v1623
        %v1664 = vunpack.c.l.b16 %v1624
        %v1665 = vunpack.c.l.b16 %v1625
        %v1666 = vunpack.c.l.b16 %v1626
        %v1667 = vunpack.c.l.b16 %v1627
        %v1668 = vunpack.c.l.b16 %v1628
        %v1669 = vunpack.c.l.b16 %v1629
        %v1670 = vunpack.c.l.b16 %v1630
        %v1671 = vunpack.c.l.b16 %v1631
        %v1672 = vunpack.c.l.b16 %v1632
        %v1673 = vunpack.c.l.b16 %v1633
        %v1674 = vpack.c.b16 %v1659, %v1658
        %v1675 = vpack.c.b16 %v1661, %v1660
        %v1676 = vpack.c.b16 %v1663, %v1662
        %v1677 = vpack.c.b16 %v1665, %v1664
        %v1678 = vpack.c.b16 %v1667, %v1666
        %v1679 = vpack.c.b16 %v1669, %v1668
        %v1680 = vpack.c.b16 %v1671, %v1670
        %v1681 = vpack.c.b16 %v1673, %v1672
        %1690 = vmatprep.subr.bf16.mxu0 0
        %1691 = vmatpush1.bf16.msra.mxu0 %v1674
        %1692 = vmatprep.subr.bf16.mxu0 0
        %1693 = vmatpush1.bf16.msra.mxu0 %v1675
        %1694 = vmatprep.subr.bf16.mxu0 0
        %1695 = vmatpush1.bf16.msra.mxu0 %v1676
        %1696 = vmatprep.subr.bf16.mxu0 0
        %1697 = vmatpush1.bf16.msra.mxu0 %v1677
        %1698 = vmatprep.subr.bf16.mxu0 0
        %1699 = vmatpush1.bf16.msra.mxu0 %v1678
        %1700 = vmatprep.subr.bf16.mxu0 0
        %1701 = vmatpush1.bf16.msra.mxu0 %v1679
        %1702 = vmatprep.subr.bf16.mxu0 0
        %1703 = vmatpush1.bf16.msra.mxu0 %v1680
        %1704 = vmatprep.subr.bf16.mxu0 0
        %1705 = vmatpush1.bf16.msra.mxu0 %v1681
        %1706 = vmatprep.subr.bf16.mxu0 0
        %1707 = vmatpush1.bf16.msra.mxu0 0
        %1708 = vmatprep.subr.bf16.mxu0 0
        %1709 = vmatpush1.bf16.msra.mxu0 0
        %1710 = vmatprep.subr.bf16.mxu0 0
        %1711 = vmatpush1.bf16.msra.mxu0 0
        %1712 = vmatprep.subr.bf16.mxu0 0
        %1713 = vmatpush1.bf16.msra.mxu0 0
        %1714 = vmatprep.subr.bf16.mxu0 0
        %1715 = vmatpush1.bf16.msra.mxu0 0
        %1716 = vmatprep.subr.bf16.mxu0 0
        %1717 = vmatpush1.bf16.msra.mxu0 0
        %1718 = vmatprep.subr.bf16.mxu0 0
        %1719 = vmatpush1.bf16.msra.mxu0 0
        %1720 = vmatprep.subr.bf16.mxu0 0
        %1721 = vmatpush1.bf16.msra.mxu0 0
        %1722 = vmatprep.mubr.bf16.mxu0 0
        %1723 = vmatmul.mubr.bf16.gmra.mrb[0].mxu0 %v1601
        %v1724 = vpop.f32.mrb[0].mxu0
        %v1725 = vadd.f32 %v1640, %v1724
        %v1726 = vpop.f32.mrb[0].mxu0
        %v1727 = vpop.f32.mrb[0].mxu0
        %v1728 = vadd.f32 %v1640, %v1727
        %v1729 = vpop.f32.mrb[0].mxu0
        %1730 = vmatprep.mubr.bf16.mxu0 0
        %1731 = vmatmul.mubr.bf16.gmra.mrb[0].mxu0 %v1602
        %v1732 = vpop.f32.mrb[0].mxu0
        %v1733 = vadd.f32 %v1640, %v1732
        %v1734 = vpop.f32.mrb[0].mxu0
        %v1735 = vpop.f32.mrb[0].mxu0
        %v1736 = vadd.f32 %v1640, %v1735
        %v1737 = vpop.f32.mrb[0].mxu0
        %1738 = vmatprep.mubr.bf16.mxu0 0
        %1739 = vmatmul.mubr.bf16.gmra.mrb[0].mxu0 %v1603
        %v1740 = vpop.f32.mrb[0].mxu0
        %v1741 = vadd.f32 %v1640, %v1740
        %v1742 = vpop.f32.mrb[0].mxu0
        %v1743 = vpop.f32.mrb[0].mxu0
        %v1744 = vadd.f32 %v1640, %v1743
        %v1745 = vpop.f32.mrb[0].mxu0
        %1746 = vmatprep.mubr.bf16.mxu0 0
        %1747 = vmatmul.mubr.bf16.gmra.mrb[0].mxu0 %v1604
        %v1748 = vpop.f32.mrb[0].mxu0
        %v1749 = vadd.f32 %v1640, %v1748
        %v1750 = vpop.f32.mrb[0].mxu0
        %v1751 = vpop.f32.mrb[0].mxu0
        %v1752 = vadd.f32 %v1640, %v1751
        %v1753 = vpop.f32.mrb[0].mxu0
        %1754 = vmatprep.mubr.bf16.mxu0 0
        %1755 = vmatmul.mubr.bf16.gmra.mrb[0].mxu0 %v1605
        %v1756 = vpop.f32.mrb[0].mxu0
        %v1757 = vadd.f32 %v1640, %v1756
        %v1758 = vpop.f32.mrb[0].mxu0
        %v1759 = vpop.f32.mrb[0].mxu0
        %v1760 = vadd.f32 %v1640, %v1759
        %v1761 = vpop.f32.mrb[0].mxu0
        %1762 = vmatprep.mubr.bf16.mxu0 0
        %1763 = vmatmul.mubr.bf16.gmra.mrb[0].mxu0 %v1606
        %v1764 = vpop.f32.mrb[0].mxu0
        %v1765 = vadd.f32 %v1640, %v1764
        %v1766 = vpop.f32.mrb[0].mxu0
        %v1767 = vpop.f32.mrb[0].mxu0
        %v1768 = vadd.f32 %v1640, %v1767
        %v1769 = vpop.f32.mrb[0].mxu0
        %1770 = vmatprep.mubr.bf16.mxu0 0
        %1771 = vmatmul.mubr.bf16.gmra.mrb[0].mxu0 %v1607
        %v1772 = vpop.f32.mrb[0].mxu0
        %v1773 = vadd.f32 %v1640, %v1772
        %v1774 = vpop.f32.mrb[0].mxu0
        %v1775 = vpop.f32.mrb[0].mxu0
        %v1776 = vadd.f32 %v1640, %v1775
        %v1777 = vpop.f32.mrb[0].mxu0
        %1778 = vmatprep.mubr.bf16.mxu0 0
        %1779 = vmatmul.mubr.bf16.gmra.mrb[0].mxu0 %v1608
        %v1780 = vpop.f32.mrb[0].mxu0
        %v1781 = vadd.f32 %v1640, %v1780
        %v1782 = vpop.f32.mrb[0].mxu0
        %v1783 = vpop.f32.mrb[0].mxu0
        %v1784 = vadd.f32 %v1640, %v1783
        %v1785 = vpop.f32.mrb[0].mxu0
        %1786 = vmatprep.mubr.bf16.mxu0 0
        %1787 = vmatmul.mubr.bf16.gmra.mrb[0].mxu0 %v1609
        %v1788 = vpop.f32.mrb[0].mxu0
        %v1789 = vadd.f32 %v1640, %v1788
        %v1790 = vpop.f32.mrb[0].mxu0
        %v1791 = vpop.f32.mrb[0].mxu0
        %v1792 = vadd.f32 %v1640, %v1791
        %v1793 = vpop.f32.mrb[0].mxu0
        %1794 = vmatprep.mubr.bf16.mxu0 0
        %1795 = vmatmul.mubr.bf16.gmra.mrb[0].mxu0 %v1610
        %v1796 = vpop.f32.mrb[0].mxu0
        %v1797 = vadd.f32 %v1640, %v1796
        %v1798 = vpop.f32.mrb[0].mxu0
        %v1799 = vpop.f32.mrb[0].mxu0
        %v1800 = vadd.f32 %v1640, %v1799
        %v1801 = vpop.f32.mrb[0].mxu0
        %1802 = vmatprep.mubr.bf16.mxu0 0
        %1803 = vmatmul.mubr.bf16.gmra.mrb[0].mxu0 %v1611
        %v1804 = vpop.f32.mrb[0].mxu0
        %v1805 = vadd.f32 %v1640, %v1804
        %v1806 = vpop.f32.mrb[0].mxu0
        %v1807 = vpop.f32.mrb[0].mxu0
        %v1808 = vadd.f32 %v1640, %v1807
        %v1809 = vpop.f32.mrb[0].mxu0
        %1810 = vmatprep.mubr.bf16.mxu0 0
        %1811 = vmatmul.mubr.bf16.gmra.mrb[0].mxu0 %v1612
        %v1812 = vpop.f32.mrb[0].mxu0
        %v1813 = vadd.f32 %v1640, %v1812
        %v1814 = vpop.f32.mrb[0].mxu0
        %v1815 = vpop.f32.mrb[0].mxu0
        %v1816 = vadd.f32 %v1640, %v1815
        %v1817 = vpop.f32.mrb[0].mxu0
        %1818 = vmatprep.mubr.bf16.mxu0 0
        %1819 = vmatmul.mubr.bf16.gmra.mrb[0].mxu0 %v1613
        %v1820 = vpop.f32.mrb[0].mxu0
        %v1821 = vadd.f32 %v1640, %v1820
        %v1822 = vpop.f32.mrb[0].mxu0
        %v1823 = vpop.f32.mrb[0].mxu0
        %v1824 = vadd.f32 %v1640, %v1823
        %v1825 = vpop.f32.mrb[0].mxu0
        %1826 = vmatprep.mubr.bf16.mxu0 0
        %1827 = vmatmul.mubr.bf16.gmra.mrb[0].mxu0 %v1614
        %v1828 = vpop.f32.mrb[0].mxu0
        %v1829 = vadd.f32 %v1640, %v1828
        %v1830 = vpop.f32.mrb[0].mxu0
        %v1831 = vpop.f32.mrb[0].mxu0
        %v1832 = vadd.f32 %v1640, %v1831
        %v1833 = vpop.f32.mrb[0].mxu0
        %1834 = vmatprep.mubr.bf16.mxu0 0
        %1835 = vmatmul.mubr.bf16.gmra.mrb[0].mxu0 %v1615
        %v1836 = vpop.f32.mrb[0].mxu0
        %v1837 = vadd.f32 %v1640, %v1836
        %v1838 = vpop.f32.mrb[0].mxu0
        %v1839 = vpop.f32.mrb[0].mxu0
        %v1840 = vadd.f32 %v1640, %v1839
        %v1841 = vpop.f32.mrb[0].mxu0
        %1842 = vmatprep.mubr.bf16.mxu0 0
        %1843 = vmatmul.mubr.bf16.gmra.mrb[0].mxu0 %v1616
        %v1844 = vpop.f32.mrb[0].mxu0
        %v1845 = vadd.f32 %v1640, %v1844
        %v1846 = vpop.f32.mrb[0].mxu0
        %v1847 = vpop.f32.mrb[0].mxu0
        %v1848 = vadd.f32 %v1640, %v1847
        %v1849 = vpop.f32.mrb[0].mxu0
        %1850 = vdwg.mxu0
        %v1851 = vmax.f32 %v1725, 0.0
        %v1852 = vmax.f32 %v1728, 0.0
        %v1853 = vmax.f32 %v1733, 0.0
        %v1854 = vmax.f32 %v1736, 0.0
        %v1855 = vmax.f32 %v1741, 0.0
        %v1856 = vmax.f32 %v1744, 0.0
        %v1857 = vmax.f32 %v1749, 0.0
        %v1858 = vmax.f32 %v1752, 0.0
        %v1859 = vmax.f32 %v1757, 0.0
        %v1860 = vmax.f32 %v1760, 0.0
        %v1861 = vmax.f32 %v1765, 0.0
        %v1862 = vmax.f32 %v1768, 0.0
        %v1863 = vmax.f32 %v1773, 0.0
        %v1864 = vmax.f32 %v1776, 0.0
        %v1865 = vmax.f32 %v1781, 0.0
        %v1866 = vmax.f32 %v1784, 0.0
        %v1867 = vmax.f32 %v1789, 0.0
        %v1868 = vmax.f32 %v1792, 0.0
        %v1869 = vmax.f32 %v1797, 0.0
        %v1870 = vmax.f32 %v1800, 0.0
        %v1871 = vmax.f32 %v1805, 0.0
        %v1872 = vmax.f32 %v1808, 0.0
        %v1873 = vmax.f32 %v1813, 0.0
        %v1874 = vmax.f32 %v1816, 0.0
        %v1875 = vmax.f32 %v1821, 0.0
        %v1876 = vmax.f32 %v1824, 0.0
        %v1877 = vmax.f32 %v1829, 0.0
        %v1878 = vmax.f32 %v1832, 0.0
        %v1879 = vmax.f32 %v1837, 0.0
        %v1880 = vmax.f32 %v1840, 0.0
        %v1881 = vmax.f32 %v1845, 0.0
        %v1882 = vmax.f32 %v1848, 0.0
        %v1883 = vpack.c.bf16 %v1852, %v1851
        %v1884 = vpack.c.bf16 %v1854, %v1853
        %v1885 = vpack.c.bf16 %v1856, %v1855
        %v1886 = vpack.c.bf16 %v1858, %v1857
        %v1887 = vpack.c.bf16 %v1860, %v1859
        %v1888 = vpack.c.bf16 %v1862, %v1861
        %v1889 = vpack.c.bf16 %v1864, %v1863
        %v1890 = vpack.c.bf16 %v1866, %v1865
        %v1891 = vpack.c.bf16 %v1868, %v1867
        %v1892 = vpack.c.bf16 %v1870, %v1869
        %v1893 = vpack.c.bf16 %v1872, %v1871
        %v1894 = vpack.c.bf16 %v1874, %v1873
        %v1895 = vpack.c.bf16 %v1876, %v1875
        %v1896 = vpack.c.bf16 %v1878, %v1877
        %v1897 = vpack.c.bf16 %v1880, %v1879
        %v1898 = vpack.c.bf16 %v1882, %v1881
        %s1899 = scalar_lea.vmem [#allocation7], 320
        %v1900 = vld [vmem:[%s1899] sm:$0xf]
        %v1901 = vld [vmem:[%s1899 + $0x4] sm:$0xf]
        %v1902 = vld [vmem:[%s1899 + $0x8] sm:$0xf]
        %v1903 = vld [vmem:[%s1899 + $0xc] sm:$0xf]
        %v1904 = vld [vmem:[%s1899 + $0x10] sm:$0xf]
        %v1905 = vld [vmem:[%s1899 + $0x14] sm:$0xf]
        %v1906 = vld [vmem:[%s1899 + $0x18] sm:$0xf]
        %v1907 = vld [vmem:[%s1899 + $0x1c] sm:$0xf]
        %v1908 = vld [vmem:[%s1899 + $0x20] sm:$0xf]
        %v1909 = vld [vmem:[%s1899 + $0x24] sm:$0xf]
        %v1910 = vld [vmem:[%s1899 + $0x28] sm:$0xf]
        %v1911 = vld [vmem:[%s1899 + $0x2c] sm:$0xf]
        %v1912 = vld [vmem:[%s1899 + $0x30] sm:$0xf]
        %v1913 = vld [vmem:[%s1899 + $0x34] sm:$0xf]
        %v1914 = vld [vmem:[%s1899 + $0x38] sm:$0xf]
        %v1915 = vld [vmem:[%s1899 + $0x3c] sm:$0xf]
        %s1916 = scalar_lea.vmem [#allocation8], 5
        %v1917 = vld [vmem:[%s1916] sm:$0x1]
        %v1919 = vlaneseq
        %v1920 = vshrl.u32 %v1919, 7
        %v1921 = vsub.s32 0, %v1920
        %v1922 = vrot.slane %v1917, %v1921
        %v1940 = vunpack.c.l.b16 %v1900
        %v1941 = vunpack.c.l.b16 %v1901
        %v1942 = vunpack.c.l.b16 %v1902
        %v1943 = vunpack.c.l.b16 %v1903
        %v1944 = vunpack.c.l.b16 %v1904
        %v1945 = vunpack.c.l.b16 %v1905
        %v1946 = vunpack.c.l.b16 %v1906
        %v1947 = vunpack.c.l.b16 %v1907
        %v1948 = vunpack.c.l.b16 %v1908
        %v1949 = vunpack.c.l.b16 %v1909
        %v1950 = vunpack.c.l.b16 %v1910
        %v1951 = vunpack.c.l.b16 %v1911
        %v1952 = vunpack.c.l.b16 %v1912
        %v1953 = vunpack.c.l.b16 %v1913
        %v1954 = vunpack.c.l.b16 %v1914
        %v1955 = vunpack.c.l.b16 %v1915
        %v1956 = vpack.c.b16 %v1941, %v1940
        %v1957 = vpack.c.b16 %v1943, %v1942
        %v1958 = vpack.c.b16 %v1945, %v1944
        %v1959 = vpack.c.b16 %v1947, %v1946
        %v1960 = vpack.c.b16 %v1949, %v1948
        %v1961 = vpack.c.b16 %v1951, %v1950
        %v1962 = vpack.c.b16 %v1953, %v1952
        %v1963 = vpack.c.b16 %v1955, %v1954
        %1972 = vmatprep.subr.bf16.mxu0 0
        %1973 = vmatpush1.bf16.msra.mxu0 %v1956
        %1974 = vmatprep.subr.bf16.mxu0 0
        %1975 = vmatpush1.bf16.msra.mxu0 %v1957
        %1976 = vmatprep.subr.bf16.mxu0 0
        %1977 = vmatpush1.bf16.msra.mxu0 %v1958
        %1978 = vmatprep.subr.bf16.mxu0 0
        %1979 = vmatpush1.bf16.msra.mxu0 %v1959
        %1980 = vmatprep.subr.bf16.mxu0 0
        %1981 = vmatpush1.bf16.msra.mxu0 %v1960
        %1982 = vmatprep.subr.bf16.mxu0 0
        %1983 = vmatpush1.bf16.msra.mxu0 %v1961
        %1984 = vmatprep.subr.bf16.mxu0 0
        %1985 = vmatpush1.bf16.msra.mxu0 %v1962
        %1986 = vmatprep.subr.bf16.mxu0 0
        %1987 = vmatpush1.bf16.msra.mxu0 %v1963
        %1988 = vmatprep.subr.bf16.mxu0 0
        %1989 = vmatpush1.bf16.msra.mxu0 0
        %1990 = vmatprep.subr.bf16.mxu0 0
        %1991 = vmatpush1.bf16.msra.mxu0 0
        %1992 = vmatprep.subr.bf16.mxu0 0
        %1993 = vmatpush1.bf16.msra.mxu0 0
        %1994 = vmatprep.subr.bf16.mxu0 0
        %1995 = vmatpush1.bf16.msra.mxu0 0
        %1996 = vmatprep.subr.bf16.mxu0 0
        %1997 = vmatpush1.bf16.msra.mxu0 0
        %1998 = vmatprep.subr.bf16.mxu0 0
        %1999 = vmatpush1.bf16.msra.mxu0 0
        %2000 = vmatprep.subr.bf16.mxu0 0
        %2001 = vmatpush1.bf16.msra.mxu0 0
        %2002 = vmatprep.subr.bf16.mxu0 0
        %2003 = vmatpush1.bf16.msra.mxu0 0
        %2004 = vmatprep.mubr.bf16.mxu0 0
        %2005 = vmatmul.mubr.bf16.gmra.mrb[0].mxu0 %v1883
        %v2006 = vpop.f32.mrb[0].mxu0
        %v2007 = vadd.f32 %v1922, %v2006
        %v2008 = vpop.f32.mrb[0].mxu0
        %v2009 = vpop.f32.mrb[0].mxu0
        %v2010 = vadd.f32 %v1922, %v2009
        %v2011 = vpop.f32.mrb[0].mxu0
        %2012 = vmatprep.mubr.bf16.mxu0 0
        %2013 = vmatmul.mubr.bf16.gmra.mrb[0].mxu0 %v1884
        %v2014 = vpop.f32.mrb[0].mxu0
        %v2015 = vadd.f32 %v1922, %v2014
        %v2016 = vpop.f32.mrb[0].mxu0
        %v2017 = vpop.f32.mrb[0].mxu0
        %v2018 = vadd.f32 %v1922, %v2017
        %v2019 = vpop.f32.mrb[0].mxu0
        %2020 = vmatprep.mubr.bf16.mxu0 0
        %2021 = vmatmul.mubr.bf16.gmra.mrb[0].mxu0 %v1885
        %v2022 = vpop.f32.mrb[0].mxu0
        %v2023 = vadd.f32 %v1922, %v2022
        %v2024 = vpop.f32.mrb[0].mxu0
        %v2025 = vpop.f32.mrb[0].mxu0
        %v2026 = vadd.f32 %v1922, %v2025
        %v2027 = vpop.f32.mrb[0].mxu0
        %2028 = vmatprep.mubr.bf16.mxu0 0
        %2029 = vmatmul.mubr.bf16.gmra.mrb[0].mxu0 %v1886
        %v2030 = vpop.f32.mrb[0].mxu0
        %v2031 = vadd.f32 %v1922, %v2030
        %v2032 = vpop.f32.mrb[0].mxu0
        %v2033 = vpop.f32.mrb[0].mxu0
        %v2034 = vadd.f32 %v1922, %v2033
        %v2035 = vpop.f32.mrb[0].mxu0
        %2036 = vmatprep.mubr.bf16.mxu0 0
        %2037 = vmatmul.mubr.bf16.gmra.mrb[0].mxu0 %v1887
        %v2038 = vpop.f32.mrb[0].mxu0
        %v2039 = vadd.f32 %v1922, %v2038
        %v2040 = vpop.f32.mrb[0].mxu0
        %v2041 = vpop.f32.mrb[0].mxu0
        %v2042 = vadd.f32 %v1922, %v2041
        %v2043 = vpop.f32.mrb[0].mxu0
        %2044 = vmatprep.mubr.bf16.mxu0 0
        %2045 = vmatmul.mubr.bf16.gmra.mrb[0].mxu0 %v1888
        %v2046 = vpop.f32.mrb[0].mxu0
        %v2047 = vadd.f32 %v1922, %v2046
        %v2048 = vpop.f32.mrb[0].mxu0
        %v2049 = vpop.f32.mrb[0].mxu0
        %v2050 = vadd.f32 %v1922, %v2049
        %v2051 = vpop.f32.mrb[0].mxu0
        %2052 = vmatprep.mubr.bf16.mxu0 0
        %2053 = vmatmul.mubr.bf16.gmra.mrb[0].mxu0 %v1889
        %v2054 = vpop.f32.mrb[0].mxu0
        %v2055 = vadd.f32 %v1922, %v2054
        %v2056 = vpop.f32.mrb[0].mxu0
        %v2057 = vpop.f32.mrb[0].mxu0
        %v2058 = vadd.f32 %v1922, %v2057
        %v2059 = vpop.f32.mrb[0].mxu0
        %2060 = vmatprep.mubr.bf16.mxu0 0
        %2061 = vmatmul.mubr.bf16.gmra.mrb[0].mxu0 %v1890
        %v2062 = vpop.f32.mrb[0].mxu0
        %v2063 = vadd.f32 %v1922, %v2062
        %v2064 = vpop.f32.mrb[0].mxu0
        %v2065 = vpop.f32.mrb[0].mxu0
        %v2066 = vadd.f32 %v1922, %v2065
        %v2067 = vpop.f32.mrb[0].mxu0
        %2068 = vmatprep.mubr.bf16.mxu0 0
        %2069 = vmatmul.mubr.bf16.gmra.mrb[0].mxu0 %v1891
        %v2070 = vpop.f32.mrb[0].mxu0
        %v2071 = vadd.f32 %v1922, %v2070
        %v2072 = vpop.f32.mrb[0].mxu0
        %v2073 = vpop.f32.mrb[0].mxu0
        %v2074 = vadd.f32 %v1922, %v2073
        %v2075 = vpop.f32.mrb[0].mxu0
        %2076 = vmatprep.mubr.bf16.mxu0 0
        %2077 = vmatmul.mubr.bf16.gmra.mrb[0].mxu0 %v1892
        %v2078 = vpop.f32.mrb[0].mxu0
        %v2079 = vadd.f32 %v1922, %v2078
        %v2080 = vpop.f32.mrb[0].mxu0
        %v2081 = vpop.f32.mrb[0].mxu0
        %v2082 = vadd.f32 %v1922, %v2081
        %v2083 = vpop.f32.mrb[0].mxu0
        %2084 = vmatprep.mubr.bf16.mxu0 0
        %2085 = vmatmul.mubr.bf16.gmra.mrb[0].mxu0 %v1893
        %v2086 = vpop.f32.mrb[0].mxu0
        %v2087 = vadd.f32 %v1922, %v2086
        %v2088 = vpop.f32.mrb[0].mxu0
        %v2089 = vpop.f32.mrb[0].mxu0
        %v2090 = vadd.f32 %v1922, %v2089
        %v2091 = vpop.f32.mrb[0].mxu0
        %2092 = vmatprep.mubr.bf16.mxu0 0
        %2093 = vmatmul.mubr.bf16.gmra.mrb[0].mxu0 %v1894
        %v2094 = vpop.f32.mrb[0].mxu0
        %v2095 = vadd.f32 %v1922, %v2094
        %v2096 = vpop.f32.mrb[0].mxu0
        %v2097 = vpop.f32.mrb[0].mxu0
        %v2098 = vadd.f32 %v1922, %v2097
        %v2099 = vpop.f32.mrb[0].mxu0
        %2100 = vmatprep.mubr.bf16.mxu0 0
        %2101 = vmatmul.mubr.bf16.gmra.mrb[0].mxu0 %v1895
        %v2102 = vpop.f32.mrb[0].mxu0
        %v2103 = vadd.f32 %v1922, %v2102
        %v2104 = vpop.f32.mrb[0].mxu0
        %v2105 = vpop.f32.mrb[0].mxu0
        %v2106 = vadd.f32 %v1922, %v2105
        %v2107 = vpop.f32.mrb[0].mxu0
        %2108 = vmatprep.mubr.bf16.mxu0 0
        %2109 = vmatmul.mubr.bf16.gmra.mrb[0].mxu0 %v1896
        %v2110 = vpop.f32.mrb[0].mxu0
        %v2111 = vadd.f32 %v1922, %v2110
        %v2112 = vpop.f32.mrb[0].mxu0
        %v2113 = vpop.f32.mrb[0].mxu0
        %v2114 = vadd.f32 %v1922, %v2113
        %v2115 = vpop.f32.mrb[0].mxu0
        %2116 = vmatprep.mubr.bf16.mxu0 0
        %2117 = vmatmul.mubr.bf16.gmra.mrb[0].mxu0 %v1897
        %v2118 = vpop.f32.mrb[0].mxu0
        %v2119 = vadd.f32 %v1922, %v2118
        %v2120 = vpop.f32.mrb[0].mxu0
        %v2121 = vpop.f32.mrb[0].mxu0
        %v2122 = vadd.f32 %v1922, %v2121
        %v2123 = vpop.f32.mrb[0].mxu0
        %2124 = vmatprep.mubr.bf16.mxu0 0
        %2125 = vmatmul.mubr.bf16.gmra.mrb[0].mxu0 %v1898
        %v2126 = vpop.f32.mrb[0].mxu0
        %v2127 = vadd.f32 %v1922, %v2126
        %v2128 = vpop.f32.mrb[0].mxu0
        %v2129 = vpop.f32.mrb[0].mxu0
        %v2130 = vadd.f32 %v1922, %v2129
        %v2131 = vpop.f32.mrb[0].mxu0
        %2132 = vdwg.mxu0
        %v2133 = vmax.f32 %v2007, 0.0
        %v2134 = vmax.f32 %v2010, 0.0
        %v2135 = vmax.f32 %v2015, 0.0
        %v2136 = vmax.f32 %v2018, 0.0
        %v2137 = vmax.f32 %v2023, 0.0
        %v2138 = vmax.f32 %v2026, 0.0
        %v2139 = vmax.f32 %v2031, 0.0
        %v2140 = vmax.f32 %v2034, 0.0
        %v2141 = vmax.f32 %v2039, 0.0
        %v2142 = vmax.f32 %v2042, 0.0
        %v2143 = vmax.f32 %v2047, 0.0
        %v2144 = vmax.f32 %v2050, 0.0
        %v2145 = vmax.f32 %v2055, 0.0
        %v2146 = vmax.f32 %v2058, 0.0
        %v2147 = vmax.f32 %v2063, 0.0
        %v2148 = vmax.f32 %v2066, 0.0
        %v2149 = vmax.f32 %v2071, 0.0
        %v2150 = vmax.f32 %v2074, 0.0
        %v2151 = vmax.f32 %v2079, 0.0
        %v2152 = vmax.f32 %v2082, 0.0
        %v2153 = vmax.f32 %v2087, 0.0
        %v2154 = vmax.f32 %v2090, 0.0
        %v2155 = vmax.f32 %v2095, 0.0
        %v2156 = vmax.f32 %v2098, 0.0
        %v2157 = vmax.f32 %v2103, 0.0
        %v2158 = vmax.f32 %v2106, 0.0
        %v2159 = vmax.f32 %v2111, 0.0
        %v2160 = vmax.f32 %v2114, 0.0
        %v2161 = vmax.f32 %v2119, 0.0
        %v2162 = vmax.f32 %v2122, 0.0
        %v2163 = vmax.f32 %v2127, 0.0
        %v2164 = vmax.f32 %v2130, 0.0
        %v2165 = vpack.c.bf16 %v2134, %v2133
        %v2166 = vpack.c.bf16 %v2136, %v2135
        %v2167 = vpack.c.bf16 %v2138, %v2137
        %v2168 = vpack.c.bf16 %v2140, %v2139
        %v2169 = vpack.c.bf16 %v2142, %v2141
        %v2170 = vpack.c.bf16 %v2144, %v2143
        %v2171 = vpack.c.bf16 %v2146, %v2145
        %v2172 = vpack.c.bf16 %v2148, %v2147
        %v2173 = vpack.c.bf16 %v2150, %v2149
        %v2174 = vpack.c.bf16 %v2152, %v2151
        %v2175 = vpack.c.bf16 %v2154, %v2153
        %v2176 = vpack.c.bf16 %v2156, %v2155
        %v2177 = vpack.c.bf16 %v2158, %v2157
        %v2178 = vpack.c.bf16 %v2160, %v2159
        %v2179 = vpack.c.bf16 %v2162, %v2161
        %v2180 = vpack.c.bf16 %v2164, %v2163
        %s2181 = scalar_lea.vmem [#allocation7], 384
        %v2182 = vld [vmem:[%s2181] sm:$0xf]
        %v2183 = vld [vmem:[%s2181 + $0x4] sm:$0xf]
        %v2184 = vld [vmem:[%s2181 + $0x8] sm:$0xf]
        %v2185 = vld [vmem:[%s2181 + $0xc] sm:$0xf]
        %v2186 = vld [vmem:[%s2181 + $0x10] sm:$0xf]
        %v2187 = vld [vmem:[%s2181 + $0x14] sm:$0xf]
        %v2188 = vld [vmem:[%s2181 + $0x18] sm:$0xf]
        %v2189 = vld [vmem:[%s2181 + $0x1c] sm:$0xf]
        %v2190 = vld [vmem:[%s2181 + $0x20] sm:$0xf]
        %v2191 = vld [vmem:[%s2181 + $0x24] sm:$0xf]
        %v2192 = vld [vmem:[%s2181 + $0x28] sm:$0xf]
        %v2193 = vld [vmem:[%s2181 + $0x2c] sm:$0xf]
        %v2194 = vld [vmem:[%s2181 + $0x30] sm:$0xf]
        %v2195 = vld [vmem:[%s2181 + $0x34] sm:$0xf]
        %v2196 = vld [vmem:[%s2181 + $0x38] sm:$0xf]
        %v2197 = vld [vmem:[%s2181 + $0x3c] sm:$0xf]
        %s2198 = scalar_lea.vmem [#allocation8], 6
        %v2199 = vld [vmem:[%s2198] sm:$0x1]
        %v2201 = vlaneseq
        %v2202 = vshrl.u32 %v2201, 7
        %v2203 = vsub.s32 0, %v2202
        %v2204 = vrot.slane %v2199, %v2203
        %v2222 = vunpack.c.l.b16 %v2182
        %v2223 = vunpack.c.l.b16 %v2183
        %v2224 = vunpack.c.l.b16 %v2184
        %v2225 = vunpack.c.l.b16 %v2185
        %v2226 = vunpack.c.l.b16 %v2186
        %v2227 = vunpack.c.l.b16 %v2187
        %v2228 = vunpack.c.l.b16 %v2188
        %v2229 = vunpack.c.l.b16 %v2189
        %v2230 = vunpack.c.l.b16 %v2190
        %v2231 = vunpack.c.l.b16 %v2191
        %v2232 = vunpack.c.l.b16 %v2192
        %v2233 = vunpack.c.l.b16 %v2193
        %v2234 = vunpack.c.l.b16 %v2194
        %v2235 = vunpack.c.l.b16 %v2195
        %v2236 = vunpack.c.l.b16 %v2196
        %v2237 = vunpack.c.l.b16 %v2197
        %v2238 = vpack.c.b16 %v2223, %v2222
        %v2239 = vpack.c.b16 %v2225, %v2224
        %v2240 = vpack.c.b16 %v2227, %v2226
        %v2241 = vpack.c.b16 %v2229, %v2228
        %v2242 = vpack.c.b16 %v2231, %v2230
        %v2243 = vpack.c.b16 %v2233, %v2232
        %v2244 = vpack.c.b16 %v2235, %v2234
        %v2245 = vpack.c.b16 %v2237, %v2236
        %2254 = vmatprep.subr.bf16.mxu0 0
        %2255 = vmatpush1.bf16.msra.mxu0 %v2238
        %2256 = vmatprep.subr.bf16.mxu0 0
        %2257 = vmatpush1.bf16.msra.mxu0 %v2239
        %2258 = vmatprep.subr.bf16.mxu0 0
        %2259 = vmatpush1.bf16.msra.mxu0 %v2240
        %2260 = vmatprep.subr.bf16.mxu0 0
        %2261 = vmatpush1.bf16.msra.mxu0 %v2241
        %2262 = vmatprep.subr.bf16.mxu0 0
        %2263 = vmatpush1.bf16.msra.mxu0 %v2242
        %2264 = vmatprep.subr.bf16.mxu0 0
        %2265 = vmatpush1.bf16.msra.mxu0 %v2243
        %2266 = vmatprep.subr.bf16.mxu0 0
        %2267 = vmatpush1.bf16.msra.mxu0 %v2244
        %2268 = vmatprep.subr.bf16.mxu0 0
        %2269 = vmatpush1.bf16.msra.mxu0 %v2245
        %2270 = vmatprep.subr.bf16.mxu0 0
        %2271 = vmatpush1.bf16.msra.mxu0 0
        %2272 = vmatprep.subr.bf16.mxu0 0
        %2273 = vmatpush1.bf16.msra.mxu0 0
        %2274 = vmatprep.subr.bf16.mxu0 0
        %2275 = vmatpush1.bf16.msra.mxu0 0
        %2276 = vmatprep.subr.bf16.mxu0 0
        %2277 = vmatpush1.bf16.msra.mxu0 0
        %2278 = vmatprep.subr.bf16.mxu0 0
        %2279 = vmatpush1.bf16.msra.mxu0 0
        %2280 = vmatprep.subr.bf16.mxu0 0
        %2281 = vmatpush1.bf16.msra.mxu0 0
        %2282 = vmatprep.subr.bf16.mxu0 0
        %2283 = vmatpush1.bf16.msra.mxu0 0
        %2284 = vmatprep.subr.bf16.mxu0 0
        %2285 = vmatpush1.bf16.msra.mxu0 0
        %2286 = vmatprep.mubr.bf16.mxu0 0
        %2287 = vmatmul.mubr.bf16.gmra.mrb[0].mxu0 %v2165
        %v2288 = vpop.f32.mrb[0].mxu0
        %v2289 = vadd.f32 %v2204, %v2288
        %v2290 = vpop.f32.mrb[0].mxu0
        %v2291 = vpop.f32.mrb[0].mxu0
        %v2292 = vadd.f32 %v2204, %v2291
        %v2293 = vpop.f32.mrb[0].mxu0
        %2294 = vmatprep.mubr.bf16.mxu0 0
        %2295 = vmatmul.mubr.bf16.gmra.mrb[0].mxu0 %v2166
        %v2296 = vpop.f32.mrb[0].mxu0
        %v2297 = vadd.f32 %v2204, %v2296
        %v2298 = vpop.f32.mrb[0].mxu0
        %v2299 = vpop.f32.mrb[0].mxu0
        %v2300 = vadd.f32 %v2204, %v2299
        %v2301 = vpop.f32.mrb[0].mxu0
        %2302 = vmatprep.mubr.bf16.mxu0 0
        %2303 = vmatmul.mubr.bf16.gmra.mrb[0].mxu0 %v2167
        %v2304 = vpop.f32.mrb[0].mxu0
        %v2305 = vadd.f32 %v2204, %v2304
        %v2306 = vpop.f32.mrb[0].mxu0
        %v2307 = vpop.f32.mrb[0].mxu0
        %v2308 = vadd.f32 %v2204, %v2307
        %v2309 = vpop.f32.mrb[0].mxu0
        %2310 = vmatprep.mubr.bf16.mxu0 0
        %2311 = vmatmul.mubr.bf16.gmra.mrb[0].mxu0 %v2168
        %v2312 = vpop.f32.mrb[0].mxu0
        %v2313 = vadd.f32 %v2204, %v2312
        %v2314 = vpop.f32.mrb[0].mxu0
        %v2315 = vpop.f32.mrb[0].mxu0
        %v2316 = vadd.f32 %v2204, %v2315
        %v2317 = vpop.f32.mrb[0].mxu0
        %2318 = vmatprep.mubr.bf16.mxu0 0
        %2319 = vmatmul.mubr.bf16.gmra.mrb[0].mxu0 %v2169
        %v2320 = vpop.f32.mrb[0].mxu0
        %v2321 = vadd.f32 %v2204, %v2320
        %v2322 = vpop.f32.mrb[0].mxu0
        %v2323 = vpop.f32.mrb[0].mxu0
        %v2324 = vadd.f32 %v2204, %v2323
        %v2325 = vpop.f32.mrb[0].mxu0
        %2326 = vmatprep.mubr.bf16.mxu0 0
        %2327 = vmatmul.mubr.bf16.gmra.mrb[0].mxu0 %v2170
        %v2328 = vpop.f32.mrb[0].mxu0
        %v2329 = vadd.f32 %v2204, %v2328
        %v2330 = vpop.f32.mrb[0].mxu0
        %v2331 = vpop.f32.mrb[0].mxu0
        %v2332 = vadd.f32 %v2204, %v2331
        %v2333 = vpop.f32.mrb[0].mxu0
        %2334 = vmatprep.mubr.bf16.mxu0 0
        %2335 = vmatmul.mubr.bf16.gmra.mrb[0].mxu0 %v2171
        %v2336 = vpop.f32.mrb[0].mxu0
        %v2337 = vadd.f32 %v2204, %v2336
        %v2338 = vpop.f32.mrb[0].mxu0
        %v2339 = vpop.f32.mrb[0].mxu0
        %v2340 = vadd.f32 %v2204, %v2339
        %v2341 = vpop.f32.mrb[0].mxu0
        %2342 = vmatprep.mubr.bf16.mxu0 0
        %2343 = vmatmul.mubr.bf16.gmra.mrb[0].mxu0 %v2172
        %v2344 = vpop.f32.mrb[0].mxu0
        %v2345 = vadd.f32 %v2204, %v2344
        %v2346 = vpop.f32.mrb[0].mxu0
        %v2347 = vpop.f32.mrb[0].mxu0
        %v2348 = vadd.f32 %v2204, %v2347
        %v2349 = vpop.f32.mrb[0].mxu0
        %2350 = vmatprep.mubr.bf16.mxu0 0
        %2351 = vmatmul.mubr.bf16.gmra.mrb[0].mxu0 %v2173
        %v2352 = vpop.f32.mrb[0].mxu0
        %v2353 = vadd.f32 %v2204, %v2352
        %v2354 = vpop.f32.mrb[0].mxu0
        %v2355 = vpop.f32.mrb[0].mxu0
        %v2356 = vadd.f32 %v2204, %v2355
        %v2357 = vpop.f32.mrb[0].mxu0
        %2358 = vmatprep.mubr.bf16.mxu0 0
        %2359 = vmatmul.mubr.bf16.gmra.mrb[0].mxu0 %v2174
        %v2360 = vpop.f32.mrb[0].mxu0
        %v2361 = vadd.f32 %v2204, %v2360
        %v2362 = vpop.f32.mrb[0].mxu0
        %v2363 = vpop.f32.mrb[0].mxu0
        %v2364 = vadd.f32 %v2204, %v2363
        %v2365 = vpop.f32.mrb[0].mxu0
        %2366 = vmatprep.mubr.bf16.mxu0 0
        %2367 = vmatmul.mubr.bf16.gmra.mrb[0].mxu0 %v2175
        %v2368 = vpop.f32.mrb[0].mxu0
        %v2369 = vadd.f32 %v2204, %v2368
        %v2370 = vpop.f32.mrb[0].mxu0
        %v2371 = vpop.f32.mrb[0].mxu0
        %v2372 = vadd.f32 %v2204, %v2371
        %v2373 = vpop.f32.mrb[0].mxu0
        %2374 = vmatprep.mubr.bf16.mxu0 0
        %2375 = vmatmul.mubr.bf16.gmra.mrb[0].mxu0 %v2176
        %v2376 = vpop.f32.mrb[0].mxu0
        %v2377 = vadd.f32 %v2204, %v2376
        %v2378 = vpop.f32.mrb[0].mxu0
        %v2379 = vpop.f32.mrb[0].mxu0
        %v2380 = vadd.f32 %v2204, %v2379
        %v2381 = vpop.f32.mrb[0].mxu0
        %2382 = vmatprep.mubr.bf16.mxu0 0
        %2383 = vmatmul.mubr.bf16.gmra.mrb[0].mxu0 %v2177
        %v2384 = vpop.f32.mrb[0].mxu0
        %v2385 = vadd.f32 %v2204, %v2384
        %v2386 = vpop.f32.mrb[0].mxu0
        %v2387 = vpop.f32.mrb[0].mxu0
        %v2388 = vadd.f32 %v2204, %v2387
        %v2389 = vpop.f32.mrb[0].mxu0
        %2390 = vmatprep.mubr.bf16.mxu0 0
        %2391 = vmatmul.mubr.bf16.gmra.mrb[0].mxu0 %v2178
        %v2392 = vpop.f32.mrb[0].mxu0
        %v2393 = vadd.f32 %v2204, %v2392
        %v2394 = vpop.f32.mrb[0].mxu0
        %v2395 = vpop.f32.mrb[0].mxu0
        %v2396 = vadd.f32 %v2204, %v2395
        %v2397 = vpop.f32.mrb[0].mxu0
        %2398 = vmatprep.mubr.bf16.mxu0 0
        %2399 = vmatmul.mubr.bf16.gmra.mrb[0].mxu0 %v2179
        %v2400 = vpop.f32.mrb[0].mxu0
        %v2401 = vadd.f32 %v2204, %v2400
        %v2402 = vpop.f32.mrb[0].mxu0
        %v2403 = vpop.f32.mrb[0].mxu0
        %v2404 = vadd.f32 %v2204, %v2403
        %v2405 = vpop.f32.mrb[0].mxu0
        %2406 = vmatprep.mubr.bf16.mxu0 0
        %2407 = vmatmul.mubr.bf16.gmra.mrb[0].mxu0 %v2180
        %v2408 = vpop.f32.mrb[0].mxu0
        %v2409 = vadd.f32 %v2204, %v2408
        %v2410 = vpop.f32.mrb[0].mxu0
        %v2411 = vpop.f32.mrb[0].mxu0
        %v2412 = vadd.f32 %v2204, %v2411
        %v2413 = vpop.f32.mrb[0].mxu0
        %2414 = vdwg.mxu0
        %s2415 = scalar_lea.vmem [#allocation7], 448
        %v2416 = vld [vmem:[%s2415] sm:$0xf]
        %v2417 = vld [vmem:[%s2415 + $0x4] sm:$0xf]
        %v2418 = vld [vmem:[%s2415 + $0x8] sm:$0xf]
        %v2419 = vld [vmem:[%s2415 + $0xc] sm:$0xf]
        %v2420 = vld [vmem:[%s2415 + $0x10] sm:$0xf]
        %v2421 = vld [vmem:[%s2415 + $0x14] sm:$0xf]
        %v2422 = vld [vmem:[%s2415 + $0x18] sm:$0xf]
        %v2423 = vld [vmem:[%s2415 + $0x1c] sm:$0xf]
        %v2424 = vld [vmem:[%s2415 + $0x20] sm:$0xf]
        %v2425 = vld [vmem:[%s2415 + $0x24] sm:$0xf]
        %v2426 = vld [vmem:[%s2415 + $0x28] sm:$0xf]
        %v2427 = vld [vmem:[%s2415 + $0x2c] sm:$0xf]
        %v2428 = vld [vmem:[%s2415 + $0x30] sm:$0xf]
        %v2429 = vld [vmem:[%s2415 + $0x34] sm:$0xf]
        %v2430 = vld [vmem:[%s2415 + $0x38] sm:$0xf]
        %v2431 = vld [vmem:[%s2415 + $0x3c] sm:$0xf]
        %s2432 = scalar_lea.vmem [#allocation8], 7
        %v2433 = vld [vmem:[%s2432] sm:$0x1]
        %v2435 = vlaneseq
        %v2436 = vshrl.u32 %v2435, 7
        %v2437 = vsub.s32 0, %v2436
        %v2438 = vrot.slane %v2433, %v2437
        %v2456 = vunpack.c.l.b16 %v2416
        %v2457 = vunpack.c.l.b16 %v2417
        %v2458 = vunpack.c.l.b16 %v2418
        %v2459 = vunpack.c.l.b16 %v2419
        %v2460 = vunpack.c.l.b16 %v2420
        %v2461 = vunpack.c.l.b16 %v2421
        %v2462 = vunpack.c.l.b16 %v2422
        %v2463 = vunpack.c.l.b16 %v2423
        %v2464 = vunpack.c.l.b16 %v2424
        %v2465 = vunpack.c.l.b16 %v2425
        %v2466 = vunpack.c.l.b16 %v2426
        %v2467 = vunpack.c.l.b16 %v2427
        %v2468 = vunpack.c.l.b16 %v2428
        %v2469 = vunpack.c.l.b16 %v2429
        %v2470 = vunpack.c.l.b16 %v2430
        %v2471 = vunpack.c.l.b16 %v2431
        %v2472 = vpack.c.b16 %v2457, %v2456
        %v2473 = vpack.c.b16 %v2459, %v2458
        %v2474 = vpack.c.b16 %v2461, %v2460
        %v2475 = vpack.c.b16 %v2463, %v2462
        %v2476 = vpack.c.b16 %v2465, %v2464
        %v2477 = vpack.c.b16 %v2467, %v2466
        %v2478 = vpack.c.b16 %v2469, %v2468
        %v2479 = vpack.c.b16 %v2471, %v2470
        %2488 = vmatprep.subr.bf16.mxu0 0
        %2489 = vmatpush1.bf16.msra.mxu0 %v2472
        %2490 = vmatprep.subr.bf16.mxu0 0
        %2491 = vmatpush1.bf16.msra.mxu0 %v2473
        %2492 = vmatprep.subr.bf16.mxu0 0
        %2493 = vmatpush1.bf16.msra.mxu0 %v2474
        %2494 = vmatprep.subr.bf16.mxu0 0
        %2495 = vmatpush1.bf16.msra.mxu0 %v2475
        %2496 = vmatprep.subr.bf16.mxu0 0
        %2497 = vmatpush1.bf16.msra.mxu0 %v2476
        %2498 = vmatprep.subr.bf16.mxu0 0
        %2499 = vmatpush1.bf16.msra.mxu0 %v2477
        %2500 = vmatprep.subr.bf16.mxu0 0
        %2501 = vmatpush1.bf16.msra.mxu0 %v2478
        %2502 = vmatprep.subr.bf16.mxu0 0
        %2503 = vmatpush1.bf16.msra.mxu0 %v2479
        %2504 = vmatprep.subr.bf16.mxu0 0
        %2505 = vmatpush1.bf16.msra.mxu0 0
        %2506 = vmatprep.subr.bf16.mxu0 0
        %2507 = vmatpush1.bf16.msra.mxu0 0
        %2508 = vmatprep.subr.bf16.mxu0 0
        %2509 = vmatpush1.bf16.msra.mxu0 0
        %2510 = vmatprep.subr.bf16.mxu0 0
        %2511 = vmatpush1.bf16.msra.mxu0 0
        %2512 = vmatprep.subr.bf16.mxu0 0
        %2513 = vmatpush1.bf16.msra.mxu0 0
        %2514 = vmatprep.subr.bf16.mxu0 0
        %2515 = vmatpush1.bf16.msra.mxu0 0
        %2516 = vmatprep.subr.bf16.mxu0 0
        %2517 = vmatpush1.bf16.msra.mxu0 0
        %2518 = vmatprep.subr.bf16.mxu0 0
        %2519 = vmatpush1.bf16.msra.mxu0 0
        %2520 = vmatprep.mubr.bf16.mxu0 0
        %2521 = vmatmul.mubr.bf16.gmra.mrb[0].mxu0 %v2165
        %v2522 = vpop.f32.mrb[0].mxu0
        %v2523 = vadd.f32 %v2438, %v2522
        %v2524 = vpop.f32.mrb[0].mxu0
        %v2525 = vpop.f32.mrb[0].mxu0
        %v2526 = vadd.f32 %v2438, %v2525
        %v2527 = vpop.f32.mrb[0].mxu0
        %2528 = vmatprep.mubr.bf16.mxu0 0
        %2529 = vmatmul.mubr.bf16.gmra.mrb[0].mxu0 %v2166
        %v2530 = vpop.f32.mrb[0].mxu0
        %v2531 = vadd.f32 %v2438, %v2530
        %v2532 = vpop.f32.mrb[0].mxu0
        %v2533 = vpop.f32.mrb[0].mxu0
        %v2534 = vadd.f32 %v2438, %v2533
        %v2535 = vpop.f32.mrb[0].mxu0
        %2536 = vmatprep.mubr.bf16.mxu0 0
        %2537 = vmatmul.mubr.bf16.gmra.mrb[0].mxu0 %v2167
        %v2538 = vpop.f32.mrb[0].mxu0
        %v2539 = vadd.f32 %v2438, %v2538
        %v2540 = vpop.f32.mrb[0].mxu0
        %v2541 = vpop.f32.mrb[0].mxu0
        %v2542 = vadd.f32 %v2438, %v2541
        %v2543 = vpop.f32.mrb[0].mxu0
        %2544 = vmatprep.mubr.bf16.mxu0 0
        %2545 = vmatmul.mubr.bf16.gmra.mrb[0].mxu0 %v2168
        %v2546 = vpop.f32.mrb[0].mxu0
        %v2547 = vadd.f32 %v2438, %v2546
        %v2548 = vpop.f32.mrb[0].mxu0
        %v2549 = vpop.f32.mrb[0].mxu0
        %v2550 = vadd.f32 %v2438, %v2549
        %v2551 = vpop.f32.mrb[0].mxu0
        %2552 = vmatprep.mubr.bf16.mxu0 0
        %2553 = vmatmul.mubr.bf16.gmra.mrb[0].mxu0 %v2169
        %v2554 = vpop.f32.mrb[0].mxu0
        %v2555 = vadd.f32 %v2438, %v2554
        %v2556 = vpop.f32.mrb[0].mxu0
        %v2557 = vpop.f32.mrb[0].mxu0
        %v2558 = vadd.f32 %v2438, %v2557
        %v2559 = vpop.f32.mrb[0].mxu0
        %2560 = vmatprep.mubr.bf16.mxu0 0
        %2561 = vmatmul.mubr.bf16.gmra.mrb[0].mxu0 %v2170
        %v2562 = vpop.f32.mrb[0].mxu0
        %v2563 = vadd.f32 %v2438, %v2562
        %v2564 = vpop.f32.mrb[0].mxu0
        %v2565 = vpop.f32.mrb[0].mxu0
        %v2566 = vadd.f32 %v2438, %v2565
        %v2567 = vpop.f32.mrb[0].mxu0
        %2568 = vmatprep.mubr.bf16.mxu0 0
        %2569 = vmatmul.mubr.bf16.gmra.mrb[0].mxu0 %v2171
        %v2570 = vpop.f32.mrb[0].mxu0
        %v2571 = vadd.f32 %v2438, %v2570
        %v2572 = vpop.f32.mrb[0].mxu0
        %v2573 = vpop.f32.mrb[0].mxu0
        %v2574 = vadd.f32 %v2438, %v2573
        %v2575 = vpop.f32.mrb[0].mxu0
        %2576 = vmatprep.mubr.bf16.mxu0 0
        %2577 = vmatmul.mubr.bf16.gmra.mrb[0].mxu0 %v2172
        %v2578 = vpop.f32.mrb[0].mxu0
        %v2579 = vadd.f32 %v2438, %v2578
        %v2580 = vpop.f32.mrb[0].mxu0
        %v2581 = vpop.f32.mrb[0].mxu0
        %v2582 = vadd.f32 %v2438, %v2581
        %v2583 = vpop.f32.mrb[0].mxu0
        %2584 = vmatprep.mubr.bf16.mxu0 0
        %2585 = vmatmul.mubr.bf16.gmra.mrb[0].mxu0 %v2173
        %v2586 = vpop.f32.mrb[0].mxu0
        %v2587 = vadd.f32 %v2438, %v2586
        %v2588 = vpop.f32.mrb[0].mxu0
        %v2589 = vpop.f32.mrb[0].mxu0
        %v2590 = vadd.f32 %v2438, %v2589
        %v2591 = vpop.f32.mrb[0].mxu0
        %2592 = vmatprep.mubr.bf16.mxu0 0
        %2593 = vmatmul.mubr.bf16.gmra.mrb[0].mxu0 %v2174
        %v2594 = vpop.f32.mrb[0].mxu0
        %v2595 = vadd.f32 %v2438, %v2594
        %v2596 = vpop.f32.mrb[0].mxu0
        %v2597 = vpop.f32.mrb[0].mxu0
        %v2598 = vadd.f32 %v2438, %v2597
        %v2599 = vpop.f32.mrb[0].mxu0
        %2600 = vmatprep.mubr.bf16.mxu0 0
        %2601 = vmatmul.mubr.bf16.gmra.mrb[0].mxu0 %v2175
        %v2602 = vpop.f32.mrb[0].mxu0
        %v2603 = vadd.f32 %v2438, %v2602
        %v2604 = vpop.f32.mrb[0].mxu0
        %v2605 = vpop.f32.mrb[0].mxu0
        %v2606 = vadd.f32 %v2438, %v2605
        %v2607 = vpop.f32.mrb[0].mxu0
        %2608 = vmatprep.mubr.bf16.mxu0 0
        %2609 = vmatmul.mubr.bf16.gmra.mrb[0].mxu0 %v2176
        %v2610 = vpop.f32.mrb[0].mxu0
        %v2611 = vadd.f32 %v2438, %v2610
        %v2612 = vpop.f32.mrb[0].mxu0
        %v2613 = vpop.f32.mrb[0].mxu0
        %v2614 = vadd.f32 %v2438, %v2613
        %v2615 = vpop.f32.mrb[0].mxu0
        %2616 = vmatprep.mubr.bf16.mxu0 0
        %2617 = vmatmul.mubr.bf16.gmra.mrb[0].mxu0 %v2177
        %v2618 = vpop.f32.mrb[0].mxu0
        %v2619 = vadd.f32 %v2438, %v2618
        %v2620 = vpop.f32.mrb[0].mxu0
        %v2621 = vpop.f32.mrb[0].mxu0
        %v2622 = vadd.f32 %v2438, %v2621
        %v2623 = vpop.f32.mrb[0].mxu0
        %2624 = vmatprep.mubr.bf16.mxu0 0
        %2625 = vmatmul.mubr.bf16.gmra.mrb[0].mxu0 %v2178
        %v2626 = vpop.f32.mrb[0].mxu0
        %v2627 = vadd.f32 %v2438, %v2626
        %v2628 = vpop.f32.mrb[0].mxu0
        %v2629 = vpop.f32.mrb[0].mxu0
        %v2630 = vadd.f32 %v2438, %v2629
        %v2631 = vpop.f32.mrb[0].mxu0
        %2632 = vmatprep.mubr.bf16.mxu0 0
        %2633 = vmatmul.mubr.bf16.gmra.mrb[0].mxu0 %v2179
        %v2634 = vpop.f32.mrb[0].mxu0
        %v2635 = vadd.f32 %v2438, %v2634
        %v2636 = vpop.f32.mrb[0].mxu0
        %v2637 = vpop.f32.mrb[0].mxu0
        %v2638 = vadd.f32 %v2438, %v2637
        %v2639 = vpop.f32.mrb[0].mxu0
        %2640 = vmatprep.mubr.bf16.mxu0 0
        %2641 = vmatmul.mubr.bf16.gmra.mrb[0].mxu0 %v2180
        %v2642 = vpop.f32.mrb[0].mxu0
        %v2643 = vadd.f32 %v2438, %v2642
        %v2644 = vpop.f32.mrb[0].mxu0
        %v2645 = vpop.f32.mrb[0].mxu0
        %v2646 = vadd.f32 %v2438, %v2645
        %v2647 = vpop.f32.mrb[0].mxu0
        %2648 = vdwg.mxu0
        %2649 = vst [vmem:[%s349] sm:$0xff] %v2289
        %2650 = vst [vmem:[%s349 + $0x8] sm:$0xff] %v2292
        %2651 = vst [vmem:[%s349 + $0x10] sm:$0xff] %v2297
        %2652 = vst [vmem:[%s349 + $0x18] sm:$0xff] %v2300
        %2653 = vst [vmem:[%s349 + $0x20] sm:$0xff] %v2305
        %2654 = vst [vmem:[%s349 + $0x28] sm:$0xff] %v2308
        %2655 = vst [vmem:[%s349 + $0x30] sm:$0xff] %v2313
        %2656 = vst [vmem:[%s349 + $0x38] sm:$0xff] %v2316
        %2657 = vst [vmem:[%s349 + $0x40] sm:$0xff] %v2321
        %2658 = vst [vmem:[%s349 + $0x48] sm:$0xff] %v2324
        %2659 = vst [vmem:[%s349 + $0x50] sm:$0xff] %v2329
        %2660 = vst [vmem:[%s349 + $0x58] sm:$0xff] %v2332
        %2661 = vst [vmem:[%s349 + $0x60] sm:$0xff] %v2337
        %2662 = vst [vmem:[%s349 + $0x68] sm:$0xff] %v2340
        %2663 = vst [vmem:[%s349 + $0x70] sm:$0xff] %v2345
        %2664 = vst [vmem:[%s349 + $0x78] sm:$0xff] %v2348
        %2665 = vst [vmem:[%s349 + $0x80] sm:$0xff] %v2353
        %2666 = vst [vmem:[%s349 + $0x88] sm:$0xff] %v2356
        %2667 = vst [vmem:[%s349 + $0x90] sm:$0xff] %v2361
        %2668 = vst [vmem:[%s349 + $0x98] sm:$0xff] %v2364
        %2669 = vst [vmem:[%s349 + $0xa0] sm:$0xff] %v2369
        %2670 = vst [vmem:[%s349 + $0xa8] sm:$0xff] %v2372
        %2671 = vst [vmem:[%s349 + $0xb0] sm:$0xff] %v2377
        %2672 = vst [vmem:[%s349 + $0xb8] sm:$0xff] %v2380
        %2673 = vst [vmem:[%s349 + $0xc0] sm:$0xff] %v2385
        %2674 = vst [vmem:[%s349 + $0xc8] sm:$0xff] %v2388
        %2675 = vst [vmem:[%s349 + $0xd0] sm:$0xff] %v2393
        %2676 = vst [vmem:[%s349 + $0xd8] sm:$0xff] %v2396
        %2677 = vst [vmem:[%s349 + $0xe0] sm:$0xff] %v2401
        %2678 = vst [vmem:[%s349 + $0xe8] sm:$0xff] %v2404
        %2679 = vst [vmem:[%s349 + $0xf0] sm:$0xff] %v2409
        %2680 = vst [vmem:[%s349 + $0xf8] sm:$0xff] %v2412
        %2681 = vst [vmem:[%s356] sm:$0xff] %v2523
        %2682 = vst [vmem:[%s356 + $0x8] sm:$0xff] %v2526
        %2683 = vst [vmem:[%s356 + $0x10] sm:$0xff] %v2531
        %2684 = vst [vmem:[%s356 + $0x18] sm:$0xff] %v2534
        %2685 = vst [vmem:[%s356 + $0x20] sm:$0xff] %v2539
        %2686 = vst [vmem:[%s356 + $0x28] sm:$0xff] %v2542
        %2687 = vst [vmem:[%s356 + $0x30] sm:$0xff] %v2547
        %2688 = vst [vmem:[%s356 + $0x38] sm:$0xff] %v2550
        %2689 = vst [vmem:[%s356 + $0x40] sm:$0xff] %v2555
        %2690 = vst [vmem:[%s356 + $0x48] sm:$0xff] %v2558
        %2691 = vst [vmem:[%s356 + $0x50] sm:$0xff] %v2563
        %2692 = vst [vmem:[%s356 + $0x58] sm:$0xff] %v2566
        %2693 = vst [vmem:[%s356 + $0x60] sm:$0xff] %v2571
        %2694 = vst [vmem:[%s356 + $0x68] sm:$0xff] %v2574
        %2695 = vst [vmem:[%s356 + $0x70] sm:$0xff] %v2579
        %2696 = vst [vmem:[%s356 + $0x78] sm:$0xff] %v2582
        %2697 = vst [vmem:[%s356 + $0x80] sm:$0xff] %v2587
        %2698 = vst [vmem:[%s356 + $0x88] sm:$0xff] %v2590
        %2699 = vst [vmem:[%s356 + $0x90] sm:$0xff] %v2595
        %2700 = vst [vmem:[%s356 + $0x98] sm:$0xff] %v2598
        %2701 = vst [vmem:[%s356 + $0xa0] sm:$0xff] %v2603
        %2702 = vst [vmem:[%s356 + $0xa8] sm:$0xff] %v2606
        %2703 = vst [vmem:[%s356 + $0xb0] sm:$0xff] %v2611
        %2704 = vst [vmem:[%s356 + $0xb8] sm:$0xff] %v2614
        %2705 = vst [vmem:[%s356 + $0xc0] sm:$0xff] %v2619
        %2706 = vst [vmem:[%s356 + $0xc8] sm:$0xff] %v2622
        %2707 = vst [vmem:[%s356 + $0xd0] sm:$0xff] %v2627
        %2708 = vst [vmem:[%s356 + $0xd8] sm:$0xff] %v2630
        %2709 = vst [vmem:[%s356 + $0xe0] sm:$0xff] %v2635
        %2710 = vst [vmem:[%s356 + $0xe8] sm:$0xff] %v2638
        %2711 = vst [vmem:[%s356 + $0xf0] sm:$0xff] %v2643
        %2712 = vst [vmem:[%s356 + $0xf8] sm:$0xff] %v2646
        %v2713 = vmul.f32 %v2523, 0.5
        %v2714 = vmul.f32 %v2526, 0.5
        %v2715 = vmul.f32 %v2531, 0.5
        %v2716 = vmul.f32 %v2534, 0.5
        %v2717 = vmul.f32 %v2539, 0.5
        %v2718 = vmul.f32 %v2542, 0.5
        %v2719 = vmul.f32 %v2547, 0.5
        %v2720 = vmul.f32 %v2550, 0.5
        %v2721 = vmul.f32 %v2555, 0.5
        %v2722 = vmul.f32 %v2558, 0.5
        %v2723 = vmul.f32 %v2563, 0.5
        %v2724 = vmul.f32 %v2566, 0.5
        %v2725 = vmul.f32 %v2571, 0.5
        %v2726 = vmul.f32 %v2574, 0.5
        %v2727 = vmul.f32 %v2579, 0.5
        %v2728 = vmul.f32 %v2582, 0.5
        %v2729 = vmul.f32 %v2587, 0.5
        %v2730 = vmul.f32 %v2590, 0.5
        %v2731 = vmul.f32 %v2595, 0.5
        %v2732 = vmul.f32 %v2598, 0.5
        %v2733 = vmul.f32 %v2603, 0.5
        %v2734 = vmul.f32 %v2606, 0.5
        %v2735 = vmul.f32 %v2611, 0.5
        %v2736 = vmul.f32 %v2614, 0.5
        %v2737 = vmul.f32 %v2619, 0.5
        %v2738 = vmul.f32 %v2622, 0.5
        %v2739 = vmul.f32 %v2627, 0.5
        %v2740 = vmul.f32 %v2630, 0.5
        %v2741 = vmul.f32 %v2635, 0.5
        %v2742 = vmul.f32 %v2638, 0.5
        %v2743 = vmul.f32 %v2643, 0.5
        %v2744 = vmul.f32 %v2646, 0.5
        %v2745 = vmul.f32 %v2713, 1.442695
        %v2746 = vpow.pop %v2745
        %v2747 = vmul.f32 %v2714, 1.442695
        %v2748 = vpow.pop %v2747
        %v2749 = vmul.f32 %v2715, 1.442695
        %v2750 = vpow.pop %v2749
        %v2751 = vmul.f32 %v2716, 1.442695
        %v2752 = vpow.pop %v2751
        %v2753 = vmul.f32 %v2717, 1.442695
        %v2754 = vpow.pop %v2753
        %v2755 = vmul.f32 %v2718, 1.442695
        %v2756 = vpow.pop %v2755
        %v2757 = vmul.f32 %v2719, 1.442695
        %v2758 = vpow.pop %v2757
        %v2759 = vmul.f32 %v2720, 1.442695
        %v2760 = vpow.pop %v2759
        %v2761 = vmul.f32 %v2721, 1.442695
        %v2762 = vpow.pop %v2761
        %v2763 = vmul.f32 %v2722, 1.442695
        %v2764 = vpow.pop %v2763
        %v2765 = vmul.f32 %v2723, 1.442695
        %v2766 = vpow.pop %v2765
        %v2767 = vmul.f32 %v2724, 1.442695
        %v2768 = vpow.pop %v2767
        %v2769 = vmul.f32 %v2725, 1.442695
        %v2770 = vpow.pop %v2769
        %v2771 = vmul.f32 %v2726, 1.442695
        %v2772 = vpow.pop %v2771
        %v2773 = vmul.f32 %v2727, 1.442695
        %v2774 = vpow.pop %v2773
        %v2775 = vmul.f32 %v2728, 1.442695
        %v2776 = vpow.pop %v2775
        %v2777 = vmul.f32 %v2729, 1.442695
        %v2778 = vpow.pop %v2777
        %v2779 = vmul.f32 %v2730, 1.442695
        %v2780 = vpow.pop %v2779
        %v2781 = vmul.f32 %v2731, 1.442695
        %v2782 = vpow.pop %v2781
        %v2783 = vmul.f32 %v2732, 1.442695
        %v2784 = vpow.pop %v2783
        %v2785 = vmul.f32 %v2733, 1.442695
        %v2786 = vpow.pop %v2785
        %v2787 = vmul.f32 %v2734, 1.442695
        %v2788 = vpow.pop %v2787
        %v2789 = vmul.f32 %v2735, 1.442695
        %v2790 = vpow.pop %v2789
        %v2791 = vmul.f32 %v2736, 1.442695
        %v2792 = vpow.pop %v2791
        %v2793 = vmul.f32 %v2737, 1.442695
        %v2794 = vpow.pop %v2793
        %v2795 = vmul.f32 %v2738, 1.442695
        %v2796 = vpow.pop %v2795
        %v2797 = vmul.f32 %v2739, 1.442695
        %v2798 = vpow.pop %v2797
        %v2799 = vmul.f32 %v2740, 1.442695
        %v2800 = vpow.pop %v2799
        %v2801 = vmul.f32 %v2741, 1.442695
        %v2802 = vpow.pop %v2801
        %v2803 = vmul.f32 %v2742, 1.442695
        %v2804 = vpow.pop %v2803
        %v2805 = vmul.f32 %v2743, 1.442695
        %v2806 = vpow.pop %v2805
        %v2807 = vmul.f32 %v2744, 1.442695
        %v2808 = vpow.pop %v2807
        %v2809 = vld [vmem:[%s305] sm:$0xff]
        %v2810 = vld [vmem:[%s305 + $0x8] sm:$0xff]
        %v2811 = vld [vmem:[%s305 + $0x10] sm:$0xff]
        %v2812 = vld [vmem:[%s305 + $0x18] sm:$0xff]
        %v2813 = vld [vmem:[%s305 + $0x20] sm:$0xff]
        %v2814 = vld [vmem:[%s305 + $0x28] sm:$0xff]
        %v2815 = vld [vmem:[%s305 + $0x30] sm:$0xff]
        %v2816 = vld [vmem:[%s305 + $0x38] sm:$0xff]
        %v2817 = vld [vmem:[%s305 + $0x40] sm:$0xff]
        %v2818 = vld [vmem:[%s305 + $0x48] sm:$0xff]
        %v2819 = vld [vmem:[%s305 + $0x50] sm:$0xff]
        %v2820 = vld [vmem:[%s305 + $0x58] sm:$0xff]
        %v2821 = vld [vmem:[%s305 + $0x60] sm:$0xff]
        %v2822 = vld [vmem:[%s305 + $0x68] sm:$0xff]
        %v2823 = vld [vmem:[%s305 + $0x70] sm:$0xff]
        %v2824 = vld [vmem:[%s305 + $0x78] sm:$0xff]
        %v2825 = vld [vmem:[%s305 + $0x80] sm:$0xff]
        %v2826 = vld [vmem:[%s305 + $0x88] sm:$0xff]
        %v2827 = vld [vmem:[%s305 + $0x90] sm:$0xff]
        %v2828 = vld [vmem:[%s305 + $0x98] sm:$0xff]
        %v2829 = vld [vmem:[%s305 + $0xa0] sm:$0xff]
        %v2830 = vld [vmem:[%s305 + $0xa8] sm:$0xff]
        %v2831 = vld [vmem:[%s305 + $0xb0] sm:$0xff]
        %v2832 = vld [vmem:[%s305 + $0xb8] sm:$0xff]
        %v2833 = vld [vmem:[%s305 + $0xc0] sm:$0xff]
        %v2834 = vld [vmem:[%s305 + $0xc8] sm:$0xff]
        %v2835 = vld [vmem:[%s305 + $0xd0] sm:$0xff]
        %v2836 = vld [vmem:[%s305 + $0xd8] sm:$0xff]
        %v2837 = vld [vmem:[%s305 + $0xe0] sm:$0xff]
        %v2838 = vld [vmem:[%s305 + $0xe8] sm:$0xff]
        %v2839 = vld [vmem:[%s305 + $0xf0] sm:$0xff]
        %v2840 = vld [vmem:[%s305 + $0xf8] sm:$0xff]
        %v2841 = vmul.f32 %v2746, %v2809
        %v2842 = vmul.f32 %v2748, %v2810
        %v2843 = vmul.f32 %v2750, %v2811
        %v2844 = vmul.f32 %v2752, %v2812
        %v2845 = vmul.f32 %v2754, %v2813
        %v2846 = vmul.f32 %v2756, %v2814
        %v2847 = vmul.f32 %v2758, %v2815
        %v2848 = vmul.f32 %v2760, %v2816
        %v2849 = vmul.f32 %v2762, %v2817
        %v2850 = vmul.f32 %v2764, %v2818
        %v2851 = vmul.f32 %v2766, %v2819
        %v2852 = vmul.f32 %v2768, %v2820
        %v2853 = vmul.f32 %v2770, %v2821
        %v2854 = vmul.f32 %v2772, %v2822
        %v2855 = vmul.f32 %v2774, %v2823
        %v2856 = vmul.f32 %v2776, %v2824
        %v2857 = vmul.f32 %v2778, %v2825
        %v2858 = vmul.f32 %v2780, %v2826
        %v2859 = vmul.f32 %v2782, %v2827
        %v2860 = vmul.f32 %v2784, %v2828
        %v2861 = vmul.f32 %v2786, %v2829
        %v2862 = vmul.f32 %v2788, %v2830
        %v2863 = vmul.f32 %v2790, %v2831
        %v2864 = vmul.f32 %v2792, %v2832
        %v2865 = vmul.f32 %v2794, %v2833
        %v2866 = vmul.f32 %v2796, %v2834
        %v2867 = vmul.f32 %v2798, %v2835
        %v2868 = vmul.f32 %v2800, %v2836
        %v2869 = vmul.f32 %v2802, %v2837
        %v2870 = vmul.f32 %v2804, %v2838
        %v2871 = vmul.f32 %v2806, %v2839
        %v2872 = vmul.f32 %v2808, %v2840
        %v2873 = vadd.f32 %v2289, %v2841
        %v2874 = vadd.f32 %v2292, %v2842
        %v2875 = vadd.f32 %v2297, %v2843
        %v2876 = vadd.f32 %v2300, %v2844
        %v2877 = vadd.f32 %v2305, %v2845
        %v2878 = vadd.f32 %v2308, %v2846
        %v2879 = vadd.f32 %v2313, %v2847
        %v2880 = vadd.f32 %v2316, %v2848
        %v2881 = vadd.f32 %v2321, %v2849
        %v2882 = vadd.f32 %v2324, %v2850
        %v2883 = vadd.f32 %v2329, %v2851
        %v2884 = vadd.f32 %v2332, %v2852
        %v2885 = vadd.f32 %v2337, %v2853
        %v2886 = vadd.f32 %v2340, %v2854
        %v2887 = vadd.f32 %v2345, %v2855
        %v2888 = vadd.f32 %v2348, %v2856
        %v2889 = vadd.f32 %v2353, %v2857
        %v2890 = vadd.f32 %v2356, %v2858
        %v2891 = vadd.f32 %v2361, %v2859
        %v2892 = vadd.f32 %v2364, %v2860
        %v2893 = vadd.f32 %v2369, %v2861
        %v2894 = vadd.f32 %v2372, %v2862
        %v2895 = vadd.f32 %v2377, %v2863
        %v2896 = vadd.f32 %v2380, %v2864
        %v2897 = vadd.f32 %v2385, %v2865
        %v2898 = vadd.f32 %v2388, %v2866
        %v2899 = vadd.f32 %v2393, %v2867
        %v2900 = vadd.f32 %v2396, %v2868
        %v2901 = vadd.f32 %v2401, %v2869
        %v2902 = vadd.f32 %v2404, %v2870
        %v2903 = vadd.f32 %v2409, %v2871
        %v2904 = vadd.f32 %v2412, %v2872
        %v2905 = vpack.c.bf16 %v2874, %v2873
        %v2906 = vpack.c.bf16 %v2876, %v2875
        %v2907 = vpack.c.bf16 %v2878, %v2877
        %v2908 = vpack.c.bf16 %v2880, %v2879
        %v2909 = vpack.c.bf16 %v2882, %v2881
        %v2910 = vpack.c.bf16 %v2884, %v2883
        %v2911 = vpack.c.bf16 %v2886, %v2885
        %v2912 = vpack.c.bf16 %v2888, %v2887
        %v2913 = vpack.c.bf16 %v2890, %v2889
        %v2914 = vpack.c.bf16 %v2892, %v2891
        %v2915 = vpack.c.bf16 %v2894, %v2893
        %v2916 = vpack.c.bf16 %v2896, %v2895
        %v2917 = vpack.c.bf16 %v2898, %v2897
        %v2918 = vpack.c.bf16 %v2900, %v2899
        %v2919 = vpack.c.bf16 %v2902, %v2901
        %v2920 = vpack.c.bf16 %v2904, %v2903
        %s2921 = scalar_lea.vmem [#allocation7], 512
        %v2922 = vld [vmem:[%s2921] sm:$0xf]
        %v2923 = vld [vmem:[%s2921 + $0x4] sm:$0xf]
        %v2924 = vld [vmem:[%s2921 + $0x8] sm:$0xf]
        %v2925 = vld [vmem:[%s2921 + $0xc] sm:$0xf]
        %v2926 = vld [vmem:[%s2921 + $0x10] sm:$0xf]
        %v2927 = vld [vmem:[%s2921 + $0x14] sm:$0xf]
        %v2928 = vld [vmem:[%s2921 + $0x18] sm:$0xf]
        %v2929 = vld [vmem:[%s2921 + $0x1c] sm:$0xf]
        %v2930 = vld [vmem:[%s2921 + $0x20] sm:$0xf]
        %v2931 = vld [vmem:[%s2921 + $0x24] sm:$0xf]
        %v2932 = vld [vmem:[%s2921 + $0x28] sm:$0xf]
        %v2933 = vld [vmem:[%s2921 + $0x2c] sm:$0xf]
        %v2934 = vld [vmem:[%s2921 + $0x30] sm:$0xf]
        %v2935 = vld [vmem:[%s2921 + $0x34] sm:$0xf]
        %v2936 = vld [vmem:[%s2921 + $0x38] sm:$0xf]
        %v2937 = vld [vmem:[%s2921 + $0x3c] sm:$0xf]
        %s2938 = scalar_lea.vmem [#allocation8], 8
        %v2939 = vld [vmem:[%s2938] sm:$0x1]
        %v2941 = vlaneseq
        %v2942 = vshrl.u32 %v2941, 7
        %v2943 = vsub.s32 0, %v2942
        %v2944 = vrot.slane %v2939, %v2943
        %v2962 = vunpack.c.l.b16 %v2922
        %v2963 = vunpack.c.l.b16 %v2923
        %v2964 = vunpack.c.l.b16 %v2924
        %v2965 = vunpack.c.l.b16 %v2925
        %v2966 = vunpack.c.l.b16 %v2926
        %v2967 = vunpack.c.l.b16 %v2927
        %v2968 = vunpack.c.l.b16 %v2928
        %v2969 = vunpack.c.l.b16 %v2929
        %v2970 = vunpack.c.l.b16 %v2930
        %v2971 = vunpack.c.l.b16 %v2931
        %v2972 = vunpack.c.l.b16 %v2932
        %v2973 = vunpack.c.l.b16 %v2933
        %v2974 = vunpack.c.l.b16 %v2934
        %v2975 = vunpack.c.l.b16 %v2935
        %v2976 = vunpack.c.l.b16 %v2936
        %v2977 = vunpack.c.l.b16 %v2937
        %v2978 = vpack.c.b16 %v2963, %v2962
        %v2979 = vpack.c.b16 %v2965, %v2964
        %v2980 = vpack.c.b16 %v2967, %v2966
        %v2981 = vpack.c.b16 %v2969, %v2968
        %v2982 = vpack.c.b16 %v2971, %v2970
        %v2983 = vpack.c.b16 %v2973, %v2972
        %v2984 = vpack.c.b16 %v2975, %v2974
        %v2985 = vpack.c.b16 %v2977, %v2976
        %2994 = vmatprep.subr.bf16.mxu0 0
        %2995 = vmatpush1.bf16.msra.mxu0 %v2978
        %2996 = vmatprep.subr.bf16.mxu0 0
        %2997 = vmatpush1.bf16.msra.mxu0 %v2979
        %2998 = vmatprep.subr.bf16.mxu0 0
        %2999 = vmatpush1.bf16.msra.mxu0 %v2980
        %3000 = vmatprep.subr.bf16.mxu0 0
        %3001 = vmatpush1.bf16.msra.mxu0 %v2981
        %3002 = vmatprep.subr.bf16.mxu0 0
        %3003 = vmatpush1.bf16.msra.mxu0 %v2982
        %3004 = vmatprep.subr.bf16.mxu0 0
        %3005 = vmatpush1.bf16.msra.mxu0 %v2983
        %3006 = vmatprep.subr.bf16.mxu0 0
        %3007 = vmatpush1.bf16.msra.mxu0 %v2984
        %3008 = vmatprep.subr.bf16.mxu0 0
        %3009 = vmatpush1.bf16.msra.mxu0 %v2985
        %3010 = vmatprep.subr.bf16.mxu0 0
        %3011 = vmatpush1.bf16.msra.mxu0 0
        %3012 = vmatprep.subr.bf16.mxu0 0
        %3013 = vmatpush1.bf16.msra.mxu0 0
        %3014 = vmatprep.subr.bf16.mxu0 0
        %3015 = vmatpush1.bf16.msra.mxu0 0
        %3016 = vmatprep.subr.bf16.mxu0 0
        %3017 = vmatpush1.bf16.msra.mxu0 0
        %3018 = vmatprep.subr.bf16.mxu0 0
        %3019 = vmatpush1.bf16.msra.mxu0 0
        %3020 = vmatprep.subr.bf16.mxu0 0
        %3021 = vmatpush1.bf16.msra.mxu0 0
        %3022 = vmatprep.subr.bf16.mxu0 0
        %3023 = vmatpush1.bf16.msra.mxu0 0
        %3024 = vmatprep.subr.bf16.mxu0 0
        %3025 = vmatpush1.bf16.msra.mxu0 0
        %3026 = vmatprep.mubr.bf16.mxu0 0
        %3027 = vmatmul.mubr.bf16.gmra.mrb[0].mxu0 %v2905
        %v3028 = vpop.f32.mrb[0].mxu0
        %v3029 = vadd.f32 %v2944, %v3028
        %v3030 = vpop.f32.mrb[0].mxu0
        %v3031 = vpop.f32.mrb[0].mxu0
        %v3032 = vadd.f32 %v2944, %v3031
        %v3033 = vpop.f32.mrb[0].mxu0
        %3034 = vmatprep.mubr.bf16.mxu0 0
        %3035 = vmatmul.mubr.bf16.gmra.mrb[0].mxu0 %v2906
        %v3036 = vpop.f32.mrb[0].mxu0
        %v3037 = vadd.f32 %v2944, %v3036
        %v3038 = vpop.f32.mrb[0].mxu0
        %v3039 = vpop.f32.mrb[0].mxu0
        %v3040 = vadd.f32 %v2944, %v3039
        %v3041 = vpop.f32.mrb[0].mxu0
        %3042 = vmatprep.mubr.bf16.mxu0 0
        %3043 = vmatmul.mubr.bf16.gmra.mrb[0].mxu0 %v2907
        %v3044 = vpop.f32.mrb[0].mxu0
        %v3045 = vadd.f32 %v2944, %v3044
        %v3046 = vpop.f32.mrb[0].mxu0
        %v3047 = vpop.f32.mrb[0].mxu0
        %v3048 = vadd.f32 %v2944, %v3047
        %v3049 = vpop.f32.mrb[0].mxu0
        %3050 = vmatprep.mubr.bf16.mxu0 0
        %3051 = vmatmul.mubr.bf16.gmra.mrb[0].mxu0 %v2908
        %v3052 = vpop.f32.mrb[0].mxu0
        %v3053 = vadd.f32 %v2944, %v3052
        %v3054 = vpop.f32.mrb[0].mxu0
        %v3055 = vpop.f32.mrb[0].mxu0
        %v3056 = vadd.f32 %v2944, %v3055
        %v3057 = vpop.f32.mrb[0].mxu0
        %3058 = vmatprep.mubr.bf16.mxu0 0
        %3059 = vmatmul.mubr.bf16.gmra.mrb[0].mxu0 %v2909
        %v3060 = vpop.f32.mrb[0].mxu0
        %v3061 = vadd.f32 %v2944, %v3060
        %v3062 = vpop.f32.mrb[0].mxu0
        %v3063 = vpop.f32.mrb[0].mxu0
        %v3064 = vadd.f32 %v2944, %v3063
        %v3065 = vpop.f32.mrb[0].mxu0
        %3066 = vmatprep.mubr.bf16.mxu0 0
        %3067 = vmatmul.mubr.bf16.gmra.mrb[0].mxu0 %v2910
        %v3068 = vpop.f32.mrb[0].mxu0
        %v3069 = vadd.f32 %v2944, %v3068
        %v3070 = vpop.f32.mrb[0].mxu0
        %v3071 = vpop.f32.mrb[0].mxu0
        %v3072 = vadd.f32 %v2944, %v3071
        %v3073 = vpop.f32.mrb[0].mxu0
        %3074 = vmatprep.mubr.bf16.mxu0 0
        %3075 = vmatmul.mubr.bf16.gmra.mrb[0].mxu0 %v2911
        %v3076 = vpop.f32.mrb[0].mxu0
        %v3077 = vadd.f32 %v2944, %v3076
        %v3078 = vpop.f32.mrb[0].mxu0
        %v3079 = vpop.f32.mrb[0].mxu0
        %v3080 = vadd.f32 %v2944, %v3079
        %v3081 = vpop.f32.mrb[0].mxu0
        %3082 = vmatprep.mubr.bf16.mxu0 0
        %3083 = vmatmul.mubr.bf16.gmra.mrb[0].mxu0 %v2912
        %v3084 = vpop.f32.mrb[0].mxu0
        %v3085 = vadd.f32 %v2944, %v3084
        %v3086 = vpop.f32.mrb[0].mxu0
        %v3087 = vpop.f32.mrb[0].mxu0
        %v3088 = vadd.f32 %v2944, %v3087
        %v3089 = vpop.f32.mrb[0].mxu0
        %3090 = vmatprep.mubr.bf16.mxu0 0
        %3091 = vmatmul.mubr.bf16.gmra.mrb[0].mxu0 %v2913
        %v3092 = vpop.f32.mrb[0].mxu0
        %v3093 = vadd.f32 %v2944, %v3092
        %v3094 = vpop.f32.mrb[0].mxu0
        %v3095 = vpop.f32.mrb[0].mxu0
        %v3096 = vadd.f32 %v2944, %v3095
        %v3097 = vpop.f32.mrb[0].mxu0
        %3098 = vmatprep.mubr.bf16.mxu0 0
        %3099 = vmatmul.mubr.bf16.gmra.mrb[0].mxu0 %v2914
        %v3100 = vpop.f32.mrb[0].mxu0
        %v3101 = vadd.f32 %v2944, %v3100
        %v3102 = vpop.f32.mrb[0].mxu0
        %v3103 = vpop.f32.mrb[0].mxu0
        %v3104 = vadd.f32 %v2944, %v3103
        %v3105 = vpop.f32.mrb[0].mxu0
        %3106 = vmatprep.mubr.bf16.mxu0 0
        %3107 = vmatmul.mubr.bf16.gmra.mrb[0].mxu0 %v2915
        %v3108 = vpop.f32.mrb[0].mxu0
        %v3109 = vadd.f32 %v2944, %v3108
        %v3110 = vpop.f32.mrb[0].mxu0
        %v3111 = vpop.f32.mrb[0].mxu0
        %v3112 = vadd.f32 %v2944, %v3111
        %v3113 = vpop.f32.mrb[0].mxu0
        %3114 = vmatprep.mubr.bf16.mxu0 0
        %3115 = vmatmul.mubr.bf16.gmra.mrb[0].mxu0 %v2916
        %v3116 = vpop.f32.mrb[0].mxu0
        %v3117 = vadd.f32 %v2944, %v3116
        %v3118 = vpop.f32.mrb[0].mxu0
        %v3119 = vpop.f32.mrb[0].mxu0
        %v3120 = vadd.f32 %v2944, %v3119
        %v3121 = vpop.f32.mrb[0].mxu0
        %3122 = vmatprep.mubr.bf16.mxu0 0
        %3123 = vmatmul.mubr.bf16.gmra.mrb[0].mxu0 %v2917
        %v3124 = vpop.f32.mrb[0].mxu0
        %v3125 = vadd.f32 %v2944, %v3124
        %v3126 = vpop.f32.mrb[0].mxu0
        %v3127 = vpop.f32.mrb[0].mxu0
        %v3128 = vadd.f32 %v2944, %v3127
        %v3129 = vpop.f32.mrb[0].mxu0
        %3130 = vmatprep.mubr.bf16.mxu0 0
        %3131 = vmatmul.mubr.bf16.gmra.mrb[0].mxu0 %v2918
        %v3132 = vpop.f32.mrb[0].mxu0
        %v3133 = vadd.f32 %v2944, %v3132
        %v3134 = vpop.f32.mrb[0].mxu0
        %v3135 = vpop.f32.mrb[0].mxu0
        %v3136 = vadd.f32 %v2944, %v3135
        %v3137 = vpop.f32.mrb[0].mxu0
        %3138 = vmatprep.mubr.bf16.mxu0 0
        %3139 = vmatmul.mubr.bf16.gmra.mrb[0].mxu0 %v2919
        %v3140 = vpop.f32.mrb[0].mxu0
        %v3141 = vadd.f32 %v2944, %v3140
        %v3142 = vpop.f32.mrb[0].mxu0
        %v3143 = vpop.f32.mrb[0].mxu0
        %v3144 = vadd.f32 %v2944, %v3143
        %v3145 = vpop.f32.mrb[0].mxu0
        %3146 = vmatprep.mubr.bf16.mxu0 0
        %3147 = vmatmul.mubr.bf16.gmra.mrb[0].mxu0 %v2920
        %v3148 = vpop.f32.mrb[0].mxu0
        %v3149 = vadd.f32 %v2944, %v3148
        %v3150 = vpop.f32.mrb[0].mxu0
        %v3151 = vpop.f32.mrb[0].mxu0
        %v3152 = vadd.f32 %v2944, %v3151
        %v3153 = vpop.f32.mrb[0].mxu0
        %3154 = vdwg.mxu0
        %v3155 = vmax.f32 %v3029, 0.0
        %v3156 = vmax.f32 %v3032, 0.0
        %v3157 = vmax.f32 %v3037, 0.0
        %v3158 = vmax.f32 %v3040, 0.0
        %v3159 = vmax.f32 %v3045, 0.0
        %v3160 = vmax.f32 %v3048, 0.0
        %v3161 = vmax.f32 %v3053, 0.0
        %v3162 = vmax.f32 %v3056, 0.0
        %v3163 = vmax.f32 %v3061, 0.0
        %v3164 = vmax.f32 %v3064, 0.0
        %v3165 = vmax.f32 %v3069, 0.0
        %v3166 = vmax.f32 %v3072, 0.0
        %v3167 = vmax.f32 %v3077, 0.0
        %v3168 = vmax.f32 %v3080, 0.0
        %v3169 = vmax.f32 %v3085, 0.0
        %v3170 = vmax.f32 %v3088, 0.0
        %v3171 = vmax.f32 %v3093, 0.0
        %v3172 = vmax.f32 %v3096, 0.0
        %v3173 = vmax.f32 %v3101, 0.0
        %v3174 = vmax.f32 %v3104, 0.0
        %v3175 = vmax.f32 %v3109, 0.0
        %v3176 = vmax.f32 %v3112, 0.0
        %v3177 = vmax.f32 %v3117, 0.0
        %v3178 = vmax.f32 %v3120, 0.0
        %v3179 = vmax.f32 %v3125, 0.0
        %v3180 = vmax.f32 %v3128, 0.0
        %v3181 = vmax.f32 %v3133, 0.0
        %v3182 = vmax.f32 %v3136, 0.0
        %v3183 = vmax.f32 %v3141, 0.0
        %v3184 = vmax.f32 %v3144, 0.0
        %v3185 = vmax.f32 %v3149, 0.0
        %v3186 = vmax.f32 %v3152, 0.0
        %v3187 = vpack.c.bf16 %v3156, %v3155
        %v3188 = vpack.c.bf16 %v3158, %v3157
        %v3189 = vpack.c.bf16 %v3160, %v3159
        %v3190 = vpack.c.bf16 %v3162, %v3161
        %v3191 = vpack.c.bf16 %v3164, %v3163
        %v3192 = vpack.c.bf16 %v3166, %v3165
        %v3193 = vpack.c.bf16 %v3168, %v3167
        %v3194 = vpack.c.bf16 %v3170, %v3169
        %v3195 = vpack.c.bf16 %v3172, %v3171
        %v3196 = vpack.c.bf16 %v3174, %v3173
        %v3197 = vpack.c.bf16 %v3176, %v3175
        %v3198 = vpack.c.bf16 %v3178, %v3177
        %v3199 = vpack.c.bf16 %v3180, %v3179
        %v3200 = vpack.c.bf16 %v3182, %v3181
        %v3201 = vpack.c.bf16 %v3184, %v3183
        %v3202 = vpack.c.bf16 %v3186, %v3185
        %s3203 = scalar_lea.vmem [#allocation7], 576
        %v3204 = vld [vmem:[%s3203] sm:$0xf]
        %v3205 = vld [vmem:[%s3203 + $0x4] sm:$0xf]
        %v3206 = vld [vmem:[%s3203 + $0x8] sm:$0xf]
        %v3207 = vld [vmem:[%s3203 + $0xc] sm:$0xf]
        %v3208 = vld [vmem:[%s3203 + $0x10] sm:$0xf]
        %v3209 = vld [vmem:[%s3203 + $0x14] sm:$0xf]
        %v3210 = vld [vmem:[%s3203 + $0x18] sm:$0xf]
        %v3211 = vld [vmem:[%s3203 + $0x1c] sm:$0xf]
        %v3212 = vld [vmem:[%s3203 + $0x20] sm:$0xf]
        %v3213 = vld [vmem:[%s3203 + $0x24] sm:$0xf]
        %v3214 = vld [vmem:[%s3203 + $0x28] sm:$0xf]
        %v3215 = vld [vmem:[%s3203 + $0x2c] sm:$0xf]
        %v3216 = vld [vmem:[%s3203 + $0x30] sm:$0xf]
        %v3217 = vld [vmem:[%s3203 + $0x34] sm:$0xf]
        %v3218 = vld [vmem:[%s3203 + $0x38] sm:$0xf]
        %v3219 = vld [vmem:[%s3203 + $0x3c] sm:$0xf]
        %s3220 = scalar_lea.vmem [#allocation8], 9
        %v3221 = vld [vmem:[%s3220] sm:$0x1]
        %v3223 = vlaneseq
        %v3224 = vshrl.u32 %v3223, 7
        %v3225 = vsub.s32 0, %v3224
        %v3226 = vrot.slane %v3221, %v3225
        %v3244 = vunpack.c.l.b16 %v3204
        %v3245 = vunpack.c.l.b16 %v3205
        %v3246 = vunpack.c.l.b16 %v3206
        %v3247 = vunpack.c.l.b16 %v3207
        %v3248 = vunpack.c.l.b16 %v3208
        %v3249 = vunpack.c.l.b16 %v3209
        %v3250 = vunpack.c.l.b16 %v3210
        %v3251 = vunpack.c.l.b16 %v3211
        %v3252 = vunpack.c.l.b16 %v3212
        %v3253 = vunpack.c.l.b16 %v3213
        %v3254 = vunpack.c.l.b16 %v3214
        %v3255 = vunpack.c.l.b16 %v3215
        %v3256 = vunpack.c.l.b16 %v3216
        %v3257 = vunpack.c.l.b16 %v3217
        %v3258 = vunpack.c.l.b16 %v3218
        %v3259 = vunpack.c.l.b16 %v3219
        %v3260 = vpack.c.b16 %v3245, %v3244
        %v3261 = vpack.c.b16 %v3247, %v3246
        %v3262 = vpack.c.b16 %v3249, %v3248
        %v3263 = vpack.c.b16 %v3251, %v3250
        %v3264 = vpack.c.b16 %v3253, %v3252
        %v3265 = vpack.c.b16 %v3255, %v3254
        %v3266 = vpack.c.b16 %v3257, %v3256
        %v3267 = vpack.c.b16 %v3259, %v3258
        %3276 = vmatprep.subr.bf16.mxu0 0
        %3277 = vmatpush1.bf16.msra.mxu0 %v3260
        %3278 = vmatprep.subr.bf16.mxu0 0
        %3279 = vmatpush1.bf16.msra.mxu0 %v3261
        %3280 = vmatprep.subr.bf16.mxu0 0
        %3281 = vmatpush1.bf16.msra.mxu0 %v3262
        %3282 = vmatprep.subr.bf16.mxu0 0
        %3283 = vmatpush1.bf16.msra.mxu0 %v3263
        %3284 = vmatprep.subr.bf16.mxu0 0
        %3285 = vmatpush1.bf16.msra.mxu0 %v3264
        %3286 = vmatprep.subr.bf16.mxu0 0
        %3287 = vmatpush1.bf16.msra.mxu0 %v3265
        %3288 = vmatprep.subr.bf16.mxu0 0
        %3289 = vmatpush1.bf16.msra.mxu0 %v3266
        %3290 = vmatprep.subr.bf16.mxu0 0
        %3291 = vmatpush1.bf16.msra.mxu0 %v3267
        %3292 = vmatprep.subr.bf16.mxu0 0
        %3293 = vmatpush1.bf16.msra.mxu0 0
        %3294 = vmatprep.subr.bf16.mxu0 0
        %3295 = vmatpush1.bf16.msra.mxu0 0
        %3296 = vmatprep.subr.bf16.mxu0 0
        %3297 = vmatpush1.bf16.msra.mxu0 0
        %3298 = vmatprep.subr.bf16.mxu0 0
        %3299 = vmatpush1.bf16.msra.mxu0 0
        %3300 = vmatprep.subr.bf16.mxu0 0
        %3301 = vmatpush1.bf16.msra.mxu0 0
        %3302 = vmatprep.subr.bf16.mxu0 0
        %3303 = vmatpush1.bf16.msra.mxu0 0
        %3304 = vmatprep.subr.bf16.mxu0 0
        %3305 = vmatpush1.bf16.msra.mxu0 0
        %3306 = vmatprep.subr.bf16.mxu0 0
        %3307 = vmatpush1.bf16.msra.mxu0 0
        %3308 = vmatprep.mubr.bf16.mxu0 0
        %3309 = vmatmul.mubr.bf16.gmra.mrb[0].mxu0 %v3187
        %v3310 = vpop.f32.mrb[0].mxu0
        %v3311 = vadd.f32 %v3226, %v3310
        %v3312 = vpop.f32.mrb[0].mxu0
        %v3313 = vpop.f32.mrb[0].mxu0
        %v3314 = vadd.f32 %v3226, %v3313
        %v3315 = vpop.f32.mrb[0].mxu0
        %3316 = vmatprep.mubr.bf16.mxu0 0
        %3317 = vmatmul.mubr.bf16.gmra.mrb[0].mxu0 %v3188
        %v3318 = vpop.f32.mrb[0].mxu0
        %v3319 = vadd.f32 %v3226, %v3318
        %v3320 = vpop.f32.mrb[0].mxu0
        %v3321 = vpop.f32.mrb[0].mxu0
        %v3322 = vadd.f32 %v3226, %v3321
        %v3323 = vpop.f32.mrb[0].mxu0
        %3324 = vmatprep.mubr.bf16.mxu0 0
        %3325 = vmatmul.mubr.bf16.gmra.mrb[0].mxu0 %v3189
        %v3326 = vpop.f32.mrb[0].mxu0
        %v3327 = vadd.f32 %v3226, %v3326
        %v3328 = vpop.f32.mrb[0].mxu0
        %v3329 = vpop.f32.mrb[0].mxu0
        %v3330 = vadd.f32 %v3226, %v3329
        %v3331 = vpop.f32.mrb[0].mxu0
        %3332 = vmatprep.mubr.bf16.mxu0 0
        %3333 = vmatmul.mubr.bf16.gmra.mrb[0].mxu0 %v3190
        %v3334 = vpop.f32.mrb[0].mxu0
        %v3335 = vadd.f32 %v3226, %v3334
        %v3336 = vpop.f32.mrb[0].mxu0
        %v3337 = vpop.f32.mrb[0].mxu0
        %v3338 = vadd.f32 %v3226, %v3337
        %v3339 = vpop.f32.mrb[0].mxu0
        %3340 = vmatprep.mubr.bf16.mxu0 0
        %3341 = vmatmul.mubr.bf16.gmra.mrb[0].mxu0 %v3191
        %v3342 = vpop.f32.mrb[0].mxu0
        %v3343 = vadd.f32 %v3226, %v3342
        %v3344 = vpop.f32.mrb[0].mxu0
        %v3345 = vpop.f32.mrb[0].mxu0
        %v3346 = vadd.f32 %v3226, %v3345
        %v3347 = vpop.f32.mrb[0].mxu0
        %3348 = vmatprep.mubr.bf16.mxu0 0
        %3349 = vmatmul.mubr.bf16.gmra.mrb[0].mxu0 %v3192
        %v3350 = vpop.f32.mrb[0].mxu0
        %v3351 = vadd.f32 %v3226, %v3350
        %v3352 = vpop.f32.mrb[0].mxu0
        %v3353 = vpop.f32.mrb[0].mxu0
        %v3354 = vadd.f32 %v3226, %v3353
        %v3355 = vpop.f32.mrb[0].mxu0
        %3356 = vmatprep.mubr.bf16.mxu0 0
        %3357 = vmatmul.mubr.bf16.gmra.mrb[0].mxu0 %v3193
        %v3358 = vpop.f32.mrb[0].mxu0
        %v3359 = vadd.f32 %v3226, %v3358
        %v3360 = vpop.f32.mrb[0].mxu0
        %v3361 = vpop.f32.mrb[0].mxu0
        %v3362 = vadd.f32 %v3226, %v3361
        %v3363 = vpop.f32.mrb[0].mxu0
        %3364 = vmatprep.mubr.bf16.mxu0 0
        %3365 = vmatmul.mubr.bf16.gmra.mrb[0].mxu0 %v3194
        %v3366 = vpop.f32.mrb[0].mxu0
        %v3367 = vadd.f32 %v3226, %v3366
        %v3368 = vpop.f32.mrb[0].mxu0
        %v3369 = vpop.f32.mrb[0].mxu0
        %v3370 = vadd.f32 %v3226, %v3369
        %v3371 = vpop.f32.mrb[0].mxu0
        %3372 = vmatprep.mubr.bf16.mxu0 0
        %3373 = vmatmul.mubr.bf16.gmra.mrb[0].mxu0 %v3195
        %v3374 = vpop.f32.mrb[0].mxu0
        %v3375 = vadd.f32 %v3226, %v3374
        %v3376 = vpop.f32.mrb[0].mxu0
        %v3377 = vpop.f32.mrb[0].mxu0
        %v3378 = vadd.f32 %v3226, %v3377
        %v3379 = vpop.f32.mrb[0].mxu0
        %3380 = vmatprep.mubr.bf16.mxu0 0
        %3381 = vmatmul.mubr.bf16.gmra.mrb[0].mxu0 %v3196
        %v3382 = vpop.f32.mrb[0].mxu0
        %v3383 = vadd.f32 %v3226, %v3382
        %v3384 = vpop.f32.mrb[0].mxu0
        %v3385 = vpop.f32.mrb[0].mxu0
        %v3386 = vadd.f32 %v3226, %v3385
        %v3387 = vpop.f32.mrb[0].mxu0
        %3388 = vmatprep.mubr.bf16.mxu0 0
        %3389 = vmatmul.mubr.bf16.gmra.mrb[0].mxu0 %v3197
        %v3390 = vpop.f32.mrb[0].mxu0
        %v3391 = vadd.f32 %v3226, %v3390
        %v3392 = vpop.f32.mrb[0].mxu0
        %v3393 = vpop.f32.mrb[0].mxu0
        %v3394 = vadd.f32 %v3226, %v3393
        %v3395 = vpop.f32.mrb[0].mxu0
        %3396 = vmatprep.mubr.bf16.mxu0 0
        %3397 = vmatmul.mubr.bf16.gmra.mrb[0].mxu0 %v3198
        %v3398 = vpop.f32.mrb[0].mxu0
        %v3399 = vadd.f32 %v3226, %v3398
        %v3400 = vpop.f32.mrb[0].mxu0
        %v3401 = vpop.f32.mrb[0].mxu0
        %v3402 = vadd.f32 %v3226, %v3401
        %v3403 = vpop.f32.mrb[0].mxu0
        %3404 = vmatprep.mubr.bf16.mxu0 0
        %3405 = vmatmul.mubr.bf16.gmra.mrb[0].mxu0 %v3199
        %v3406 = vpop.f32.mrb[0].mxu0
        %v3407 = vadd.f32 %v3226, %v3406
        %v3408 = vpop.f32.mrb[0].mxu0
        %v3409 = vpop.f32.mrb[0].mxu0
        %v3410 = vadd.f32 %v3226, %v3409
        %v3411 = vpop.f32.mrb[0].mxu0
        %3412 = vmatprep.mubr.bf16.mxu0 0
        %3413 = vmatmul.mubr.bf16.gmra.mrb[0].mxu0 %v3200
        %v3414 = vpop.f32.mrb[0].mxu0
        %v3415 = vadd.f32 %v3226, %v3414
        %v3416 = vpop.f32.mrb[0].mxu0
        %v3417 = vpop.f32.mrb[0].mxu0
        %v3418 = vadd.f32 %v3226, %v3417
        %v3419 = vpop.f32.mrb[0].mxu0
        %3420 = vmatprep.mubr.bf16.mxu0 0
        %3421 = vmatmul.mubr.bf16.gmra.mrb[0].mxu0 %v3201
        %v3422 = vpop.f32.mrb[0].mxu0
        %v3423 = vadd.f32 %v3226, %v3422
        %v3424 = vpop.f32.mrb[0].mxu0
        %v3425 = vpop.f32.mrb[0].mxu0
        %v3426 = vadd.f32 %v3226, %v3425
        %v3427 = vpop.f32.mrb[0].mxu0
        %3428 = vmatprep.mubr.bf16.mxu0 0
        %3429 = vmatmul.mubr.bf16.gmra.mrb[0].mxu0 %v3202
        %v3430 = vpop.f32.mrb[0].mxu0
        %v3431 = vadd.f32 %v3226, %v3430
        %v3432 = vpop.f32.mrb[0].mxu0
        %v3433 = vpop.f32.mrb[0].mxu0
        %v3434 = vadd.f32 %v3226, %v3433
        %v3435 = vpop.f32.mrb[0].mxu0
        %3436 = vdwg.mxu0
        %v3437 = vmax.f32 %v3311, 0.0
        %v3438 = vmax.f32 %v3314, 0.0
        %v3439 = vmax.f32 %v3319, 0.0
        %v3440 = vmax.f32 %v3322, 0.0
        %v3441 = vmax.f32 %v3327, 0.0
        %v3442 = vmax.f32 %v3330, 0.0
        %v3443 = vmax.f32 %v3335, 0.0
        %v3444 = vmax.f32 %v3338, 0.0
        %v3445 = vmax.f32 %v3343, 0.0
        %v3446 = vmax.f32 %v3346, 0.0
        %v3447 = vmax.f32 %v3351, 0.0
        %v3448 = vmax.f32 %v3354, 0.0
        %v3449 = vmax.f32 %v3359, 0.0
        %v3450 = vmax.f32 %v3362, 0.0
        %v3451 = vmax.f32 %v3367, 0.0
        %v3452 = vmax.f32 %v3370, 0.0
        %v3453 = vmax.f32 %v3375, 0.0
        %v3454 = vmax.f32 %v3378, 0.0
        %v3455 = vmax.f32 %v3383, 0.0
        %v3456 = vmax.f32 %v3386, 0.0
        %v3457 = vmax.f32 %v3391, 0.0
        %v3458 = vmax.f32 %v3394, 0.0
        %v3459 = vmax.f32 %v3399, 0.0
        %v3460 = vmax.f32 %v3402, 0.0
        %v3461 = vmax.f32 %v3407, 0.0
        %v3462 = vmax.f32 %v3410, 0.0
        %v3463 = vmax.f32 %v3415, 0.0
        %v3464 = vmax.f32 %v3418, 0.0
        %v3465 = vmax.f32 %v3423, 0.0
        %v3466 = vmax.f32 %v3426, 0.0
        %v3467 = vmax.f32 %v3431, 0.0
        %v3468 = vmax.f32 %v3434, 0.0
        %v3469 = vpack.c.bf16 %v3438, %v3437
        %v3470 = vpack.c.bf16 %v3440, %v3439
        %v3471 = vpack.c.bf16 %v3442, %v3441
        %v3472 = vpack.c.bf16 %v3444, %v3443
        %v3473 = vpack.c.bf16 %v3446, %v3445
        %v3474 = vpack.c.bf16 %v3448, %v3447
        %v3475 = vpack.c.bf16 %v3450, %v3449
        %v3476 = vpack.c.bf16 %v3452, %v3451
        %v3477 = vpack.c.bf16 %v3454, %v3453
        %v3478 = vpack.c.bf16 %v3456, %v3455
        %v3479 = vpack.c.bf16 %v3458, %v3457
        %v3480 = vpack.c.bf16 %v3460, %v3459
        %v3481 = vpack.c.bf16 %v3462, %v3461
        %v3482 = vpack.c.bf16 %v3464, %v3463
        %v3483 = vpack.c.bf16 %v3466, %v3465
        %v3484 = vpack.c.bf16 %v3468, %v3467
        %s3485 = scalar_lea.vmem [#allocation7], 640
        %v3486 = vld [vmem:[%s3485] sm:$0xf]
        %v3487 = vld [vmem:[%s3485 + $0x4] sm:$0xf]
        %v3488 = vld [vmem:[%s3485 + $0x8] sm:$0xf]
        %v3489 = vld [vmem:[%s3485 + $0xc] sm:$0xf]
        %v3490 = vld [vmem:[%s3485 + $0x10] sm:$0xf]
        %v3491 = vld [vmem:[%s3485 + $0x14] sm:$0xf]
        %v3492 = vld [vmem:[%s3485 + $0x18] sm:$0xf]
        %v3493 = vld [vmem:[%s3485 + $0x1c] sm:$0xf]
        %v3494 = vld [vmem:[%s3485 + $0x20] sm:$0xf]
        %v3495 = vld [vmem:[%s3485 + $0x24] sm:$0xf]
        %v3496 = vld [vmem:[%s3485 + $0x28] sm:$0xf]
        %v3497 = vld [vmem:[%s3485 + $0x2c] sm:$0xf]
        %v3498 = vld [vmem:[%s3485 + $0x30] sm:$0xf]
        %v3499 = vld [vmem:[%s3485 + $0x34] sm:$0xf]
        %v3500 = vld [vmem:[%s3485 + $0x38] sm:$0xf]
        %v3501 = vld [vmem:[%s3485 + $0x3c] sm:$0xf]
        %s3502 = scalar_lea.vmem [#allocation8], 10
        %v3503 = vld [vmem:[%s3502] sm:$0x1]
        %v3505 = vlaneseq
        %v3506 = vshrl.u32 %v3505, 7
        %v3507 = vsub.s32 0, %v3506
        %v3508 = vrot.slane %v3503, %v3507
        %v3526 = vunpack.c.l.b16 %v3486
        %v3527 = vunpack.c.l.b16 %v3487
        %v3528 = vunpack.c.l.b16 %v3488
        %v3529 = vunpack.c.l.b16 %v3489
        %v3530 = vunpack.c.l.b16 %v3490
        %v3531 = vunpack.c.l.b16 %v3491
        %v3532 = vunpack.c.l.b16 %v3492
        %v3533 = vunpack.c.l.b16 %v3493
        %v3534 = vunpack.c.l.b16 %v3494
        %v3535 = vunpack.c.l.b16 %v3495
        %v3536 = vunpack.c.l.b16 %v3496
        %v3537 = vunpack.c.l.b16 %v3497
        %v3538 = vunpack.c.l.b16 %v3498
        %v3539 = vunpack.c.l.b16 %v3499
        %v3540 = vunpack.c.l.b16 %v3500
        %v3541 = vunpack.c.l.b16 %v3501
        %v3542 = vpack.c.b16 %v3527, %v3526
        %v3543 = vpack.c.b16 %v3529, %v3528
        %v3544 = vpack.c.b16 %v3531, %v3530
        %v3545 = vpack.c.b16 %v3533, %v3532
        %v3546 = vpack.c.b16 %v3535, %v3534
        %v3547 = vpack.c.b16 %v3537, %v3536
        %v3548 = vpack.c.b16 %v3539, %v3538
        %v3549 = vpack.c.b16 %v3541, %v3540
        %3558 = vmatprep.subr.bf16.mxu0 0
        %3559 = vmatpush1.bf16.msra.mxu0 %v3542
        %3560 = vmatprep.subr.bf16.mxu0 0
        %3561 = vmatpush1.bf16.msra.mxu0 %v3543
        %3562 = vmatprep.subr.bf16.mxu0 0
        %3563 = vmatpush1.bf16.msra.mxu0 %v3544
        %3564 = vmatprep.subr.bf16.mxu0 0
        %3565 = vmatpush1.bf16.msra.mxu0 %v3545
        %3566 = vmatprep.subr.bf16.mxu0 0
        %3567 = vmatpush1.bf16.msra.mxu0 %v3546
        %3568 = vmatprep.subr.bf16.mxu0 0
        %3569 = vmatpush1.bf16.msra.mxu0 %v3547
        %3570 = vmatprep.subr.bf16.mxu0 0
        %3571 = vmatpush1.bf16.msra.mxu0 %v3548
        %3572 = vmatprep.subr.bf16.mxu0 0
        %3573 = vmatpush1.bf16.msra.mxu0 %v3549
        %3574 = vmatprep.subr.bf16.mxu0 0
        %3575 = vmatpush1.bf16.msra.mxu0 0
        %3576 = vmatprep.subr.bf16.mxu0 0
        %3577 = vmatpush1.bf16.msra.mxu0 0
        %3578 = vmatprep.subr.bf16.mxu0 0
        %3579 = vmatpush1.bf16.msra.mxu0 0
        %3580 = vmatprep.subr.bf16.mxu0 0
        %3581 = vmatpush1.bf16.msra.mxu0 0
        %3582 = vmatprep.subr.bf16.mxu0 0
        %3583 = vmatpush1.bf16.msra.mxu0 0
        %3584 = vmatprep.subr.bf16.mxu0 0
        %3585 = vmatpush1.bf16.msra.mxu0 0
        %3586 = vmatprep.subr.bf16.mxu0 0
        %3587 = vmatpush1.bf16.msra.mxu0 0
        %3588 = vmatprep.subr.bf16.mxu0 0
        %3589 = vmatpush1.bf16.msra.mxu0 0
        %3590 = vmatprep.mubr.bf16.mxu0 0
        %3591 = vmatmul.mubr.bf16.gmra.mrb[0].mxu0 %v3469
        %v3592 = vpop.f32.mrb[0].mxu0
        %v3593 = vadd.f32 %v3508, %v3592
        %v3594 = vpop.f32.mrb[0].mxu0
        %v3595 = vpop.f32.mrb[0].mxu0
        %v3596 = vadd.f32 %v3508, %v3595
        %v3597 = vpop.f32.mrb[0].mxu0
        %3598 = vmatprep.mubr.bf16.mxu0 0
        %3599 = vmatmul.mubr.bf16.gmra.mrb[0].mxu0 %v3470
        %v3600 = vpop.f32.mrb[0].mxu0
        %v3601 = vadd.f32 %v3508, %v3600
        %v3602 = vpop.f32.mrb[0].mxu0
        %v3603 = vpop.f32.mrb[0].mxu0
        %v3604 = vadd.f32 %v3508, %v3603
        %v3605 = vpop.f32.mrb[0].mxu0
        %3606 = vmatprep.mubr.bf16.mxu0 0
        %3607 = vmatmul.mubr.bf16.gmra.mrb[0].mxu0 %v3471
        %v3608 = vpop.f32.mrb[0].mxu0
        %v3609 = vadd.f32 %v3508, %v3608
        %v3610 = vpop.f32.mrb[0].mxu0
        %v3611 = vpop.f32.mrb[0].mxu0
        %v3612 = vadd.f32 %v3508, %v3611
        %v3613 = vpop.f32.mrb[0].mxu0
        %3614 = vmatprep.mubr.bf16.mxu0 0
        %3615 = vmatmul.mubr.bf16.gmra.mrb[0].mxu0 %v3472
        %v3616 = vpop.f32.mrb[0].mxu0
        %v3617 = vadd.f32 %v3508, %v3616
        %v3618 = vpop.f32.mrb[0].mxu0
        %v3619 = vpop.f32.mrb[0].mxu0
        %v3620 = vadd.f32 %v3508, %v3619
        %v3621 = vpop.f32.mrb[0].mxu0
        %3622 = vmatprep.mubr.bf16.mxu0 0
        %3623 = vmatmul.mubr.bf16.gmra.mrb[0].mxu0 %v3473
        %v3624 = vpop.f32.mrb[0].mxu0
        %v3625 = vadd.f32 %v3508, %v3624
        %v3626 = vpop.f32.mrb[0].mxu0
        %v3627 = vpop.f32.mrb[0].mxu0
        %v3628 = vadd.f32 %v3508, %v3627
        %v3629 = vpop.f32.mrb[0].mxu0
        %3630 = vmatprep.mubr.bf16.mxu0 0
        %3631 = vmatmul.mubr.bf16.gmra.mrb[0].mxu0 %v3474
        %v3632 = vpop.f32.mrb[0].mxu0
        %v3633 = vadd.f32 %v3508, %v3632
        %v3634 = vpop.f32.mrb[0].mxu0
        %v3635 = vpop.f32.mrb[0].mxu0
        %v3636 = vadd.f32 %v3508, %v3635
        %v3637 = vpop.f32.mrb[0].mxu0
        %3638 = vmatprep.mubr.bf16.mxu0 0
        %3639 = vmatmul.mubr.bf16.gmra.mrb[0].mxu0 %v3475
        %v3640 = vpop.f32.mrb[0].mxu0
        %v3641 = vadd.f32 %v3508, %v3640
        %v3642 = vpop.f32.mrb[0].mxu0
        %v3643 = vpop.f32.mrb[0].mxu0
        %v3644 = vadd.f32 %v3508, %v3643
        %v3645 = vpop.f32.mrb[0].mxu0
        %3646 = vmatprep.mubr.bf16.mxu0 0
        %3647 = vmatmul.mubr.bf16.gmra.mrb[0].mxu0 %v3476
        %v3648 = vpop.f32.mrb[0].mxu0
        %v3649 = vadd.f32 %v3508, %v3648
        %v3650 = vpop.f32.mrb[0].mxu0
        %v3651 = vpop.f32.mrb[0].mxu0
        %v3652 = vadd.f32 %v3508, %v3651
        %v3653 = vpop.f32.mrb[0].mxu0
        %3654 = vmatprep.mubr.bf16.mxu0 0
        %3655 = vmatmul.mubr.bf16.gmra.mrb[0].mxu0 %v3477
        %v3656 = vpop.f32.mrb[0].mxu0
        %v3657 = vadd.f32 %v3508, %v3656
        %v3658 = vpop.f32.mrb[0].mxu0
        %v3659 = vpop.f32.mrb[0].mxu0
        %v3660 = vadd.f32 %v3508, %v3659
        %v3661 = vpop.f32.mrb[0].mxu0
        %3662 = vmatprep.mubr.bf16.mxu0 0
        %3663 = vmatmul.mubr.bf16.gmra.mrb[0].mxu0 %v3478
        %v3664 = vpop.f32.mrb[0].mxu0
        %v3665 = vadd.f32 %v3508, %v3664
        %v3666 = vpop.f32.mrb[0].mxu0
        %v3667 = vpop.f32.mrb[0].mxu0
        %v3668 = vadd.f32 %v3508, %v3667
        %v3669 = vpop.f32.mrb[0].mxu0
        %3670 = vmatprep.mubr.bf16.mxu0 0
        %3671 = vmatmul.mubr.bf16.gmra.mrb[0].mxu0 %v3479
        %v3672 = vpop.f32.mrb[0].mxu0
        %v3673 = vadd.f32 %v3508, %v3672
        %v3674 = vpop.f32.mrb[0].mxu0
        %v3675 = vpop.f32.mrb[0].mxu0
        %v3676 = vadd.f32 %v3508, %v3675
        %v3677 = vpop.f32.mrb[0].mxu0
        %3678 = vmatprep.mubr.bf16.mxu0 0
        %3679 = vmatmul.mubr.bf16.gmra.mrb[0].mxu0 %v3480
        %v3680 = vpop.f32.mrb[0].mxu0
        %v3681 = vadd.f32 %v3508, %v3680
        %v3682 = vpop.f32.mrb[0].mxu0
        %v3683 = vpop.f32.mrb[0].mxu0
        %v3684 = vadd.f32 %v3508, %v3683
        %v3685 = vpop.f32.mrb[0].mxu0
        %3686 = vmatprep.mubr.bf16.mxu0 0
        %3687 = vmatmul.mubr.bf16.gmra.mrb[0].mxu0 %v3481
        %v3688 = vpop.f32.mrb[0].mxu0
        %v3689 = vadd.f32 %v3508, %v3688
        %v3690 = vpop.f32.mrb[0].mxu0
        %v3691 = vpop.f32.mrb[0].mxu0
        %v3692 = vadd.f32 %v3508, %v3691
        %v3693 = vpop.f32.mrb[0].mxu0
        %3694 = vmatprep.mubr.bf16.mxu0 0
        %3695 = vmatmul.mubr.bf16.gmra.mrb[0].mxu0 %v3482
        %v3696 = vpop.f32.mrb[0].mxu0
        %v3697 = vadd.f32 %v3508, %v3696
        %v3698 = vpop.f32.mrb[0].mxu0
        %v3699 = vpop.f32.mrb[0].mxu0
        %v3700 = vadd.f32 %v3508, %v3699
        %v3701 = vpop.f32.mrb[0].mxu0
        %3702 = vmatprep.mubr.bf16.mxu0 0
        %3703 = vmatmul.mubr.bf16.gmra.mrb[0].mxu0 %v3483
        %v3704 = vpop.f32.mrb[0].mxu0
        %v3705 = vadd.f32 %v3508, %v3704
        %v3706 = vpop.f32.mrb[0].mxu0
        %v3707 = vpop.f32.mrb[0].mxu0
        %v3708 = vadd.f32 %v3508, %v3707
        %v3709 = vpop.f32.mrb[0].mxu0
        %3710 = vmatprep.mubr.bf16.mxu0 0
        %3711 = vmatmul.mubr.bf16.gmra.mrb[0].mxu0 %v3484
        %v3712 = vpop.f32.mrb[0].mxu0
        %v3713 = vadd.f32 %v3508, %v3712
        %v3714 = vpop.f32.mrb[0].mxu0
        %v3715 = vpop.f32.mrb[0].mxu0
        %v3716 = vadd.f32 %v3508, %v3715
        %v3717 = vpop.f32.mrb[0].mxu0
        %3718 = vdwg.mxu0
        %v3719 = vmax.f32 %v3593, 0.0
        %v3720 = vmax.f32 %v3596, 0.0
        %v3721 = vmax.f32 %v3601, 0.0
        %v3722 = vmax.f32 %v3604, 0.0
        %v3723 = vmax.f32 %v3609, 0.0
        %v3724 = vmax.f32 %v3612, 0.0
        %v3725 = vmax.f32 %v3617, 0.0
        %v3726 = vmax.f32 %v3620, 0.0
        %v3727 = vmax.f32 %v3625, 0.0
        %v3728 = vmax.f32 %v3628, 0.0
        %v3729 = vmax.f32 %v3633, 0.0
        %v3730 = vmax.f32 %v3636, 0.0
        %v3731 = vmax.f32 %v3641, 0.0
        %v3732 = vmax.f32 %v3644, 0.0
        %v3733 = vmax.f32 %v3649, 0.0
        %v3734 = vmax.f32 %v3652, 0.0
        %v3735 = vmax.f32 %v3657, 0.0
        %v3736 = vmax.f32 %v3660, 0.0
        %v3737 = vmax.f32 %v3665, 0.0
        %v3738 = vmax.f32 %v3668, 0.0
        %v3739 = vmax.f32 %v3673, 0.0
        %v3740 = vmax.f32 %v3676, 0.0
        %v3741 = vmax.f32 %v3681, 0.0
        %v3742 = vmax.f32 %v3684, 0.0
        %v3743 = vmax.f32 %v3689, 0.0
        %v3744 = vmax.f32 %v3692, 0.0
        %v3745 = vmax.f32 %v3697, 0.0
        %v3746 = vmax.f32 %v3700, 0.0
        %v3747 = vmax.f32 %v3705, 0.0
        %v3748 = vmax.f32 %v3708, 0.0
        %v3749 = vmax.f32 %v3713, 0.0
        %v3750 = vmax.f32 %v3716, 0.0
        %v3751 = vpack.c.bf16 %v3720, %v3719
        %v3752 = vpack.c.bf16 %v3722, %v3721
        %v3753 = vpack.c.bf16 %v3724, %v3723
        %v3754 = vpack.c.bf16 %v3726, %v3725
        %v3755 = vpack.c.bf16 %v3728, %v3727
        %v3756 = vpack.c.bf16 %v3730, %v3729
        %v3757 = vpack.c.bf16 %v3732, %v3731
        %v3758 = vpack.c.bf16 %v3734, %v3733
        %v3759 = vpack.c.bf16 %v3736, %v3735
        %v3760 = vpack.c.bf16 %v3738, %v3737
        %v3761 = vpack.c.bf16 %v3740, %v3739
        %v3762 = vpack.c.bf16 %v3742, %v3741
        %v3763 = vpack.c.bf16 %v3744, %v3743
        %v3764 = vpack.c.bf16 %v3746, %v3745
        %v3765 = vpack.c.bf16 %v3748, %v3747
        %v3766 = vpack.c.bf16 %v3750, %v3749
        %s3767 = scalar_lea.vmem [#allocation7], 704
        %v3768 = vld [vmem:[%s3767] sm:$0xf]
        %v3769 = vld [vmem:[%s3767 + $0x4] sm:$0xf]
        %v3770 = vld [vmem:[%s3767 + $0x8] sm:$0xf]
        %v3771 = vld [vmem:[%s3767 + $0xc] sm:$0xf]
        %v3772 = vld [vmem:[%s3767 + $0x10] sm:$0xf]
        %v3773 = vld [vmem:[%s3767 + $0x14] sm:$0xf]
        %v3774 = vld [vmem:[%s3767 + $0x18] sm:$0xf]
        %v3775 = vld [vmem:[%s3767 + $0x1c] sm:$0xf]
        %v3776 = vld [vmem:[%s3767 + $0x20] sm:$0xf]
        %v3777 = vld [vmem:[%s3767 + $0x24] sm:$0xf]
        %v3778 = vld [vmem:[%s3767 + $0x28] sm:$0xf]
        %v3779 = vld [vmem:[%s3767 + $0x2c] sm:$0xf]
        %v3780 = vld [vmem:[%s3767 + $0x30] sm:$0xf]
        %v3781 = vld [vmem:[%s3767 + $0x34] sm:$0xf]
        %v3782 = vld [vmem:[%s3767 + $0x38] sm:$0xf]
        %v3783 = vld [vmem:[%s3767 + $0x3c] sm:$0xf]
        %s3784 = scalar_lea.vmem [#allocation8], 11
        %v3785 = vld [vmem:[%s3784] sm:$0x1]
        %v3787 = vlaneseq
        %v3788 = vshrl.u32 %v3787, 7
        %v3789 = vsub.s32 0, %v3788
        %v3790 = vrot.slane %v3785, %v3789
        %v3808 = vunpack.c.l.b16 %v3768
        %v3809 = vunpack.c.l.b16 %v3769
        %v3810 = vunpack.c.l.b16 %v3770
        %v3811 = vunpack.c.l.b16 %v3771
        %v3812 = vunpack.c.l.b16 %v3772
        %v3813 = vunpack.c.l.b16 %v3773
        %v3814 = vunpack.c.l.b16 %v3774
        %v3815 = vunpack.c.l.b16 %v3775
        %v3816 = vunpack.c.l.b16 %v3776
        %v3817 = vunpack.c.l.b16 %v3777
        %v3818 = vunpack.c.l.b16 %v3778
        %v3819 = vunpack.c.l.b16 %v3779
        %v3820 = vunpack.c.l.b16 %v3780
        %v3821 = vunpack.c.l.b16 %v3781
        %v3822 = vunpack.c.l.b16 %v3782
        %v3823 = vunpack.c.l.b16 %v3783
        %v3824 = vpack.c.b16 %v3809, %v3808
        %v3825 = vpack.c.b16 %v3811, %v3810
        %v3826 = vpack.c.b16 %v3813, %v3812
        %v3827 = vpack.c.b16 %v3815, %v3814
        %v3828 = vpack.c.b16 %v3817, %v3816
        %v3829 = vpack.c.b16 %v3819, %v3818
        %v3830 = vpack.c.b16 %v3821, %v3820
        %v3831 = vpack.c.b16 %v3823, %v3822
        %3840 = vmatprep.subr.bf16.mxu0 0
        %3841 = vmatpush1.bf16.msra.mxu0 %v3824
        %3842 = vmatprep.subr.bf16.mxu0 0
        %3843 = vmatpush1.bf16.msra.mxu0 %v3825
        %3844 = vmatprep.subr.bf16.mxu0 0
        %3845 = vmatpush1.bf16.msra.mxu0 %v3826
        %3846 = vmatprep.subr.bf16.mxu0 0
        %3847 = vmatpush1.bf16.msra.mxu0 %v3827
        %3848 = vmatprep.subr.bf16.mxu0 0
        %3849 = vmatpush1.bf16.msra.mxu0 %v3828
        %3850 = vmatprep.subr.bf16.mxu0 0
        %3851 = vmatpush1.bf16.msra.mxu0 %v3829
        %3852 = vmatprep.subr.bf16.mxu0 0
        %3853 = vmatpush1.bf16.msra.mxu0 %v3830
        %3854 = vmatprep.subr.bf16.mxu0 0
        %3855 = vmatpush1.bf16.msra.mxu0 %v3831
        %3856 = vmatprep.subr.bf16.mxu0 0
        %3857 = vmatpush1.bf16.msra.mxu0 0
        %3858 = vmatprep.subr.bf16.mxu0 0
        %3859 = vmatpush1.bf16.msra.mxu0 0
        %3860 = vmatprep.subr.bf16.mxu0 0
        %3861 = vmatpush1.bf16.msra.mxu0 0
        %3862 = vmatprep.subr.bf16.mxu0 0
        %3863 = vmatpush1.bf16.msra.mxu0 0
        %3864 = vmatprep.subr.bf16.mxu0 0
        %3865 = vmatpush1.bf16.msra.mxu0 0
        %3866 = vmatprep.subr.bf16.mxu0 0
        %3867 = vmatpush1.bf16.msra.mxu0 0
        %3868 = vmatprep.subr.bf16.mxu0 0
        %3869 = vmatpush1.bf16.msra.mxu0 0
        %3870 = vmatprep.subr.bf16.mxu0 0
        %3871 = vmatpush1.bf16.msra.mxu0 0
        %3872 = vmatprep.mubr.bf16.mxu0 0
        %3873 = vmatmul.mubr.bf16.gmra.mrb[0].mxu0 %v3751
        %v3874 = vpop.f32.mrb[0].mxu0
        %v3875 = vadd.f32 %v3790, %v3874
        %v3876 = vpop.f32.mrb[0].mxu0
        %v3877 = vpop.f32.mrb[0].mxu0
        %v3878 = vadd.f32 %v3790, %v3877
        %v3879 = vpop.f32.mrb[0].mxu0
        %3880 = vmatprep.mubr.bf16.mxu0 0
        %3881 = vmatmul.mubr.bf16.gmra.mrb[0].mxu0 %v3752
        %v3882 = vpop.f32.mrb[0].mxu0
        %v3883 = vadd.f32 %v3790, %v3882
        %v3884 = vpop.f32.mrb[0].mxu0
        %v3885 = vpop.f32.mrb[0].mxu0
        %v3886 = vadd.f32 %v3790, %v3885
        %v3887 = vpop.f32.mrb[0].mxu0
        %3888 = vmatprep.mubr.bf16.mxu0 0
        %3889 = vmatmul.mubr.bf16.gmra.mrb[0].mxu0 %v3753
        %v3890 = vpop.f32.mrb[0].mxu0
        %v3891 = vadd.f32 %v3790, %v3890
        %v3892 = vpop.f32.mrb[0].mxu0
        %v3893 = vpop.f32.mrb[0].mxu0
        %v3894 = vadd.f32 %v3790, %v3893
        %v3895 = vpop.f32.mrb[0].mxu0
        %3896 = vmatprep.mubr.bf16.mxu0 0
        %3897 = vmatmul.mubr.bf16.gmra.mrb[0].mxu0 %v3754
        %v3898 = vpop.f32.mrb[0].mxu0
        %v3899 = vadd.f32 %v3790, %v3898
        %v3900 = vpop.f32.mrb[0].mxu0
        %v3901 = vpop.f32.mrb[0].mxu0
        %v3902 = vadd.f32 %v3790, %v3901
        %v3903 = vpop.f32.mrb[0].mxu0
        %3904 = vmatprep.mubr.bf16.mxu0 0
        %3905 = vmatmul.mubr.bf16.gmra.mrb[0].mxu0 %v3755
        %v3906 = vpop.f32.mrb[0].mxu0
        %v3907 = vadd.f32 %v3790, %v3906
        %v3908 = vpop.f32.mrb[0].mxu0
        %v3909 = vpop.f32.mrb[0].mxu0
        %v3910 = vadd.f32 %v3790, %v3909
        %v3911 = vpop.f32.mrb[0].mxu0
        %3912 = vmatprep.mubr.bf16.mxu0 0
        %3913 = vmatmul.mubr.bf16.gmra.mrb[0].mxu0 %v3756
        %v3914 = vpop.f32.mrb[0].mxu0
        %v3915 = vadd.f32 %v3790, %v3914
        %v3916 = vpop.f32.mrb[0].mxu0
        %v3917 = vpop.f32.mrb[0].mxu0
        %v3918 = vadd.f32 %v3790, %v3917
        %v3919 = vpop.f32.mrb[0].mxu0
        %3920 = vmatprep.mubr.bf16.mxu0 0
        %3921 = vmatmul.mubr.bf16.gmra.mrb[0].mxu0 %v3757
        %v3922 = vpop.f32.mrb[0].mxu0
        %v3923 = vadd.f32 %v3790, %v3922
        %v3924 = vpop.f32.mrb[0].mxu0
        %v3925 = vpop.f32.mrb[0].mxu0
        %v3926 = vadd.f32 %v3790, %v3925
        %v3927 = vpop.f32.mrb[0].mxu0
        %3928 = vmatprep.mubr.bf16.mxu0 0
        %3929 = vmatmul.mubr.bf16.gmra.mrb[0].mxu0 %v3758
        %v3930 = vpop.f32.mrb[0].mxu0
        %v3931 = vadd.f32 %v3790, %v3930
        %v3932 = vpop.f32.mrb[0].mxu0
        %v3933 = vpop.f32.mrb[0].mxu0
        %v3934 = vadd.f32 %v3790, %v3933
        %v3935 = vpop.f32.mrb[0].mxu0
        %3936 = vmatprep.mubr.bf16.mxu0 0
        %3937 = vmatmul.mubr.bf16.gmra.mrb[0].mxu0 %v3759
        %v3938 = vpop.f32.mrb[0].mxu0
        %v3939 = vadd.f32 %v3790, %v3938
        %v3940 = vpop.f32.mrb[0].mxu0
        %v3941 = vpop.f32.mrb[0].mxu0
        %v3942 = vadd.f32 %v3790, %v3941
        %v3943 = vpop.f32.mrb[0].mxu0
        %3944 = vmatprep.mubr.bf16.mxu0 0
        %3945 = vmatmul.mubr.bf16.gmra.mrb[0].mxu0 %v3760
        %v3946 = vpop.f32.mrb[0].mxu0
        %v3947 = vadd.f32 %v3790, %v3946
        %v3948 = vpop.f32.mrb[0].mxu0
        %v3949 = vpop.f32.mrb[0].mxu0
        %v3950 = vadd.f32 %v3790, %v3949
        %v3951 = vpop.f32.mrb[0].mxu0
        %3952 = vmatprep.mubr.bf16.mxu0 0
        %3953 = vmatmul.mubr.bf16.gmra.mrb[0].mxu0 %v3761
        %v3954 = vpop.f32.mrb[0].mxu0
        %v3955 = vadd.f32 %v3790, %v3954
        %v3956 = vpop.f32.mrb[0].mxu0
        %v3957 = vpop.f32.mrb[0].mxu0
        %v3958 = vadd.f32 %v3790, %v3957
        %v3959 = vpop.f32.mrb[0].mxu0
        %3960 = vmatprep.mubr.bf16.mxu0 0
        %3961 = vmatmul.mubr.bf16.gmra.mrb[0].mxu0 %v3762
        %v3962 = vpop.f32.mrb[0].mxu0
        %v3963 = vadd.f32 %v3790, %v3962
        %v3964 = vpop.f32.mrb[0].mxu0
        %v3965 = vpop.f32.mrb[0].mxu0
        %v3966 = vadd.f32 %v3790, %v3965
        %v3967 = vpop.f32.mrb[0].mxu0
        %3968 = vmatprep.mubr.bf16.mxu0 0
        %3969 = vmatmul.mubr.bf16.gmra.mrb[0].mxu0 %v3763
        %v3970 = vpop.f32.mrb[0].mxu0
        %v3971 = vadd.f32 %v3790, %v3970
        %v3972 = vpop.f32.mrb[0].mxu0
        %v3973 = vpop.f32.mrb[0].mxu0
        %v3974 = vadd.f32 %v3790, %v3973
        %v3975 = vpop.f32.mrb[0].mxu0
        %3976 = vmatprep.mubr.bf16.mxu0 0
        %3977 = vmatmul.mubr.bf16.gmra.mrb[0].mxu0 %v3764
        %v3978 = vpop.f32.mrb[0].mxu0
        %v3979 = vadd.f32 %v3790, %v3978
        %v3980 = vpop.f32.mrb[0].mxu0
        %v3981 = vpop.f32.mrb[0].mxu0
        %v3982 = vadd.f32 %v3790, %v3981
        %v3983 = vpop.f32.mrb[0].mxu0
        %3984 = vmatprep.mubr.bf16.mxu0 0
        %3985 = vmatmul.mubr.bf16.gmra.mrb[0].mxu0 %v3765
        %v3986 = vpop.f32.mrb[0].mxu0
        %v3987 = vadd.f32 %v3790, %v3986
        %v3988 = vpop.f32.mrb[0].mxu0
        %v3989 = vpop.f32.mrb[0].mxu0
        %v3990 = vadd.f32 %v3790, %v3989
        %v3991 = vpop.f32.mrb[0].mxu0
        %3992 = vmatprep.mubr.bf16.mxu0 0
        %3993 = vmatmul.mubr.bf16.gmra.mrb[0].mxu0 %v3766
        %v3994 = vpop.f32.mrb[0].mxu0
        %v3995 = vadd.f32 %v3790, %v3994
        %v3996 = vpop.f32.mrb[0].mxu0
        %v3997 = vpop.f32.mrb[0].mxu0
        %v3998 = vadd.f32 %v3790, %v3997
        %v3999 = vpop.f32.mrb[0].mxu0
        %4000 = vdwg.mxu0
        %v4001 = vmax.f32 %v3875, 0.0
        %v4002 = vmax.f32 %v3878, 0.0
        %v4003 = vmax.f32 %v3883, 0.0
        %v4004 = vmax.f32 %v3886, 0.0
        %v4005 = vmax.f32 %v3891, 0.0
        %v4006 = vmax.f32 %v3894, 0.0
        %v4007 = vmax.f32 %v3899, 0.0
        %v4008 = vmax.f32 %v3902, 0.0
        %v4009 = vmax.f32 %v3907, 0.0
        %v4010 = vmax.f32 %v3910, 0.0
        %v4011 = vmax.f32 %v3915, 0.0
        %v4012 = vmax.f32 %v3918, 0.0
        %v4013 = vmax.f32 %v3923, 0.0
        %v4014 = vmax.f32 %v3926, 0.0
        %v4015 = vmax.f32 %v3931, 0.0
        %v4016 = vmax.f32 %v3934, 0.0
        %v4017 = vmax.f32 %v3939, 0.0
        %v4018 = vmax.f32 %v3942, 0.0
        %v4019 = vmax.f32 %v3947, 0.0
        %v4020 = vmax.f32 %v3950, 0.0
        %v4021 = vmax.f32 %v3955, 0.0
        %v4022 = vmax.f32 %v3958, 0.0
        %v4023 = vmax.f32 %v3963, 0.0
        %v4024 = vmax.f32 %v3966, 0.0
        %v4025 = vmax.f32 %v3971, 0.0
        %v4026 = vmax.f32 %v3974, 0.0
        %v4027 = vmax.f32 %v3979, 0.0
        %v4028 = vmax.f32 %v3982, 0.0
        %v4029 = vmax.f32 %v3987, 0.0
        %v4030 = vmax.f32 %v3990, 0.0
        %v4031 = vmax.f32 %v3995, 0.0
        %v4032 = vmax.f32 %v3998, 0.0
        %v4033 = vpack.c.bf16 %v4002, %v4001
        %v4034 = vpack.c.bf16 %v4004, %v4003
        %v4035 = vpack.c.bf16 %v4006, %v4005
        %v4036 = vpack.c.bf16 %v4008, %v4007
        %v4037 = vpack.c.bf16 %v4010, %v4009
        %v4038 = vpack.c.bf16 %v4012, %v4011
        %v4039 = vpack.c.bf16 %v4014, %v4013
        %v4040 = vpack.c.bf16 %v4016, %v4015
        %v4041 = vpack.c.bf16 %v4018, %v4017
        %v4042 = vpack.c.bf16 %v4020, %v4019
        %v4043 = vpack.c.bf16 %v4022, %v4021
        %v4044 = vpack.c.bf16 %v4024, %v4023
        %v4045 = vpack.c.bf16 %v4026, %v4025
        %v4046 = vpack.c.bf16 %v4028, %v4027
        %v4047 = vpack.c.bf16 %v4030, %v4029
        %v4048 = vpack.c.bf16 %v4032, %v4031
        %s4049 = scalar_lea.vmem [#allocation7], 768
        %v4050 = vld [vmem:[%s4049] sm:$0xf]
        %v4051 = vld [vmem:[%s4049 + $0x4] sm:$0xf]
        %v4052 = vld [vmem:[%s4049 + $0x8] sm:$0xf]
        %v4053 = vld [vmem:[%s4049 + $0xc] sm:$0xf]
        %v4054 = vld [vmem:[%s4049 + $0x10] sm:$0xf]
        %v4055 = vld [vmem:[%s4049 + $0x14] sm:$0xf]
        %v4056 = vld [vmem:[%s4049 + $0x18] sm:$0xf]
        %v4057 = vld [vmem:[%s4049 + $0x1c] sm:$0xf]
        %v4058 = vld [vmem:[%s4049 + $0x20] sm:$0xf]
        %v4059 = vld [vmem:[%s4049 + $0x24] sm:$0xf]
        %v4060 = vld [vmem:[%s4049 + $0x28] sm:$0xf]
        %v4061 = vld [vmem:[%s4049 + $0x2c] sm:$0xf]
        %v4062 = vld [vmem:[%s4049 + $0x30] sm:$0xf]
        %v4063 = vld [vmem:[%s4049 + $0x34] sm:$0xf]
        %v4064 = vld [vmem:[%s4049 + $0x38] sm:$0xf]
        %v4065 = vld [vmem:[%s4049 + $0x3c] sm:$0xf]
        %s4066 = scalar_lea.vmem [#allocation8], 12
        %v4067 = vld [vmem:[%s4066] sm:$0x1]
        %v4069 = vlaneseq
        %v4070 = vshrl.u32 %v4069, 7
        %v4071 = vsub.s32 0, %v4070
        %v4072 = vrot.slane %v4067, %v4071
        %v4090 = vunpack.c.l.b16 %v4050
        %v4091 = vunpack.c.l.b16 %v4051
        %v4092 = vunpack.c.l.b16 %v4052
        %v4093 = vunpack.c.l.b16 %v4053
        %v4094 = vunpack.c.l.b16 %v4054
        %v4095 = vunpack.c.l.b16 %v4055
        %v4096 = vunpack.c.l.b16 %v4056
        %v4097 = vunpack.c.l.b16 %v4057
        %v4098 = vunpack.c.l.b16 %v4058
        %v4099 = vunpack.c.l.b16 %v4059
        %v4100 = vunpack.c.l.b16 %v4060
        %v4101 = vunpack.c.l.b16 %v4061
        %v4102 = vunpack.c.l.b16 %v4062
        %v4103 = vunpack.c.l.b16 %v4063
        %v4104 = vunpack.c.l.b16 %v4064
        %v4105 = vunpack.c.l.b16 %v4065
        %v4106 = vpack.c.b16 %v4091, %v4090
        %v4107 = vpack.c.b16 %v4093, %v4092
        %v4108 = vpack.c.b16 %v4095, %v4094
        %v4109 = vpack.c.b16 %v4097, %v4096
        %v4110 = vpack.c.b16 %v4099, %v4098
        %v4111 = vpack.c.b16 %v4101, %v4100
        %v4112 = vpack.c.b16 %v4103, %v4102
        %v4113 = vpack.c.b16 %v4105, %v4104
        %4122 = vmatprep.subr.bf16.mxu0 0
        %4123 = vmatpush1.bf16.msra.mxu0 %v4106
        %4124 = vmatprep.subr.bf16.mxu0 0
        %4125 = vmatpush1.bf16.msra.mxu0 %v4107
        %4126 = vmatprep.subr.bf16.mxu0 0
        %4127 = vmatpush1.bf16.msra.mxu0 %v4108
        %4128 = vmatprep.subr.bf16.mxu0 0
        %4129 = vmatpush1.bf16.msra.mxu0 %v4109
        %4130 = vmatprep.subr.bf16.mxu0 0
        %4131 = vmatpush1.bf16.msra.mxu0 %v4110
        %4132 = vmatprep.subr.bf16.mxu0 0
        %4133 = vmatpush1.bf16.msra.mxu0 %v4111
        %4134 = vmatprep.subr.bf16.mxu0 0
        %4135 = vmatpush1.bf16.msra.mxu0 %v4112
        %4136 = vmatprep.subr.bf16.mxu0 0
        %4137 = vmatpush1.bf16.msra.mxu0 %v4113
        %4138 = vmatprep.subr.bf16.mxu0 0
        %4139 = vmatpush1.bf16.msra.mxu0 0
        %4140 = vmatprep.subr.bf16.mxu0 0
        %4141 = vmatpush1.bf16.msra.mxu0 0
        %4142 = vmatprep.subr.bf16.mxu0 0
        %4143 = vmatpush1.bf16.msra.mxu0 0
        %4144 = vmatprep.subr.bf16.mxu0 0
        %4145 = vmatpush1.bf16.msra.mxu0 0
        %4146 = vmatprep.subr.bf16.mxu0 0
        %4147 = vmatpush1.bf16.msra.mxu0 0
        %4148 = vmatprep.subr.bf16.mxu0 0
        %4149 = vmatpush1.bf16.msra.mxu0 0
        %4150 = vmatprep.subr.bf16.mxu0 0
        %4151 = vmatpush1.bf16.msra.mxu0 0
        %4152 = vmatprep.subr.bf16.mxu0 0
        %4153 = vmatpush1.bf16.msra.mxu0 0
        %4154 = vmatprep.mubr.bf16.mxu0 0
        %4155 = vmatmul.mubr.bf16.gmra.mrb[0].mxu0 %v4033
        %v4156 = vpop.f32.mrb[0].mxu0
        %v4157 = vadd.f32 %v4072, %v4156
        %v4158 = vpop.f32.mrb[0].mxu0
        %v4159 = vpop.f32.mrb[0].mxu0
        %v4160 = vadd.f32 %v4072, %v4159
        %v4161 = vpop.f32.mrb[0].mxu0
        %4162 = vmatprep.mubr.bf16.mxu0 0
        %4163 = vmatmul.mubr.bf16.gmra.mrb[0].mxu0 %v4034
        %v4164 = vpop.f32.mrb[0].mxu0
        %v4165 = vadd.f32 %v4072, %v4164
        %v4166 = vpop.f32.mrb[0].mxu0
        %v4167 = vpop.f32.mrb[0].mxu0
        %v4168 = vadd.f32 %v4072, %v4167
        %v4169 = vpop.f32.mrb[0].mxu0
        %4170 = vmatprep.mubr.bf16.mxu0 0
        %4171 = vmatmul.mubr.bf16.gmra.mrb[0].mxu0 %v4035
        %v4172 = vpop.f32.mrb[0].mxu0
        %v4173 = vadd.f32 %v4072, %v4172
        %v4174 = vpop.f32.mrb[0].mxu0
        %v4175 = vpop.f32.mrb[0].mxu0
        %v4176 = vadd.f32 %v4072, %v4175
        %v4177 = vpop.f32.mrb[0].mxu0
        %4178 = vmatprep.mubr.bf16.mxu0 0
        %4179 = vmatmul.mubr.bf16.gmra.mrb[0].mxu0 %v4036
        %v4180 = vpop.f32.mrb[0].mxu0
        %v4181 = vadd.f32 %v4072, %v4180
        %v4182 = vpop.f32.mrb[0].mxu0
        %v4183 = vpop.f32.mrb[0].mxu0
        %v4184 = vadd.f32 %v4072, %v4183
        %v4185 = vpop.f32.mrb[0].mxu0
        %4186 = vmatprep.mubr.bf16.mxu0 0
        %4187 = vmatmul.mubr.bf16.gmra.mrb[0].mxu0 %v4037
        %v4188 = vpop.f32.mrb[0].mxu0
        %v4189 = vadd.f32 %v4072, %v4188
        %v4190 = vpop.f32.mrb[0].mxu0
        %v4191 = vpop.f32.mrb[0].mxu0
        %v4192 = vadd.f32 %v4072, %v4191
        %v4193 = vpop.f32.mrb[0].mxu0
        %4194 = vmatprep.mubr.bf16.mxu0 0
        %4195 = vmatmul.mubr.bf16.gmra.mrb[0].mxu0 %v4038
        %v4196 = vpop.f32.mrb[0].mxu0
        %v4197 = vadd.f32 %v4072, %v4196
        %v4198 = vpop.f32.mrb[0].mxu0
        %v4199 = vpop.f32.mrb[0].mxu0
        %v4200 = vadd.f32 %v4072, %v4199
        %v4201 = vpop.f32.mrb[0].mxu0
        %4202 = vmatprep.mubr.bf16.mxu0 0
        %4203 = vmatmul.mubr.bf16.gmra.mrb[0].mxu0 %v4039
        %v4204 = vpop.f32.mrb[0].mxu0
        %v4205 = vadd.f32 %v4072, %v4204
        %v4206 = vpop.f32.mrb[0].mxu0
        %v4207 = vpop.f32.mrb[0].mxu0
        %v4208 = vadd.f32 %v4072, %v4207
        %v4209 = vpop.f32.mrb[0].mxu0
        %4210 = vmatprep.mubr.bf16.mxu0 0
        %4211 = vmatmul.mubr.bf16.gmra.mrb[0].mxu0 %v4040
        %v4212 = vpop.f32.mrb[0].mxu0
        %v4213 = vadd.f32 %v4072, %v4212
        %v4214 = vpop.f32.mrb[0].mxu0
        %v4215 = vpop.f32.mrb[0].mxu0
        %v4216 = vadd.f32 %v4072, %v4215
        %v4217 = vpop.f32.mrb[0].mxu0
        %4218 = vmatprep.mubr.bf16.mxu0 0
        %4219 = vmatmul.mubr.bf16.gmra.mrb[0].mxu0 %v4041
        %v4220 = vpop.f32.mrb[0].mxu0
        %v4221 = vadd.f32 %v4072, %v4220
        %v4222 = vpop.f32.mrb[0].mxu0
        %v4223 = vpop.f32.mrb[0].mxu0
        %v4224 = vadd.f32 %v4072, %v4223
        %v4225 = vpop.f32.mrb[0].mxu0
        %4226 = vmatprep.mubr.bf16.mxu0 0
        %4227 = vmatmul.mubr.bf16.gmra.mrb[0].mxu0 %v4042
        %v4228 = vpop.f32.mrb[0].mxu0
        %v4229 = vadd.f32 %v4072, %v4228
        %v4230 = vpop.f32.mrb[0].mxu0
        %v4231 = vpop.f32.mrb[0].mxu0
        %v4232 = vadd.f32 %v4072, %v4231
        %v4233 = vpop.f32.mrb[0].mxu0
        %4234 = vmatprep.mubr.bf16.mxu0 0
        %4235 = vmatmul.mubr.bf16.gmra.mrb[0].mxu0 %v4043
        %v4236 = vpop.f32.mrb[0].mxu0
        %v4237 = vadd.f32 %v4072, %v4236
        %v4238 = vpop.f32.mrb[0].mxu0
        %v4239 = vpop.f32.mrb[0].mxu0
        %v4240 = vadd.f32 %v4072, %v4239
        %v4241 = vpop.f32.mrb[0].mxu0
        %4242 = vmatprep.mubr.bf16.mxu0 0
        %4243 = vmatmul.mubr.bf16.gmra.mrb[0].mxu0 %v4044
        %v4244 = vpop.f32.mrb[0].mxu0
        %v4245 = vadd.f32 %v4072, %v4244
        %v4246 = vpop.f32.mrb[0].mxu0
        %v4247 = vpop.f32.mrb[0].mxu0
        %v4248 = vadd.f32 %v4072, %v4247
        %v4249 = vpop.f32.mrb[0].mxu0
        %4250 = vmatprep.mubr.bf16.mxu0 0
        %4251 = vmatmul.mubr.bf16.gmra.mrb[0].mxu0 %v4045
        %v4252 = vpop.f32.mrb[0].mxu0
        %v4253 = vadd.f32 %v4072, %v4252
        %v4254 = vpop.f32.mrb[0].mxu0
        %v4255 = vpop.f32.mrb[0].mxu0
        %v4256 = vadd.f32 %v4072, %v4255
        %v4257 = vpop.f32.mrb[0].mxu0
        %4258 = vmatprep.mubr.bf16.mxu0 0
        %4259 = vmatmul.mubr.bf16.gmra.mrb[0].mxu0 %v4046
        %v4260 = vpop.f32.mrb[0].mxu0
        %v4261 = vadd.f32 %v4072, %v4260
        %v4262 = vpop.f32.mrb[0].mxu0
        %v4263 = vpop.f32.mrb[0].mxu0
        %v4264 = vadd.f32 %v4072, %v4263
        %v4265 = vpop.f32.mrb[0].mxu0
        %4266 = vmatprep.mubr.bf16.mxu0 0
        %4267 = vmatmul.mubr.bf16.gmra.mrb[0].mxu0 %v4047
        %v4268 = vpop.f32.mrb[0].mxu0
        %v4269 = vadd.f32 %v4072, %v4268
        %v4270 = vpop.f32.mrb[0].mxu0
        %v4271 = vpop.f32.mrb[0].mxu0
        %v4272 = vadd.f32 %v4072, %v4271
        %v4273 = vpop.f32.mrb[0].mxu0
        %4274 = vmatprep.mubr.bf16.mxu0 0
        %4275 = vmatmul.mubr.bf16.gmra.mrb[0].mxu0 %v4048
        %v4276 = vpop.f32.mrb[0].mxu0
        %v4277 = vadd.f32 %v4072, %v4276
        %v4278 = vpop.f32.mrb[0].mxu0
        %v4279 = vpop.f32.mrb[0].mxu0
        %v4280 = vadd.f32 %v4072, %v4279
        %v4281 = vpop.f32.mrb[0].mxu0
        %4282 = vdwg.mxu0
        %v4283 = vmax.f32 %v4157, 0.0
        %v4284 = vmax.f32 %v4160, 0.0
        %v4285 = vmax.f32 %v4165, 0.0
        %v4286 = vmax.f32 %v4168, 0.0
        %v4287 = vmax.f32 %v4173, 0.0
        %v4288 = vmax.f32 %v4176, 0.0
        %v4289 = vmax.f32 %v4181, 0.0
        %v4290 = vmax.f32 %v4184, 0.0
        %v4291 = vmax.f32 %v4189, 0.0
        %v4292 = vmax.f32 %v4192, 0.0
        %v4293 = vmax.f32 %v4197, 0.0
        %v4294 = vmax.f32 %v4200, 0.0
        %v4295 = vmax.f32 %v4205, 0.0
        %v4296 = vmax.f32 %v4208, 0.0
        %v4297 = vmax.f32 %v4213, 0.0
        %v4298 = vmax.f32 %v4216, 0.0
        %v4299 = vmax.f32 %v4221, 0.0
        %v4300 = vmax.f32 %v4224, 0.0
        %v4301 = vmax.f32 %v4229, 0.0
        %v4302 = vmax.f32 %v4232, 0.0
        %v4303 = vmax.f32 %v4237, 0.0
        %v4304 = vmax.f32 %v4240, 0.0
        %v4305 = vmax.f32 %v4245, 0.0
        %v4306 = vmax.f32 %v4248, 0.0
        %v4307 = vmax.f32 %v4253, 0.0
        %v4308 = vmax.f32 %v4256, 0.0
        %v4309 = vmax.f32 %v4261, 0.0
        %v4310 = vmax.f32 %v4264, 0.0
        %v4311 = vmax.f32 %v4269, 0.0
        %v4312 = vmax.f32 %v4272, 0.0
        %v4313 = vmax.f32 %v4277, 0.0
        %v4314 = vmax.f32 %v4280, 0.0
        %v4315 = vpack.c.bf16 %v4284, %v4283
        %v4316 = vpack.c.bf16 %v4286, %v4285
        %v4317 = vpack.c.bf16 %v4288, %v4287
        %v4318 = vpack.c.bf16 %v4290, %v4289
        %v4319 = vpack.c.bf16 %v4292, %v4291
        %v4320 = vpack.c.bf16 %v4294, %v4293
        %v4321 = vpack.c.bf16 %v4296, %v4295
        %v4322 = vpack.c.bf16 %v4298, %v4297
        %v4323 = vpack.c.bf16 %v4300, %v4299
        %v4324 = vpack.c.bf16 %v4302, %v4301
        %v4325 = vpack.c.bf16 %v4304, %v4303
        %v4326 = vpack.c.bf16 %v4306, %v4305
        %v4327 = vpack.c.bf16 %v4308, %v4307
        %v4328 = vpack.c.bf16 %v4310, %v4309
        %v4329 = vpack.c.bf16 %v4312, %v4311
        %v4330 = vpack.c.bf16 %v4314, %v4313
        %s4331 = scalar_lea.vmem [#allocation7], 832
        %v4332 = vld [vmem:[%s4331] sm:$0xf]
        %v4333 = vld [vmem:[%s4331 + $0x4] sm:$0xf]
        %v4334 = vld [vmem:[%s4331 + $0x8] sm:$0xf]
        %v4335 = vld [vmem:[%s4331 + $0xc] sm:$0xf]
        %v4336 = vld [vmem:[%s4331 + $0x10] sm:$0xf]
        %v4337 = vld [vmem:[%s4331 + $0x14] sm:$0xf]
        %v4338 = vld [vmem:[%s4331 + $0x18] sm:$0xf]
        %v4339 = vld [vmem:[%s4331 + $0x1c] sm:$0xf]
        %v4340 = vld [vmem:[%s4331 + $0x20] sm:$0xf]
        %v4341 = vld [vmem:[%s4331 + $0x24] sm:$0xf]
        %v4342 = vld [vmem:[%s4331 + $0x28] sm:$0xf]
        %v4343 = vld [vmem:[%s4331 + $0x2c] sm:$0xf]
        %v4344 = vld [vmem:[%s4331 + $0x30] sm:$0xf]
        %v4345 = vld [vmem:[%s4331 + $0x34] sm:$0xf]
        %v4346 = vld [vmem:[%s4331 + $0x38] sm:$0xf]
        %v4347 = vld [vmem:[%s4331 + $0x3c] sm:$0xf]
        %s4348 = scalar_lea.vmem [#allocation8], 13
        %v4349 = vld [vmem:[%s4348] sm:$0x1]
        %v4351 = vlaneseq
        %v4352 = vshrl.u32 %v4351, 7
        %v4353 = vsub.s32 0, %v4352
        %v4354 = vrot.slane %v4349, %v4353
        %v4372 = vunpack.c.l.b16 %v4332
        %v4373 = vunpack.c.l.b16 %v4333
        %v4374 = vunpack.c.l.b16 %v4334
        %v4375 = vunpack.c.l.b16 %v4335
        %v4376 = vunpack.c.l.b16 %v4336
        %v4377 = vunpack.c.l.b16 %v4337
        %v4378 = vunpack.c.l.b16 %v4338
        %v4379 = vunpack.c.l.b16 %v4339
        %v4380 = vunpack.c.l.b16 %v4340
        %v4381 = vunpack.c.l.b16 %v4341
        %v4382 = vunpack.c.l.b16 %v4342
        %v4383 = vunpack.c.l.b16 %v4343
        %v4384 = vunpack.c.l.b16 %v4344
        %v4385 = vunpack.c.l.b16 %v4345
        %v4386 = vunpack.c.l.b16 %v4346
        %v4387 = vunpack.c.l.b16 %v4347
        %v4388 = vpack.c.b16 %v4373, %v4372
        %v4389 = vpack.c.b16 %v4375, %v4374
        %v4390 = vpack.c.b16 %v4377, %v4376
        %v4391 = vpack.c.b16 %v4379, %v4378
        %v4392 = vpack.c.b16 %v4381, %v4380
        %v4393 = vpack.c.b16 %v4383, %v4382
        %v4394 = vpack.c.b16 %v4385, %v4384
        %v4395 = vpack.c.b16 %v4387, %v4386
        %4404 = vmatprep.subr.bf16.mxu0 0
        %4405 = vmatpush1.bf16.msra.mxu0 %v4388
        %4406 = vmatprep.subr.bf16.mxu0 0
        %4407 = vmatpush1.bf16.msra.mxu0 %v4389
        %4408 = vmatprep.subr.bf16.mxu0 0
        %4409 = vmatpush1.bf16.msra.mxu0 %v4390
        %4410 = vmatprep.subr.bf16.mxu0 0
        %4411 = vmatpush1.bf16.msra.mxu0 %v4391
        %4412 = vmatprep.subr.bf16.mxu0 0
        %4413 = vmatpush1.bf16.msra.mxu0 %v4392
        %4414 = vmatprep.subr.bf16.mxu0 0
        %4415 = vmatpush1.bf16.msra.mxu0 %v4393
        %4416 = vmatprep.subr.bf16.mxu0 0
        %4417 = vmatpush1.bf16.msra.mxu0 %v4394
        %4418 = vmatprep.subr.bf16.mxu0 0
        %4419 = vmatpush1.bf16.msra.mxu0 %v4395
        %4420 = vmatprep.subr.bf16.mxu0 0
        %4421 = vmatpush1.bf16.msra.mxu0 0
        %4422 = vmatprep.subr.bf16.mxu0 0
        %4423 = vmatpush1.bf16.msra.mxu0 0
        %4424 = vmatprep.subr.bf16.mxu0 0
        %4425 = vmatpush1.bf16.msra.mxu0 0
        %4426 = vmatprep.subr.bf16.mxu0 0
        %4427 = vmatpush1.bf16.msra.mxu0 0
        %4428 = vmatprep.subr.bf16.mxu0 0
        %4429 = vmatpush1.bf16.msra.mxu0 0
        %4430 = vmatprep.subr.bf16.mxu0 0
        %4431 = vmatpush1.bf16.msra.mxu0 0
        %4432 = vmatprep.subr.bf16.mxu0 0
        %4433 = vmatpush1.bf16.msra.mxu0 0
        %4434 = vmatprep.subr.bf16.mxu0 0
        %4435 = vmatpush1.bf16.msra.mxu0 0
        %4436 = vmatprep.mubr.bf16.mxu0 0
        %4437 = vmatmul.mubr.bf16.gmra.mrb[0].mxu0 %v4315
        %v4438 = vpop.f32.mrb[0].mxu0
        %v4439 = vadd.f32 %v4354, %v4438
        %v4440 = vpop.f32.mrb[0].mxu0
        %v4441 = vpop.f32.mrb[0].mxu0
        %v4442 = vadd.f32 %v4354, %v4441
        %v4443 = vpop.f32.mrb[0].mxu0
        %4444 = vmatprep.mubr.bf16.mxu0 0
        %4445 = vmatmul.mubr.bf16.gmra.mrb[0].mxu0 %v4316
        %v4446 = vpop.f32.mrb[0].mxu0
        %v4447 = vadd.f32 %v4354, %v4446
        %v4448 = vpop.f32.mrb[0].mxu0
        %v4449 = vpop.f32.mrb[0].mxu0
        %v4450 = vadd.f32 %v4354, %v4449
        %v4451 = vpop.f32.mrb[0].mxu0
        %4452 = vmatprep.mubr.bf16.mxu0 0
        %4453 = vmatmul.mubr.bf16.gmra.mrb[0].mxu0 %v4317
        %v4454 = vpop.f32.mrb[0].mxu0
        %v4455 = vadd.f32 %v4354, %v4454
        %v4456 = vpop.f32.mrb[0].mxu0
        %v4457 = vpop.f32.mrb[0].mxu0
        %v4458 = vadd.f32 %v4354, %v4457
        %v4459 = vpop.f32.mrb[0].mxu0
        %4460 = vmatprep.mubr.bf16.mxu0 0
        %4461 = vmatmul.mubr.bf16.gmra.mrb[0].mxu0 %v4318
        %v4462 = vpop.f32.mrb[0].mxu0
        %v4463 = vadd.f32 %v4354, %v4462
        %v4464 = vpop.f32.mrb[0].mxu0
        %v4465 = vpop.f32.mrb[0].mxu0
        %v4466 = vadd.f32 %v4354, %v4465
        %v4467 = vpop.f32.mrb[0].mxu0
        %4468 = vmatprep.mubr.bf16.mxu0 0
        %4469 = vmatmul.mubr.bf16.gmra.mrb[0].mxu0 %v4319
        %v4470 = vpop.f32.mrb[0].mxu0
        %v4471 = vadd.f32 %v4354, %v4470
        %v4472 = vpop.f32.mrb[0].mxu0
        %v4473 = vpop.f32.mrb[0].mxu0
        %v4474 = vadd.f32 %v4354, %v4473
        %v4475 = vpop.f32.mrb[0].mxu0
        %4476 = vmatprep.mubr.bf16.mxu0 0
        %4477 = vmatmul.mubr.bf16.gmra.mrb[0].mxu0 %v4320
        %v4478 = vpop.f32.mrb[0].mxu0
        %v4479 = vadd.f32 %v4354, %v4478
        %v4480 = vpop.f32.mrb[0].mxu0
        %v4481 = vpop.f32.mrb[0].mxu0
        %v4482 = vadd.f32 %v4354, %v4481
        %v4483 = vpop.f32.mrb[0].mxu0
        %4484 = vmatprep.mubr.bf16.mxu0 0
        %4485 = vmatmul.mubr.bf16.gmra.mrb[0].mxu0 %v4321
        %v4486 = vpop.f32.mrb[0].mxu0
        %v4487 = vadd.f32 %v4354, %v4486
        %v4488 = vpop.f32.mrb[0].mxu0
        %v4489 = vpop.f32.mrb[0].mxu0
        %v4490 = vadd.f32 %v4354, %v4489
        %v4491 = vpop.f32.mrb[0].mxu0
        %4492 = vmatprep.mubr.bf16.mxu0 0
        %4493 = vmatmul.mubr.bf16.gmra.mrb[0].mxu0 %v4322
        %v4494 = vpop.f32.mrb[0].mxu0
        %v4495 = vadd.f32 %v4354, %v4494
        %v4496 = vpop.f32.mrb[0].mxu0
        %v4497 = vpop.f32.mrb[0].mxu0
        %v4498 = vadd.f32 %v4354, %v4497
        %v4499 = vpop.f32.mrb[0].mxu0
        %4500 = vmatprep.mubr.bf16.mxu0 0
        %4501 = vmatmul.mubr.bf16.gmra.mrb[0].mxu0 %v4323
        %v4502 = vpop.f32.mrb[0].mxu0
        %v4503 = vadd.f32 %v4354, %v4502
        %v4504 = vpop.f32.mrb[0].mxu0
        %v4505 = vpop.f32.mrb[0].mxu0
        %v4506 = vadd.f32 %v4354, %v4505
        %v4507 = vpop.f32.mrb[0].mxu0
        %4508 = vmatprep.mubr.bf16.mxu0 0
        %4509 = vmatmul.mubr.bf16.gmra.mrb[0].mxu0 %v4324
        %v4510 = vpop.f32.mrb[0].mxu0
        %v4511 = vadd.f32 %v4354, %v4510
        %v4512 = vpop.f32.mrb[0].mxu0
        %v4513 = vpop.f32.mrb[0].mxu0
        %v4514 = vadd.f32 %v4354, %v4513
        %v4515 = vpop.f32.mrb[0].mxu0
        %4516 = vmatprep.mubr.bf16.mxu0 0
        %4517 = vmatmul.mubr.bf16.gmra.mrb[0].mxu0 %v4325
        %v4518 = vpop.f32.mrb[0].mxu0
        %v4519 = vadd.f32 %v4354, %v4518
        %v4520 = vpop.f32.mrb[0].mxu0
        %v4521 = vpop.f32.mrb[0].mxu0
        %v4522 = vadd.f32 %v4354, %v4521
        %v4523 = vpop.f32.mrb[0].mxu0
        %4524 = vmatprep.mubr.bf16.mxu0 0
        %4525 = vmatmul.mubr.bf16.gmra.mrb[0].mxu0 %v4326
        %v4526 = vpop.f32.mrb[0].mxu0
        %v4527 = vadd.f32 %v4354, %v4526
        %v4528 = vpop.f32.mrb[0].mxu0
        %v4529 = vpop.f32.mrb[0].mxu0
        %v4530 = vadd.f32 %v4354, %v4529
        %v4531 = vpop.f32.mrb[0].mxu0
        %4532 = vmatprep.mubr.bf16.mxu0 0
        %4533 = vmatmul.mubr.bf16.gmra.mrb[0].mxu0 %v4327
        %v4534 = vpop.f32.mrb[0].mxu0
        %v4535 = vadd.f32 %v4354, %v4534
        %v4536 = vpop.f32.mrb[0].mxu0
        %v4537 = vpop.f32.mrb[0].mxu0
        %v4538 = vadd.f32 %v4354, %v4537
        %v4539 = vpop.f32.mrb[0].mxu0
        %4540 = vmatprep.mubr.bf16.mxu0 0
        %4541 = vmatmul.mubr.bf16.gmra.mrb[0].mxu0 %v4328
        %v4542 = vpop.f32.mrb[0].mxu0
        %v4543 = vadd.f32 %v4354, %v4542
        %v4544 = vpop.f32.mrb[0].mxu0
        %v4545 = vpop.f32.mrb[0].mxu0
        %v4546 = vadd.f32 %v4354, %v4545
        %v4547 = vpop.f32.mrb[0].mxu0
        %4548 = vmatprep.mubr.bf16.mxu0 0
        %4549 = vmatmul.mubr.bf16.gmra.mrb[0].mxu0 %v4329
        %v4550 = vpop.f32.mrb[0].mxu0
        %v4551 = vadd.f32 %v4354, %v4550
        %v4552 = vpop.f32.mrb[0].mxu0
        %v4553 = vpop.f32.mrb[0].mxu0
        %v4554 = vadd.f32 %v4354, %v4553
        %v4555 = vpop.f32.mrb[0].mxu0
        %4556 = vmatprep.mubr.bf16.mxu0 0
        %4557 = vmatmul.mubr.bf16.gmra.mrb[0].mxu0 %v4330
        %v4558 = vpop.f32.mrb[0].mxu0
        %v4559 = vadd.f32 %v4354, %v4558
        %v4560 = vpop.f32.mrb[0].mxu0
        %v4561 = vpop.f32.mrb[0].mxu0
        %v4562 = vadd.f32 %v4354, %v4561
        %v4563 = vpop.f32.mrb[0].mxu0
        %4564 = vdwg.mxu0
        %v4565 = vmax.f32 %v4439, 0.0
        %v4566 = vmax.f32 %v4442, 0.0
        %v4567 = vmax.f32 %v4447, 0.0
        %v4568 = vmax.f32 %v4450, 0.0
        %v4569 = vmax.f32 %v4455, 0.0
        %v4570 = vmax.f32 %v4458, 0.0
        %v4571 = vmax.f32 %v4463, 0.0
        %v4572 = vmax.f32 %v4466, 0.0
        %v4573 = vmax.f32 %v4471, 0.0
        %v4574 = vmax.f32 %v4474, 0.0
        %v4575 = vmax.f32 %v4479, 0.0
        %v4576 = vmax.f32 %v4482, 0.0
        %v4577 = vmax.f32 %v4487, 0.0
        %v4578 = vmax.f32 %v4490, 0.0
        %v4579 = vmax.f32 %v4495, 0.0
        %v4580 = vmax.f32 %v4498, 0.0
        %v4581 = vmax.f32 %v4503, 0.0
        %v4582 = vmax.f32 %v4506, 0.0
        %v4583 = vmax.f32 %v4511, 0.0
        %v4584 = vmax.f32 %v4514, 0.0
        %v4585 = vmax.f32 %v4519, 0.0
        %v4586 = vmax.f32 %v4522, 0.0
        %v4587 = vmax.f32 %v4527, 0.0
        %v4588 = vmax.f32 %v4530, 0.0
        %v4589 = vmax.f32 %v4535, 0.0
        %v4590 = vmax.f32 %v4538, 0.0
        %v4591 = vmax.f32 %v4543, 0.0
        %v4592 = vmax.f32 %v4546, 0.0
        %v4593 = vmax.f32 %v4551, 0.0
        %v4594 = vmax.f32 %v4554, 0.0
        %v4595 = vmax.f32 %v4559, 0.0
        %v4596 = vmax.f32 %v4562, 0.0
        %v4597 = vpack.c.bf16 %v4566, %v4565
        %v4598 = vpack.c.bf16 %v4568, %v4567
        %v4599 = vpack.c.bf16 %v4570, %v4569
        %v4600 = vpack.c.bf16 %v4572, %v4571
        %v4601 = vpack.c.bf16 %v4574, %v4573
        %v4602 = vpack.c.bf16 %v4576, %v4575
        %v4603 = vpack.c.bf16 %v4578, %v4577
        %v4604 = vpack.c.bf16 %v4580, %v4579
        %v4605 = vpack.c.bf16 %v4582, %v4581
        %v4606 = vpack.c.bf16 %v4584, %v4583
        %v4607 = vpack.c.bf16 %v4586, %v4585
        %v4608 = vpack.c.bf16 %v4588, %v4587
        %v4609 = vpack.c.bf16 %v4590, %v4589
        %v4610 = vpack.c.bf16 %v4592, %v4591
        %v4611 = vpack.c.bf16 %v4594, %v4593
        %v4612 = vpack.c.bf16 %v4596, %v4595
        %s4613 = scalar_lea.vmem [#allocation7], 896
        %v4614 = vld [vmem:[%s4613] sm:$0xf]
        %v4615 = vld [vmem:[%s4613 + $0x4] sm:$0xf]
        %v4616 = vld [vmem:[%s4613 + $0x8] sm:$0xf]
        %v4617 = vld [vmem:[%s4613 + $0xc] sm:$0xf]
        %v4618 = vld [vmem:[%s4613 + $0x10] sm:$0xf]
        %v4619 = vld [vmem:[%s4613 + $0x14] sm:$0xf]
        %v4620 = vld [vmem:[%s4613 + $0x18] sm:$0xf]
        %v4621 = vld [vmem:[%s4613 + $0x1c] sm:$0xf]
        %v4622 = vld [vmem:[%s4613 + $0x20] sm:$0xf]
        %v4623 = vld [vmem:[%s4613 + $0x24] sm:$0xf]
        %v4624 = vld [vmem:[%s4613 + $0x28] sm:$0xf]
        %v4625 = vld [vmem:[%s4613 + $0x2c] sm:$0xf]
        %v4626 = vld [vmem:[%s4613 + $0x30] sm:$0xf]
        %v4627 = vld [vmem:[%s4613 + $0x34] sm:$0xf]
        %v4628 = vld [vmem:[%s4613 + $0x38] sm:$0xf]
        %v4629 = vld [vmem:[%s4613 + $0x3c] sm:$0xf]
        %s4630 = scalar_lea.vmem [#allocation8], 14
        %v4631 = vld [vmem:[%s4630] sm:$0x1]
        %v4633 = vlaneseq
        %v4634 = vshrl.u32 %v4633, 7
        %v4635 = vsub.s32 0, %v4634
        %v4636 = vrot.slane %v4631, %v4635
        %v4654 = vunpack.c.l.b16 %v4614
        %v4655 = vunpack.c.l.b16 %v4615
        %v4656 = vunpack.c.l.b16 %v4616
        %v4657 = vunpack.c.l.b16 %v4617
        %v4658 = vunpack.c.l.b16 %v4618
        %v4659 = vunpack.c.l.b16 %v4619
        %v4660 = vunpack.c.l.b16 %v4620
        %v4661 = vunpack.c.l.b16 %v4621
        %v4662 = vunpack.c.l.b16 %v4622
        %v4663 = vunpack.c.l.b16 %v4623
        %v4664 = vunpack.c.l.b16 %v4624
        %v4665 = vunpack.c.l.b16 %v4625
        %v4666 = vunpack.c.l.b16 %v4626
        %v4667 = vunpack.c.l.b16 %v4627
        %v4668 = vunpack.c.l.b16 %v4628
        %v4669 = vunpack.c.l.b16 %v4629
        %v4670 = vpack.c.b16 %v4655, %v4654
        %v4671 = vpack.c.b16 %v4657, %v4656
        %v4672 = vpack.c.b16 %v4659, %v4658
        %v4673 = vpack.c.b16 %v4661, %v4660
        %v4674 = vpack.c.b16 %v4663, %v4662
        %v4675 = vpack.c.b16 %v4665, %v4664
        %v4676 = vpack.c.b16 %v4667, %v4666
        %v4677 = vpack.c.b16 %v4669, %v4668
        %4686 = vmatprep.subr.bf16.mxu0 0
        %4687 = vmatpush1.bf16.msra.mxu0 %v4670
        %4688 = vmatprep.subr.bf16.mxu0 0
        %4689 = vmatpush1.bf16.msra.mxu0 %v4671
        %4690 = vmatprep.subr.bf16.mxu0 0
        %4691 = vmatpush1.bf16.msra.mxu0 %v4672
        %4692 = vmatprep.subr.bf16.mxu0 0
        %4693 = vmatpush1.bf16.msra.mxu0 %v4673
        %4694 = vmatprep.subr.bf16.mxu0 0
        %4695 = vmatpush1.bf16.msra.mxu0 %v4674
        %4696 = vmatprep.subr.bf16.mxu0 0
        %4697 = vmatpush1.bf16.msra.mxu0 %v4675
        %4698 = vmatprep.subr.bf16.mxu0 0
        %4699 = vmatpush1.bf16.msra.mxu0 %v4676
        %4700 = vmatprep.subr.bf16.mxu0 0
        %4701 = vmatpush1.bf16.msra.mxu0 %v4677
        %4702 = vmatprep.subr.bf16.mxu0 0
        %4703 = vmatpush1.bf16.msra.mxu0 0
        %4704 = vmatprep.subr.bf16.mxu0 0
        %4705 = vmatpush1.bf16.msra.mxu0 0
        %4706 = vmatprep.subr.bf16.mxu0 0
        %4707 = vmatpush1.bf16.msra.mxu0 0
        %4708 = vmatprep.subr.bf16.mxu0 0
        %4709 = vmatpush1.bf16.msra.mxu0 0
        %4710 = vmatprep.subr.bf16.mxu0 0
        %4711 = vmatpush1.bf16.msra.mxu0 0
        %4712 = vmatprep.subr.bf16.mxu0 0
        %4713 = vmatpush1.bf16.msra.mxu0 0
        %4714 = vmatprep.subr.bf16.mxu0 0
        %4715 = vmatpush1.bf16.msra.mxu0 0
        %4716 = vmatprep.subr.bf16.mxu0 0
        %4717 = vmatpush1.bf16.msra.mxu0 0
        %4718 = vmatprep.mubr.bf16.mxu0 0
        %4719 = vmatmul.mubr.bf16.gmra.mrb[0].mxu0 %v4597
        %v4720 = vpop.f32.mrb[0].mxu0
        %v4721 = vadd.f32 %v4636, %v4720
        %v4722 = vpop.f32.mrb[0].mxu0
        %v4723 = vpop.f32.mrb[0].mxu0
        %v4724 = vadd.f32 %v4636, %v4723
        %v4725 = vpop.f32.mrb[0].mxu0
        %4726 = vmatprep.mubr.bf16.mxu0 0
        %4727 = vmatmul.mubr.bf16.gmra.mrb[0].mxu0 %v4598
        %v4728 = vpop.f32.mrb[0].mxu0
        %v4729 = vadd.f32 %v4636, %v4728
        %v4730 = vpop.f32.mrb[0].mxu0
        %v4731 = vpop.f32.mrb[0].mxu0
        %v4732 = vadd.f32 %v4636, %v4731
        %v4733 = vpop.f32.mrb[0].mxu0
        %4734 = vmatprep.mubr.bf16.mxu0 0
        %4735 = vmatmul.mubr.bf16.gmra.mrb[0].mxu0 %v4599
        %v4736 = vpop.f32.mrb[0].mxu0
        %v4737 = vadd.f32 %v4636, %v4736
        %v4738 = vpop.f32.mrb[0].mxu0
        %v4739 = vpop.f32.mrb[0].mxu0
        %v4740 = vadd.f32 %v4636, %v4739
        %v4741 = vpop.f32.mrb[0].mxu0
        %4742 = vmatprep.mubr.bf16.mxu0 0
        %4743 = vmatmul.mubr.bf16.gmra.mrb[0].mxu0 %v4600
        %v4744 = vpop.f32.mrb[0].mxu0
        %v4745 = vadd.f32 %v4636, %v4744
        %v4746 = vpop.f32.mrb[0].mxu0
        %v4747 = vpop.f32.mrb[0].mxu0
        %v4748 = vadd.f32 %v4636, %v4747
        %v4749 = vpop.f32.mrb[0].mxu0
        %4750 = vmatprep.mubr.bf16.mxu0 0
        %4751 = vmatmul.mubr.bf16.gmra.mrb[0].mxu0 %v4601
        %v4752 = vpop.f32.mrb[0].mxu0
        %v4753 = vadd.f32 %v4636, %v4752
        %v4754 = vpop.f32.mrb[0].mxu0
        %v4755 = vpop.f32.mrb[0].mxu0
        %v4756 = vadd.f32 %v4636, %v4755
        %v4757 = vpop.f32.mrb[0].mxu0
        %4758 = vmatprep.mubr.bf16.mxu0 0
        %4759 = vmatmul.mubr.bf16.gmra.mrb[0].mxu0 %v4602
        %v4760 = vpop.f32.mrb[0].mxu0
        %v4761 = vadd.f32 %v4636, %v4760
        %v4762 = vpop.f32.mrb[0].mxu0
        %v4763 = vpop.f32.mrb[0].mxu0
        %v4764 = vadd.f32 %v4636, %v4763
        %v4765 = vpop.f32.mrb[0].mxu0
        %4766 = vmatprep.mubr.bf16.mxu0 0
        %4767 = vmatmul.mubr.bf16.gmra.mrb[0].mxu0 %v4603
        %v4768 = vpop.f32.mrb[0].mxu0
        %v4769 = vadd.f32 %v4636, %v4768
        %v4770 = vpop.f32.mrb[0].mxu0
        %v4771 = vpop.f32.mrb[0].mxu0
        %v4772 = vadd.f32 %v4636, %v4771
        %v4773 = vpop.f32.mrb[0].mxu0
        %4774 = vmatprep.mubr.bf16.mxu0 0
        %4775 = vmatmul.mubr.bf16.gmra.mrb[0].mxu0 %v4604
        %v4776 = vpop.f32.mrb[0].mxu0
        %v4777 = vadd.f32 %v4636, %v4776
        %v4778 = vpop.f32.mrb[0].mxu0
        %v4779 = vpop.f32.mrb[0].mxu0
        %v4780 = vadd.f32 %v4636, %v4779
        %v4781 = vpop.f32.mrb[0].mxu0
        %4782 = vmatprep.mubr.bf16.mxu0 0
        %4783 = vmatmul.mubr.bf16.gmra.mrb[0].mxu0 %v4605
        %v4784 = vpop.f32.mrb[0].mxu0
        %v4785 = vadd.f32 %v4636, %v4784
        %v4786 = vpop.f32.mrb[0].mxu0
        %v4787 = vpop.f32.mrb[0].mxu0
        %v4788 = vadd.f32 %v4636, %v4787
        %v4789 = vpop.f32.mrb[0].mxu0
        %4790 = vmatprep.mubr.bf16.mxu0 0
        %4791 = vmatmul.mubr.bf16.gmra.mrb[0].mxu0 %v4606
        %v4792 = vpop.f32.mrb[0].mxu0
        %v4793 = vadd.f32 %v4636, %v4792
        %v4794 = vpop.f32.mrb[0].mxu0
        %v4795 = vpop.f32.mrb[0].mxu0
        %v4796 = vadd.f32 %v4636, %v4795
        %v4797 = vpop.f32.mrb[0].mxu0
        %4798 = vmatprep.mubr.bf16.mxu0 0
        %4799 = vmatmul.mubr.bf16.gmra.mrb[0].mxu0 %v4607
        %v4800 = vpop.f32.mrb[0].mxu0
        %v4801 = vadd.f32 %v4636, %v4800
        %v4802 = vpop.f32.mrb[0].mxu0
        %v4803 = vpop.f32.mrb[0].mxu0
        %v4804 = vadd.f32 %v4636, %v4803
        %v4805 = vpop.f32.mrb[0].mxu0
        %4806 = vmatprep.mubr.bf16.mxu0 0
        %4807 = vmatmul.mubr.bf16.gmra.mrb[0].mxu0 %v4608
        %v4808 = vpop.f32.mrb[0].mxu0
        %v4809 = vadd.f32 %v4636, %v4808
        %v4810 = vpop.f32.mrb[0].mxu0
        %v4811 = vpop.f32.mrb[0].mxu0
        %v4812 = vadd.f32 %v4636, %v4811
        %v4813 = vpop.f32.mrb[0].mxu0
        %4814 = vmatprep.mubr.bf16.mxu0 0
        %4815 = vmatmul.mubr.bf16.gmra.mrb[0].mxu0 %v4609
        %v4816 = vpop.f32.mrb[0].mxu0
        %v4817 = vadd.f32 %v4636, %v4816
        %v4818 = vpop.f32.mrb[0].mxu0
        %v4819 = vpop.f32.mrb[0].mxu0
        %v4820 = vadd.f32 %v4636, %v4819
        %v4821 = vpop.f32.mrb[0].mxu0
        %4822 = vmatprep.mubr.bf16.mxu0 0
        %4823 = vmatmul.mubr.bf16.gmra.mrb[0].mxu0 %v4610
        %v4824 = vpop.f32.mrb[0].mxu0
        %v4825 = vadd.f32 %v4636, %v4824
        %v4826 = vpop.f32.mrb[0].mxu0
        %v4827 = vpop.f32.mrb[0].mxu0
        %v4828 = vadd.f32 %v4636, %v4827
        %v4829 = vpop.f32.mrb[0].mxu0
        %4830 = vmatprep.mubr.bf16.mxu0 0
        %4831 = vmatmul.mubr.bf16.gmra.mrb[0].mxu0 %v4611
        %v4832 = vpop.f32.mrb[0].mxu0
        %v4833 = vadd.f32 %v4636, %v4832
        %v4834 = vpop.f32.mrb[0].mxu0
        %v4835 = vpop.f32.mrb[0].mxu0
        %v4836 = vadd.f32 %v4636, %v4835
        %v4837 = vpop.f32.mrb[0].mxu0
        %4838 = vmatprep.mubr.bf16.mxu0 0
        %4839 = vmatmul.mubr.bf16.gmra.mrb[0].mxu0 %v4612
        %v4840 = vpop.f32.mrb[0].mxu0
        %v4841 = vadd.f32 %v4636, %v4840
        %v4842 = vpop.f32.mrb[0].mxu0
        %v4843 = vpop.f32.mrb[0].mxu0
        %v4844 = vadd.f32 %v4636, %v4843
        %v4845 = vpop.f32.mrb[0].mxu0
        %4846 = vdwg.mxu0
        %4847 = vst [vmem:[%s342] sm:$0xff] %v4721
        %4848 = vst [vmem:[%s342 + $0x8] sm:$0xff] %v4724
        %4849 = vst [vmem:[%s342 + $0x10] sm:$0xff] %v4729
        %4850 = vst [vmem:[%s342 + $0x18] sm:$0xff] %v4732
        %4851 = vst [vmem:[%s342 + $0x20] sm:$0xff] %v4737
        %4852 = vst [vmem:[%s342 + $0x28] sm:$0xff] %v4740
        %4853 = vst [vmem:[%s342 + $0x30] sm:$0xff] %v4745
        %4854 = vst [vmem:[%s342 + $0x38] sm:$0xff] %v4748
        %4855 = vst [vmem:[%s342 + $0x40] sm:$0xff] %v4753
        %4856 = vst [vmem:[%s342 + $0x48] sm:$0xff] %v4756
        %4857 = vst [vmem:[%s342 + $0x50] sm:$0xff] %v4761
        %4858 = vst [vmem:[%s342 + $0x58] sm:$0xff] %v4764
        %4859 = vst [vmem:[%s342 + $0x60] sm:$0xff] %v4769
        %4860 = vst [vmem:[%s342 + $0x68] sm:$0xff] %v4772
        %4861 = vst [vmem:[%s342 + $0x70] sm:$0xff] %v4777
        %4862 = vst [vmem:[%s342 + $0x78] sm:$0xff] %v4780
        %4863 = vst [vmem:[%s342 + $0x80] sm:$0xff] %v4785
        %4864 = vst [vmem:[%s342 + $0x88] sm:$0xff] %v4788
        %4865 = vst [vmem:[%s342 + $0x90] sm:$0xff] %v4793
        %4866 = vst [vmem:[%s342 + $0x98] sm:$0xff] %v4796
        %4867 = vst [vmem:[%s342 + $0xa0] sm:$0xff] %v4801
        %4868 = vst [vmem:[%s342 + $0xa8] sm:$0xff] %v4804
        %4869 = vst [vmem:[%s342 + $0xb0] sm:$0xff] %v4809
        %4870 = vst [vmem:[%s342 + $0xb8] sm:$0xff] %v4812
        %4871 = vst [vmem:[%s342 + $0xc0] sm:$0xff] %v4817
        %4872 = vst [vmem:[%s342 + $0xc8] sm:$0xff] %v4820
        %4873 = vst [vmem:[%s342 + $0xd0] sm:$0xff] %v4825
        %4874 = vst [vmem:[%s342 + $0xd8] sm:$0xff] %v4828
        %4875 = vst [vmem:[%s342 + $0xe0] sm:$0xff] %v4833
        %4876 = vst [vmem:[%s342 + $0xe8] sm:$0xff] %v4836
        %4877 = vst [vmem:[%s342 + $0xf0] sm:$0xff] %v4841
        %4878 = vst [vmem:[%s342 + $0xf8] sm:$0xff] %v4844
        %s4879 = sand.u32 %s133, 1
        %s4880 = scalar_lea.sflag [#allocation4], %s4879
        %s4881 = sand.u32 %s133, 1
        %s4882 = smul.addr %s4881, 256
        %s4883 = scalar_lea.vmem [#allocation10], %s4882
        %s4884 = sand.u32 %s31, 1
        %s4885 = scalar_lea.sflag [#allocation12], %s4884
        %s4886 = sand.u32 %s159, 1
        %s4887 = smul.addr %s4886, 256
        %s4888 = scalar_lea.vmem [#allocation11], %s4887
        %s4889 = sand.u32 %s31, 1
        %s4890 = scalar_lea.sflag [#allocation12], %s4889
        %s4891 = sand.u32 %s185, 1
        %s4892 = smul.addr %s4891, 256
        %s4893 = scalar_lea.vmem [#allocation13], %s4892
        // Predicated region
        $region53: #{tpu_custom_call.1} parent=35 // pred_check
          %p4894 = pneg %p143
        $region54: #{tpu_custom_call.1} parent=35 // pred_check_branch
          %4896 = sbr.rel (%p4894) target = $region56
        $region55: #{tpu_custom_call.1} parent=35 // pred_region
          %s4897 = smul.u32 32, %s31
          %s4899 = ssub.s32 4096, 4096
          %4900 = vsyncadd %s4880, %s4899
          %s4901 = smul.addr %s4897, 128
          %s4902 = scalar_lea.hbm %s4, %s4901
          %s4903 = sshll.u32 %s4883, 4
          %s4904 = int_to_ptr.vmem [resolvable:$true] %s4903
          %4909 = dma.vmem_to_hbm [thread:$0]  %s4904, 4096, %s4902, %s4880, 128, 128, 8
        $region56: #{tpu_custom_call.1} parent=35 // pred_fallthru
          _
        // Predicated region
        $region57: #{tpu_custom_call.1} parent=35 // pred_check
          %p4910 = pneg %p169
        $region58: #{tpu_custom_call.1} parent=35 // pred_check_branch
          %4912 = sbr.rel (%p4910) target = $region60
        $region59: #{tpu_custom_call.1} parent=35 // pred_region
          %s4913 = smul.u32 32, %s31
          %s4915 = ssub.s32 4096, 4096
          %4916 = vsyncadd %s4885, %s4915
          %s4917 = smul.addr %s4913, 128
          %s4918 = scalar_lea.hbm %s5, %s4917
          %s4919 = sshll.u32 %s4888, 4
          %s4920 = int_to_ptr.vmem [resolvable:$true] %s4919
          %4925 = dma.vmem_to_hbm [thread:$0]  %s4920, 4096, %s4918, %s4885, 128, 128, 8
        $region60: #{tpu_custom_call.1} parent=35 // pred_fallthru
          _
        // Predicated region
        $region61: #{tpu_custom_call.1} parent=35 // pred_check
          %p4926 = pneg %p195
        $region62: #{tpu_custom_call.1} parent=35 // pred_check_branch
          %4928 = sbr.rel (%p4926) target = $region64
        $region63: #{tpu_custom_call.1} parent=35 // pred_region
          %s4929 = smul.u32 32, %s31
          %s4931 = ssub.s32 4096, 4096
          %4932 = vsyncadd %s4890, %s4931
          %s4933 = smul.addr %s4929, 128
          %s4934 = scalar_lea.hbm %s6, %s4933
          %s4935 = sshll.u32 %s4893, 4
          %s4936 = int_to_ptr.vmem [resolvable:$true] %s4935
          %4941 = dma.vmem_to_hbm [thread:$0]  %s4936, 4096, %s4934, %s4890, 128, 128, 8
        $region64: #{tpu_custom_call.1} parent=35 // pred_fallthru
          _
      $region36: #{tpu_custom_call.1} parent=5 // pred_fallthru
        _
      %p4942 = scmp.le.s32.totalorder 2, %s26
      // Predicated region
      $region65: #{tpu_custom_call.1} parent=5 // pred_check
        %p4943 = pneg %p4942
      $region66: #{tpu_custom_call.1} parent=5 // pred_check_branch
        %4945 = sbr.rel (%p4943) target = $region68
      $region67: #{tpu_custom_call.1} parent=5 // pred_region
        %s4946 = ssub.s32 %s26, 2
        // Predicated region
        $region69: #{tpu_custom_call.1} parent=67 // pred_check
          %p4947 = pneg %p149
        $region70: #{tpu_custom_call.1} parent=67 // pred_check_branch
          %4949 = sbr.rel (%p4947) target = $region72
        $region71: #{tpu_custom_call.1} parent=67 // pred_region
          %s4950 = sand.u32 %s134, 1
          %s4951 = scalar_lea.sflag [#allocation4], %s4950
          %s4952 = sand.u32 %s134, 1
          %s4953 = smul.addr %s4952, 256
          %s4954 = scalar_lea.vmem [#allocation10], %s4953
          %4955 = dma.done %s4951, 4096
        $region72: #{tpu_custom_call.1} parent=67 // pred_fallthru
          _
        // Predicated region
        $region73: #{tpu_custom_call.1} parent=67 // pred_check
          %p4956 = pneg %p175
        $region74: #{tpu_custom_call.1} parent=67 // pred_check_branch
          %4958 = sbr.rel (%p4956) target = $region76
        $region75: #{tpu_custom_call.1} parent=67 // pred_region
          %s4959 = sand.u32 %s32, 1
          %s4960 = scalar_lea.sflag [#allocation12], %s4959
          %s4961 = sand.u32 %s160, 1
          %s4962 = smul.addr %s4961, 256
          %s4963 = scalar_lea.vmem [#allocation11], %s4962
          %4964 = dma.done %s4960, 4096
        $region76: #{tpu_custom_call.1} parent=67 // pred_fallthru
          _
        // Predicated region
        $region77: #{tpu_custom_call.1} parent=67 // pred_check
          %p4965 = pneg %p201
        $region78: #{tpu_custom_call.1} parent=67 // pred_check_branch
          %4967 = sbr.rel (%p4965) target = $region80
        $region79: #{tpu_custom_call.1} parent=67 // pred_region
          %s4968 = sand.u32 %s32, 1
          %s4969 = scalar_lea.sflag [#allocation12], %s4968
          %s4970 = sand.u32 %s186, 1
          %s4971 = smul.addr %s4970, 256
          %s4972 = scalar_lea.vmem [#allocation13], %s4971
          %4973 = dma.done %s4969, 4096
        $region80: #{tpu_custom_call.1} parent=67 // pred_fallthru
          _
      $region68: #{tpu_custom_call.1} parent=5 // pred_fallthru
        _
    $region6: #{tpu_custom_call.1} parent=1 // loop_footer
      %s30 = sadd.s32 1, %s26
    $region7: #{tpu_custom_call.1} parent=1 // loop_footer_branch
      %25 = sbr.rel target = $region3
    $region8: #{tpu_custom_call.1} parent=1 // loop_exit
      _
    %4974 = vsyncpa [#allocation3], 1
    %s4975 = scalar_lea.sflag [#allocation3], 1
    %4976 = vsyncpa %s4975, 1
    %4977 = vsyncpa [#allocation6], 1
    %s4978 = scalar_lea.sflag [#allocation6], 1
    %4979 = vsyncpa %s4978, 1
    %4980 = vsyncpa [#allocation9], 1
    %4981 = vsyncpa [#allocation4], 1
    %s4982 = scalar_lea.sflag [#allocation4], 1
    %4983 = vsyncpa %s4982, 1
    %4984 = vsyncpa [#allocation12], 1
    %s4985 = scalar_lea.sflag [#allocation12], 1
    %4986 = vsyncpa %s4985, 1

</llo_original>
